<compile_context>
chip_gen: v5e
topology: v5e:2x2
jax: 0.10.0
libtpu: 0.0.40
codegen_flags: <defaults>
</compile_context>

<pallas_src>
import math
from functools import partial

import jax
import jax.numpy as jnp
from jax.experimental import pallas as pl
from jax.experimental.pallas import tpu as pltpu

H = 15
H2 = 15
_PCOLS = 6 + 2 * H   # 36 packed parameter columns per net
_NCORES = 2          # leading "parallel" grid axis (megacore on v7x; harmless on 1-TC chips)
_TILE_CAP = 8192     # lane-tile size cap (multiple of 128); sweep 8192..32768


# ----------------------------- parameter packing -----------------------------

def _init_linear(key, fan_in, fan_out):
    """PyTorch nn.Linear default init; torch layout: W (out, in), b (out,)."""
    k_w, k_b = jax.random.split(key)
    bound = 1.0 / math.sqrt(fan_in)
    w = jax.random.uniform(k_w, (fan_out, fan_in), jnp.float32, -bound, bound)
    b = jax.random.uniform(k_b, (fan_out,), jnp.float32, -bound, bound)
    return w, b


def init_net_params(key):
    k1, k2, k3, k4 = jax.random.split(key, 4)
    w1, b1 = _init_linear(k1, 1, H)
    w2, b2 = _init_linear(k2, H, H)
    w3, b3 = _init_linear(k3, H, H2)
    w4, b4 = _init_linear(k4, H2, 1)
    return (w1, b1, w2, b2, w3, b3, w4, b4)


def _pack_net_params(params):
    """Pack one net's 8 arrays into a single (H, _PCOLS) f32 slab."""
    w1, b1, w2, b2, w3, b3, w4, b4 = params
    b4_col = jnp.concatenate(
        [b4.reshape(1, 1), jnp.zeros((H - 1, 1), jnp.float32)], axis=0)
    return jnp.concatenate([
        w1.reshape(H, 1),      # col 0       : fc1.weight (in=1)
        b1.reshape(H, 1),      # col 1       : fc1.bias
        w2.reshape(H, H),      # cols 2..16  : fc2.weight (out, in)
        b2.reshape(H, 1),      # col 17      : fc2.bias
        w3.reshape(H2, H),     # cols 18..32 : fc3.weight (out, in)
        b3.reshape(H2, 1),     # col 33      : fc3.bias
        w4.reshape(H2, 1),     # col 34      : fc4.weight transposed (out=1)
        b4_col,                # col 35      : fc4.bias at row 0
    ], axis=1).astype(jnp.float32)


def _unpack_net(p):
    """p: (H, _PCOLS) -> (w1, b1, W2, b2, W3, b3, w4, b4)."""
    w1 = p[:, 0:1]                       # (H, 1)
    b1 = p[:, 1:2]                       # (H, 1)
    W2 = p[:, 2:2 + H]                   # (H, H)
    b2 = p[:, 2 + H:3 + H]               # (H, 1)
    W3 = p[:, 3 + H:3 + 2 * H]           # (H2, H)
    b3 = p[:, 3 + 2 * H:4 + 2 * H]       # (H2, 1)
    w4 = p[:, 4 + 2 * H:5 + 2 * H]       # (H2, 1)
    b4 = p[0:1, 5 + 2 * H:6 + 2 * H]     # (1, 1)
    return w1, b1, W2, b2, W3, b3, w4, b4


# --------------------------------- kernel ------------------------------------

def _mlp_lane_dense(x_row, p):
    """x_row: (1, N) samples on lanes; p: (H, _PCOLS) packed params -> (1, N)."""
    w1, b1, W2, b2, W3, b3, w4, b4 = _unpack_net(p)

    # fc1: in_features == 1 -> broadcast FMA on the VPU.
    h = jnp.tanh(w1 * x_row + b1)                                   # (H, N)

    # fc2 / fc3: (15,15) x (15,N) contraction on the MXU.  HIGHEST precision
    # -> multi-pass bf16 (f32-equivalent), matches the f32 reference.
    def dense_mxu(w, b, hin):
        return jnp.dot(w, hin, preferred_element_type=jnp.float32,
                       precision=jax.lax.Precision.HIGHEST) + b

    h = jnp.maximum(dense_mxu(W2, b2, h), 0.0)                      # relu
    h = jnp.tanh(dense_mxu(W3, b3, h))                              # tanh

    # fc4: out_features == 1 -> elementwise mul + sublane (XLU) reduce.
    return jnp.tanh(jnp.sum(w4 * h, axis=0, keepdims=True) + b4)    # (1, N)


def _hgr_partial_kernel(n_true, tile, tiles_per_core,
                        data_ref, params_ref, out_ref,
                        acc_f, acc_g, acc_ff, acc_gg, acc_fg):
    c = pl.program_id(0)           # core / parallel axis
    i = pl.program_id(1)           # lane-tile axis within this core
    last = pl.num_programs(1) - 1

    @pl.when(i == 0)
    def _init():
        acc_f[...] = jnp.zeros_like(acc_f)
        acc_g[...] = jnp.zeros_like(acc_g)
        acc_ff[...] = jnp.zeros_like(acc_ff)
        acc_gg[...] = jnp.zeros_like(acc_gg)
        acc_fg[...] = jnp.zeros_like(acc_fg)

    f = _mlp_lane_dense(data_ref[0:1, :], params_ref[0])    # (1, tile)
    g = _mlp_lane_dense(data_ref[1:2, :], params_ref[1])    # (1, tile)

    start = (c * tiles_per_core + i) * tile
    is_full = (start + tile) <= n_true   # no padded lanes in this tile

    @pl.when(is_full)
    def _acc_full():
        acc_f[...] += f
        acc_g[...] += g
        acc_ff[...] += f * f
        acc_gg[...] += g * g
        acc_fg[...] += f * g

    @pl.when(jnp.logical_not(is_full))
    def _acc_masked():
        lane = jax.lax.broadcasted_iota(jnp.int32, (1, tile), 1)
        valid = (start + lane) < n_true
        fm = jnp.where(valid, f, 0.0)
        gm = jnp.where(valid, g, 0.0)
        acc_f[...] += fm
        acc_g[...] += gm
        acc_ff[...] += fm * fm
        acc_gg[...] += gm * gm
        acc_fg[...] += fm * gm

    @pl.when(i == last)
    def _epilogue():
        # Per-core partial moments: [Sf, Sg, Sff, Sgg, Sfg] in lanes 0..4 of
        # sublane 0 of this core's output row.
        sf = jnp.sum(acc_f[...], axis=1, keepdims=True)     # (1, 1)
        sg = jnp.sum(acc_g[...], axis=1, keepdims=True)
        sff = jnp.sum(acc_ff[...], axis=1, keepdims=True)
        sgg = jnp.sum(acc_gg[...], axis=1, keepdims=True)
        sfg = jnp.sum(acc_fg[...], axis=1, keepdims=True)
        sub = jax.lax.broadcasted_iota(jnp.int32, (1, 8, 128), 1)
        lane = jax.lax.broadcasted_iota(jnp.int32, (1, 8, 128), 2)
        on0 = sub == 0
        row = (jnp.where(on0 & (lane == 0), sf, 0.0)
               + jnp.where(on0 & (lane == 1), sg, 0.0)
               + jnp.where(on0 & (lane == 2), sff, 0.0)
               + jnp.where(on0 & (lane == 3), sgg, 0.0)
               + jnp.where(on0 & (lane == 4), sfg, 0.0))
        out_ref[...] = row


# -------------------------------- wrapper ------------------------------------

def hgr_nn_forward(yhat, s_var, params_f, params_g, nb=1):
    """Pallas implementation of HGR_NN.forward (evaluation of ret)."""
    # TODO(synk): nb drives the inner Adam training loop, not replicated here.
    del nb
    y = jnp.asarray(yhat, jnp.float32).reshape(-1)
    s = jnp.asarray(s_var, jnp.float32).reshape(-1)
    n_true = int(y.shape[0])
    if n_true < 2:
        raise ValueError("HGR_NN needs at least 2 samples (unbiased std).")

    lane = 128
    tile = min(_TILE_CAP, ((n_true + lane - 1) // lane) * lane)
    num_tiles = (n_true + tile - 1) // tile
    tiles_per_core = (num_tiles + _NCORES - 1) // _NCORES
    n_pad = _NCORES * tiles_per_core * tile

    data = jnp.stack([y, s], axis=0)                       # (2, n_true)
    data = jnp.pad(data, ((0, 0), (0, n_pad - n_true)))    # (2, n_pad)
    packed = jnp.stack(
        [_pack_net_params(params_f), _pack_net_params(params_g)], axis=0)

    kernel = partial(_hgr_partial_kernel, n_true, tile, tiles_per_core)

    moments = pl.pallas_call(
        kernel,
        out_shape=jax.ShapeDtypeStruct((_NCORES, 8, 128), jnp.float32),
        grid_spec=pltpu.PrefetchScalarGridSpec(
            num_scalar_prefetch=0,
            grid=(_NCORES, tiles_per_core),
            in_specs=[
                # yhat / s packed into one array: one data DMA per step.
                pl.BlockSpec((2, tile),
                             lambda c, i: (0, c * tiles_per_core + i)),
                # packed parameters for both nets (single small DMA).
                pl.BlockSpec((2, H, _PCOLS), lambda c, i: (0, 0, 0)),
            ],
            out_specs=pl.BlockSpec((1, 8, 128), lambda c, i: (c, 0, 0)),
            scratch_shapes=[pltpu.VMEM((1, tile), jnp.float32)] * 5,
        ),
        compiler_params=pltpu.CompilerParams(
            dimension_semantics=("parallel", "arbitrary")),
    )(data, packed)

    # Scalar epilogue (combine per-core partial moments) in plain JAX.
    sums = jnp.sum(moments[:, 0, :], axis=0)        # (128,)
    sf, sg, sff, sgg, sfg = (sums[k] for k in range(5))
    n = jnp.float32(n_true)
    mf = sf / n
    mg = sg / n
    cff = sff - n * mf * mf          # Sum (f - mf)^2
    cgg = sgg - n * mg * mg          # Sum (g - mg)^2
    cfg = sfg - n * mf * mg          # Sum (f - mf)(g - mg)
    eps = jnp.float32(1e-9)
    var_f = cff / (n - 1.0)          # unbiased, matches torch.std
    var_g = cgg / (n - 1.0)
    return (cfg / n) * jax.lax.rsqrt(var_f + eps) * jax.lax.rsqrt(var_g + eps)


# ------------------------------ pure-JAX ref ----------------------------------

def _hgr_reference(yhat, s_var, params_f, params_g):
    hi = jax.lax.Precision.HIGHEST

    def mlp(x, params):
        w1, b1, w2, b2, w3, b3, w4, b4 = params
        h = jnp.tanh(jnp.dot(x, w1.T, precision=hi) + b1)
        h = jnp.maximum(jnp.dot(h, w2.T, precision=hi) + b2, 0.0)
        h = jnp.tanh(jnp.dot(h, w3.T, precision=hi) + b3)
        return jnp.tanh(jnp.dot(h, w4.T, precision=hi) + b4)

    f = mlp(jnp.asarray(yhat, jnp.float32).reshape(-1, 1), params_f)
    g = mlp(jnp.asarray(s_var, jnp.float32).reshape(-1, 1), params_g)
    n = f.shape[0]
    eps = 1e-9

    def norm(p):
        c = p - jnp.mean(p)
        var = jnp.sum(c * c) / (n - 1)
        return c / jnp.sqrt(var + eps)

    return jnp.mean(norm(f) * norm(g))


if __name__ == "__main__":
    key = jax.random.PRNGKey(0)
    k_f, k_g, k_y, k_s = jax.random.split(key, 4)

    params_F = init_net_params(k_f)
    params_G = init_net_params(k_g)

    N = 600  # exercises tail masking + the 2-core split (core 1 all-padded)
    yhat = jax.random.normal(k_y, (N,), jnp.float32)
    s_var = 0.5 * yhat + jax.random.normal(k_s, (N,), jnp.float32)

    ret = hgr_nn_forward(yhat, s_var, params_F, params_G, nb=1)
    ret = jax.block_until_ready(ret)

    ref = jax.block_until_ready(_hgr_reference(yhat, s_var, params_F, params_G))
    assert abs(float(ret) - float(ref)) < 1e-3, (float(ret), float(ref))
    print("KERNEL_OK")
</pallas_src>

<mosaic_0001>
module attributes {stable_mosaic.version = 11 : i64} {
  func.func @_hgr_partial_kernel(%arg0: i32, %arg1: i32, %arg2: memref<2x640xf32, #tpu.memory_space<vmem>>, %arg3: memref<2x15x36xf32, #tpu.memory_space<vmem>>, %arg4: memref<1x8x128xf32, #tpu.memory_space<vmem>>, %arg5: memref<1x640xf32, #tpu.memory_space<vmem>>, %arg6: memref<1x640xf32, #tpu.memory_space<vmem>>, %arg7: memref<1x640xf32, #tpu.memory_space<vmem>>, %arg8: memref<1x640xf32, #tpu.memory_space<vmem>>, %arg9: memref<1x640xf32, #tpu.memory_space<vmem>>) attributes {dimension_semantics = [#tpu.dimension_semantics<parallel>, #tpu.dimension_semantics<arbitrary>], iteration_bounds = array<i64: 2, 1>, scalar_prefetch = 0 : i64, scratch_operands = 5 : i64, tpu.core_type = #tpu.core_type<tc>, window_params = [{transform_indices = @transform_0, window_bounds = array<i64: 2, 640>}, {pipeline_mode = #tpu.pipeline_mode<synchronous>, transform_indices = @transform_1, window_bounds = array<i64: 2, 15, 36>}, {transform_indices = @transform_2, window_bounds = array<i64: 1, 8, 128>}]} {
    %c0_i32 = arith.constant 0 : i32
    %0 = arith.cmpi eq, %arg1, %c0_i32 : i32
    %1 = arith.extui %0 : i1 to i32
    %c0_i32_0 = arith.constant 0 : i32
    %2 = arith.cmpi ne, %1, %c0_i32_0 : i32
    scf.if %2 {
      %cst_21 = arith.constant 0.000000e+00 : f32
      %82 = vector.broadcast %cst_21 : f32 to vector<1x640xf32>
      %c0_22 = arith.constant 0 : index
      %c0_23 = arith.constant 0 : index
      %83 = vector.load %arg5[%c0_22, %c0_23] : memref<1x640xf32, #tpu.memory_space<vmem>>, vector<1x640xf32>
      tpu.vector_store %arg5[%c0_22, %c0_23], %82 {strides = array<i32>} : memref<1x640xf32, #tpu.memory_space<vmem>>, vector<1x640xf32>,
      %cst_24 = arith.constant 0.000000e+00 : f32
      %84 = vector.broadcast %cst_24 : f32 to vector<1x640xf32>
      %c0_25 = arith.constant 0 : index
      %c0_26 = arith.constant 0 : index
      %85 = vector.load %arg6[%c0_25, %c0_26] : memref<1x640xf32, #tpu.memory_space<vmem>>, vector<1x640xf32>
      tpu.vector_store %arg6[%c0_25, %c0_26], %84 {strides = array<i32>} : memref<1x640xf32, #tpu.memory_space<vmem>>, vector<1x640xf32>,
      %cst_27 = arith.constant 0.000000e+00 : f32
      %86 = vector.broadcast %cst_27 : f32 to vector<1x640xf32>
      %c0_28 = arith.constant 0 : index
      %c0_29 = arith.constant 0 : index
      %87 = vector.load %arg7[%c0_28, %c0_29] : memref<1x640xf32, #tpu.memory_space<vmem>>, vector<1x640xf32>
      tpu.vector_store %arg7[%c0_28, %c0_29], %86 {strides = array<i32>} : memref<1x640xf32, #tpu.memory_space<vmem>>, vector<1x640xf32>,
      %cst_30 = arith.constant 0.000000e+00 : f32
      %88 = vector.broadcast %cst_30 : f32 to vector<1x640xf32>
      %c0_31 = arith.constant 0 : index
      %c0_32 = arith.constant 0 : index
      %89 = vector.load %arg8[%c0_31, %c0_32] : memref<1x640xf32, #tpu.memory_space<vmem>>, vector<1x640xf32>
      tpu.vector_store %arg8[%c0_31, %c0_32], %88 {strides = array<i32>} : memref<1x640xf32, #tpu.memory_space<vmem>>, vector<1x640xf32>,
      %cst_33 = arith.constant 0.000000e+00 : f32
      %90 = vector.broadcast %cst_33 : f32 to vector<1x640xf32>
      %c0_34 = arith.constant 0 : index
      %c0_35 = arith.constant 0 : index
      %91 = vector.load %arg9[%c0_34, %c0_35] : memref<1x640xf32, #tpu.memory_space<vmem>>, vector<1x640xf32>
      tpu.vector_store %arg9[%c0_34, %c0_35], %90 {strides = array<i32>} : memref<1x640xf32, #tpu.memory_space<vmem>>, vector<1x640xf32>,
    } else {
    }
    %c0 = arith.constant 0 : index
    %c0_1 = arith.constant 0 : index
    %3 = vector.load %arg2[%c0, %c0_1] : memref<2x640xf32, #tpu.memory_space<vmem>>, vector<1x640xf32>
    %c0_2 = arith.constant 0 : index
    %c0_3 = arith.constant 0 : index
    %c0_4 = arith.constant 0 : index
    %4 = vector.load %arg3[%c0_2, %c0_3, %c0_4] : memref<2x15x36xf32, #tpu.memory_space<vmem>>, vector<1x15x36xf32>
    %5 = vector.shape_cast %4 : vector<1x15x36xf32> to vector<15x36xf32>
    %6 = vector.extract_strided_slice %5 {offsets = [0, 0], sizes = [15, 1], strides = [1, 1]} : vector<15x36xf32> to vector<15x1xf32>
    %7 = vector.extract_strided_slice %5 {offsets = [0, 1], sizes = [15, 1], strides = [1, 1]} : vector<15x36xf32> to vector<15x1xf32>
    %8 = vector.extract_strided_slice %5 {offsets = [0, 2], sizes = [15, 15], strides = [1, 1]} : vector<15x36xf32> to vector<15x15xf32>
    %9 = vector.extract_strided_slice %5 {offsets = [0, 17], sizes = [15, 1], strides = [1, 1]} : vector<15x36xf32> to vector<15x1xf32>
    %10 = vector.extract_strided_slice %5 {offsets = [0, 18], sizes = [15, 15], strides = [1, 1]} : vector<15x36xf32> to vector<15x15xf32>
    %11 = vector.extract_strided_slice %5 {offsets = [0, 33], sizes = [15, 1], strides = [1, 1]} : vector<15x36xf32> to vector<15x1xf32>
    %12 = vector.extract_strided_slice %5 {offsets = [0, 34], sizes = [15, 1], strides = [1, 1]} : vector<15x36xf32> to vector<15x1xf32>
    %13 = vector.extract_strided_slice %5 {offsets = [0, 35], sizes = [1, 1], strides = [1, 1]} : vector<15x36xf32> to vector<1x1xf32>
    %14 = vector.broadcast %6 : vector<15x1xf32> to vector<15x640xf32>
    %15 = vector.broadcast %3 : vector<1x640xf32> to vector<15x640xf32>
    %16 = arith.mulf %14, %15 : vector<15x640xf32>
    %17 = vector.broadcast %7 : vector<15x1xf32> to vector<15x640xf32>
    %18 = arith.addf %16, %17 : vector<15x640xf32>
    %19 = math.tanh %18 : vector<15x640xf32>
    %cst = arith.constant dense<0.000000e+00> : vector<15x640xf32>
    %20 = tpu.matmul %8, %19, %cst {dimension_numbers = #tpu.dot_dimension_numbers<[1], [0], [0], [1], [0, 0, 1, 1], [], []>, precision = #tpu.contract_precision<fp32>} : vector<15x15xf32>, vector<15x640xf32>, vector<15x640xf32> -> vector<15x640xf32>
    %21 = vector.broadcast %9 : vector<15x1xf32> to vector<15x640xf32>
    %22 = arith.addf %20, %21 : vector<15x640xf32>
    %cst_5 = arith.constant 0.000000e+00 : f32
    %23 = vector.broadcast %cst_5 : f32 to vector<15x640xf32>
    %24 = arith.maximumf %22, %23 : vector<15x640xf32>
    %cst_6 = arith.constant dense<0.000000e+00> : vector<15x640xf32>
    %25 = tpu.matmul %10, %24, %cst_6 {dimension_numbers = #tpu.dot_dimension_numbers<[1], [0], [0], [1], [0, 0, 1, 1], [], []>, precision = #tpu.contract_precision<fp32>} : vector<15x15xf32>, vector<15x640xf32>, vector<15x640xf32> -> vector<15x640xf32>
    %26 = vector.broadcast %11 : vector<15x1xf32> to vector<15x640xf32>
    %27 = arith.addf %25, %26 : vector<15x640xf32>
    %28 = math.tanh %27 : vector<15x640xf32>
    %29 = vector.broadcast %12 : vector<15x1xf32> to vector<15x640xf32>
    %30 = arith.mulf %29, %28 : vector<15x640xf32>
    %cst_7 = arith.constant dense<0.000000e+00> : vector<640xf32>
    %31 = vector.multi_reduction <add>, %30, %cst_7 [0] : vector<15x640xf32> to vector<640xf32>
    %32 = vector.shape_cast %31 : vector<640xf32> to vector<1x640xf32>
    %33 = vector.broadcast %13 : vector<1x1xf32> to vector<1x640xf32>
    %34 = arith.addf %32, %33 : vector<1x640xf32>
    %35 = math.tanh %34 : vector<1x640xf32>
    %c1 = arith.constant 1 : index
    %c0_8 = arith.constant 0 : index
    %36 = vector.load %arg2[%c1, %c0_8] : memref<2x640xf32, #tpu.memory_space<vmem>>, vector<1x640xf32>
    %c1_9 = arith.constant 1 : index
    %c0_10 = arith.constant 0 : index
    %c0_11 = arith.constant 0 : index
    %37 = vector.load %arg3[%c1_9, %c0_10, %c0_11] : memref<2x15x36xf32, #tpu.memory_space<vmem>>, vector<1x15x36xf32>
    %38 = vector.shape_cast %37 : vector<1x15x36xf32> to vector<15x36xf32>
    %39 = vector.extract_strided_slice %38 {offsets = [0, 0], sizes = [15, 1], strides = [1, 1]} : vector<15x36xf32> to vector<15x1xf32>
    %40 = vector.extract_strided_slice %38 {offsets = [0, 1], sizes = [15, 1], strides = [1, 1]} : vector<15x36xf32> to vector<15x1xf32>
    %41 = vector.extract_strided_slice %38 {offsets = [0, 2], sizes = [15, 15], strides = [1, 1]} : vector<15x36xf32> to vector<15x15xf32>
    %42 = vector.extract_strided_slice %38 {offsets = [0, 17], sizes = [15, 1], strides = [1, 1]} : vector<15x36xf32> to vector<15x1xf32>
    %43 = vector.extract_strided_slice %38 {offsets = [0, 18], sizes = [15, 15], strides = [1, 1]} : vector<15x36xf32> to vector<15x15xf32>
    %44 = vector.extract_strided_slice %38 {offsets = [0, 33], sizes = [15, 1], strides = [1, 1]} : vector<15x36xf32> to vector<15x1xf32>
    %45 = vector.extract_strided_slice %38 {offsets = [0, 34], sizes = [15, 1], strides = [1, 1]} : vector<15x36xf32> to vector<15x1xf32>
    %46 = vector.extract_strided_slice %38 {offsets = [0, 35], sizes = [1, 1], strides = [1, 1]} : vector<15x36xf32> to vector<1x1xf32>
    %47 = vector.broadcast %39 : vector<15x1xf32> to vector<15x640xf32>
    %48 = vector.broadcast %36 : vector<1x640xf32> to vector<15x640xf32>
    %49 = arith.mulf %47, %48 : vector<15x640xf32>
    %50 = vector.broadcast %40 : vector<15x1xf32> to vector<15x640xf32>
    %51 = arith.addf %49, %50 : vector<15x640xf32>
    %52 = math.tanh %51 : vector<15x640xf32>
    %cst_12 = arith.constant dense<0.000000e+00> : vector<15x640xf32>
    %53 = tpu.matmul %41, %52, %cst_12 {dimension_numbers = #tpu.dot_dimension_numbers<[1], [0], [0], [1], [0, 0, 1, 1], [], []>, precision = #tpu.contract_precision<fp32>} : vector<15x15xf32>, vector<15x640xf32>, vector<15x640xf32> -> vector<15x640xf32>
    %54 = vector.broadcast %42 : vector<15x1xf32> to vector<15x640xf32>
    %55 = arith.addf %53, %54 : vector<15x640xf32>
    %cst_13 = arith.constant 0.000000e+00 : f32
    %56 = vector.broadcast %cst_13 : f32 to vector<15x640xf32>
    %57 = arith.maximumf %55, %56 : vector<15x640xf32>
    %cst_14 = arith.constant dense<0.000000e+00> : vector<15x640xf32>
    %58 = tpu.matmul %43, %57, %cst_14 {dimension_numbers = #tpu.dot_dimension_numbers<[1], [0], [0], [1], [0, 0, 1, 1], [], []>, precision = #tpu.contract_precision<fp32>} : vector<15x15xf32>, vector<15x640xf32>, vector<15x640xf32> -> vector<15x640xf32>
    %59 = vector.broadcast %44 : vector<15x1xf32> to vector<15x640xf32>
    %60 = arith.addf %58, %59 : vector<15x640xf32>
    %61 = math.tanh %60 : vector<15x640xf32>
    %62 = vector.broadcast %45 : vector<15x1xf32> to vector<15x640xf32>
    %63 = arith.mulf %62, %61 : vector<15x640xf32>
    %cst_15 = arith.constant dense<0.000000e+00> : vector<640xf32>
    %64 = vector.multi_reduction <add>, %63, %cst_15 [0] : vector<15x640xf32> to vector<640xf32>
    %65 = vector.shape_cast %64 : vector<640xf32> to vector<1x640xf32>
    %66 = vector.broadcast %46 : vector<1x1xf32> to vector<1x640xf32>
    %67 = arith.addf %65, %66 : vector<1x640xf32>
    %68 = math.tanh %67 : vector<1x640xf32>
    %c1_i32 = arith.constant 1 : i32
    %69 = arith.muli %arg0, %c1_i32 : i32
    %70 = arith.addi %69, %arg1 : i32
    %c640_i32 = arith.constant 640 : i32
    %71 = arith.muli %70, %c640_i32 : i32
    %c640_i32_16 = arith.constant 640 : i32
    %72 = arith.addi %71, %c640_i32_16 : i32
    %c600_i32 = arith.constant 600 : i32
    %73 = arith.cmpi sle, %72, %c600_i32 : i32
    %74 = arith.extui %73 : i1 to i32
    %c0_i32_17 = arith.constant 0 : i32
    %75 = arith.cmpi ne, %74, %c0_i32_17 : i32
    scf.if %75 {
      %c0_21 = arith.constant 0 : index
      %c0_22 = arith.constant 0 : index
      %82 = vector.load %arg5[%c0_21, %c0_22] : memref<1x640xf32, #tpu.memory_space<vmem>>, vector<1x640xf32>
      %83 = arith.addf %82, %35 : vector<1x640xf32>
      %c0_23 = arith.constant 0 : index
      %c0_24 = arith.constant 0 : index
      %84 = vector.load %arg5[%c0_23, %c0_24] : memref<1x640xf32, #tpu.memory_space<vmem>>, vector<1x640xf32>
      tpu.vector_store %arg5[%c0_23, %c0_24], %83 {strides = array<i32>} : memref<1x640xf32, #tpu.memory_space<vmem>>, vector<1x640xf32>,
      %c0_25 = arith.constant 0 : index
      %c0_26 = arith.constant 0 : index
      %85 = vector.load %arg6[%c0_25, %c0_26] : memref<1x640xf32, #tpu.memory_space<vmem>>, vector<1x640xf32>
      %86 = arith.addf %85, %68 : vector<1x640xf32>
      %c0_27 = arith.constant 0 : index
      %c0_28 = arith.constant 0 : index
      %87 = vector.load %arg6[%c0_27, %c0_28] : memref<1x640xf32, #tpu.memory_space<vmem>>, vector<1x640xf32>
      tpu.vector_store %arg6[%c0_27, %c0_28], %86 {strides = array<i32>} : memref<1x640xf32, #tpu.memory_space<vmem>>, vector<1x640xf32>,
      %c0_29 = arith.constant 0 : index
      %c0_30 = arith.constant 0 : index
      %88 = vector.load %arg7[%c0_29, %c0_30] : memref<1x640xf32, #tpu.memory_space<vmem>>, vector<1x640xf32>
      %89 = arith.mulf %35, %35 : vector<1x640xf32>
      %90 = arith.addf %88, %89 : vector<1x640xf32>
      %c0_31 = arith.constant 0 : index
      %c0_32 = arith.constant 0 : index
      %91 = vector.load %arg7[%c0_31, %c0_32] : memref<1x640xf32, #tpu.memory_space<vmem>>, vector<1x640xf32>
      tpu.vector_store %arg7[%c0_31, %c0_32], %90 {strides = array<i32>} : memref<1x640xf32, #tpu.memory_space<vmem>>, vector<1x640xf32>,
      %c0_33 = arith.constant 0 : index
      %c0_34 = arith.constant 0 : index
      %92 = vector.load %arg8[%c0_33, %c0_34] : memref<1x640xf32, #tpu.memory_space<vmem>>, vector<1x640xf32>
      %93 = arith.mulf %68, %68 : vector<1x640xf32>
      %94 = arith.addf %92, %93 : vector<1x640xf32>
      %c0_35 = arith.constant 0 : index
      %c0_36 = arith.constant 0 : index
      %95 = vector.load %arg8[%c0_35, %c0_36] : memref<1x640xf32, #tpu.memory_space<vmem>>, vector<1x640xf32>
      tpu.vector_store %arg8[%c0_35, %c0_36], %94 {strides = array<i32>} : memref<1x640xf32, #tpu.memory_space<vmem>>, vector<1x640xf32>,
      %c0_37 = arith.constant 0 : index
      %c0_38 = arith.constant 0 : index
      %96 = vector.load %arg9[%c0_37, %c0_38] : memref<1x640xf32, #tpu.memory_space<vmem>>, vector<1x640xf32>
      %97 = arith.mulf %35, %68 : vector<1x640xf32>
      %98 = arith.addf %96, %97 : vector<1x640xf32>
      %c0_39 = arith.constant 0 : index
      %c0_40 = arith.constant 0 : index
      %99 = vector.load %arg9[%c0_39, %c0_40] : memref<1x640xf32, #tpu.memory_space<vmem>>, vector<1x640xf32>
      tpu.vector_store %arg9[%c0_39, %c0_40], %98 {strides = array<i32>} : memref<1x640xf32, #tpu.memory_space<vmem>>, vector<1x640xf32>,
    } else {
    }
    %true = arith.constant true
    %76 = arith.xori %73, %true : i1
    %77 = arith.extui %76 : i1 to i32
    %c0_i32_18 = arith.constant 0 : i32
    %78 = arith.cmpi ne, %77, %c0_i32_18 : i32
    scf.if %78 {
      %82 = tpu.iota {dimensions = array<i32: 1>} : vector<1x640xi32>
      %83 = vector.broadcast %71 : i32 to vector<1x640xi32>
      %84 = arith.addi %83, %82 : vector<1x640xi32>
      %c600_i32_21 = arith.constant 600 : i32
      %85 = vector.broadcast %c600_i32_21 : i32 to vector<1x640xi32>
      %86 = arith.cmpi slt, %84, %85 : vector<1x640xi32>
      %cst_22 = arith.constant 0.000000e+00 : f32
      %87 = vector.broadcast %cst_22 : f32 to vector<1x640xf32>
      %88 = arith.select %86, %35, %87 : vector<1x640xi1>, vector<1x640xf32>
      %cst_23 = arith.constant 0.000000e+00 : f32
      %89 = vector.broadcast %cst_23 : f32 to vector<1x640xf32>
      %90 = arith.select %86, %68, %89 : vector<1x640xi1>, vector<1x640xf32>
      %c0_24 = arith.constant 0 : index
      %c0_25 = arith.constant 0 : index
      %91 = vector.load %arg5[%c0_24, %c0_25] : memref<1x640xf32, #tpu.memory_space<vmem>>, vector<1x640xf32>
      %92 = arith.addf %91, %88 : vector<1x640xf32>
      %c0_26 = arith.constant 0 : index
      %c0_27 = arith.constant 0 : index
      %93 = vector.load %arg5[%c0_26, %c0_27] : memref<1x640xf32, #tpu.memory_space<vmem>>, vector<1x640xf32>
      tpu.vector_store %arg5[%c0_26, %c0_27], %92 {strides = array<i32>} : memref<1x640xf32, #tpu.memory_space<vmem>>, vector<1x640xf32>,
      %c0_28 = arith.constant 0 : index
      %c0_29 = arith.constant 0 : index
      %94 = vector.load %arg6[%c0_28, %c0_29] : memref<1x640xf32, #tpu.memory_space<vmem>>, vector<1x640xf32>
      %95 = arith.addf %94, %90 : vector<1x640xf32>
      %c0_30 = arith.constant 0 : index
      %c0_31 = arith.constant 0 : index
      %96 = vector.load %arg6[%c0_30, %c0_31] : memref<1x640xf32, #tpu.memory_space<vmem>>, vector<1x640xf32>
      tpu.vector_store %arg6[%c0_30, %c0_31], %95 {strides = array<i32>} : memref<1x640xf32, #tpu.memory_space<vmem>>, vector<1x640xf32>,
      %c0_32 = arith.constant 0 : index
      %c0_33 = arith.constant 0 : index
      %97 = vector.load %arg7[%c0_32, %c0_33] : memref<1x640xf32, #tpu.memory_space<vmem>>, vector<1x640xf32>
      %98 = arith.mulf %88, %88 : vector<1x640xf32>
      %99 = arith.addf %97, %98 : vector<1x640xf32>
      %c0_34 = arith.constant 0 : index
      %c0_35 = arith.constant 0 : index
      %100 = vector.load %arg7[%c0_34, %c0_35] : memref<1x640xf32, #tpu.memory_space<vmem>>, vector<1x640xf32>
      tpu.vector_store %arg7[%c0_34, %c0_35], %99 {strides = array<i32>} : memref<1x640xf32, #tpu.memory_space<vmem>>, vector<1x640xf32>,
      %c0_36 = arith.constant 0 : index
      %c0_37 = arith.constant 0 : index
      %101 = vector.load %arg8[%c0_36, %c0_37] : memref<1x640xf32, #tpu.memory_space<vmem>>, vector<1x640xf32>
      %102 = arith.mulf %90, %90 : vector<1x640xf32>
      %103 = arith.addf %101, %102 : vector<1x640xf32>
      %c0_38 = arith.constant 0 : index
      %c0_39 = arith.constant 0 : index
      %104 = vector.load %arg8[%c0_38, %c0_39] : memref<1x640xf32, #tpu.memory_space<vmem>>, vector<1x640xf32>
      tpu.vector_store %arg8[%c0_38, %c0_39], %103 {strides = array<i32>} : memref<1x640xf32, #tpu.memory_space<vmem>>, vector<1x640xf32>,
      %c0_40 = arith.constant 0 : index
      %c0_41 = arith.constant 0 : index
      %105 = vector.load %arg9[%c0_40, %c0_41] : memref<1x640xf32, #tpu.memory_space<vmem>>, vector<1x640xf32>
      %106 = arith.mulf %88, %90 : vector<1x640xf32>
      %107 = arith.addf %105, %106 : vector<1x640xf32>
      %c0_42 = arith.constant 0 : index
      %c0_43 = arith.constant 0 : index
      %108 = vector.load %arg9[%c0_42, %c0_43] : memref<1x640xf32, #tpu.memory_space<vmem>>, vector<1x640xf32>
      tpu.vector_store %arg9[%c0_42, %c0_43], %107 {strides = array<i32>} : memref<1x640xf32, #tpu.memory_space<vmem>>, vector<1x640xf32>,
    } else {
    }
    %c0_i32_19 = arith.constant 0 : i32
    %79 = arith.cmpi eq, %arg1, %c0_i32_19 : i32
    %80 = arith.extui %79 : i1 to i32
    %c0_i32_20 = arith.constant 0 : i32
    %81 = arith.cmpi ne, %80, %c0_i32_20 : i32
    scf.if %81 {
      %c0_21 = arith.constant 0 : index
      %c0_22 = arith.constant 0 : index
      %82 = vector.load %arg5[%c0_21, %c0_22] : memref<1x640xf32, #tpu.memory_space<vmem>>, vector<1x640xf32>
      %cst_23 = arith.constant dense<0.000000e+00> : vector<1xf32>
      %83 = vector.multi_reduction <add>, %82, %cst_23 [1] : vector<1x640xf32> to vector<1xf32>
      %84 = vector.shape_cast %83 : vector<1xf32> to vector<1x1xf32>
      %c0_24 = arith.constant 0 : index
      %c0_25 = arith.constant 0 : index
      %85 = vector.load %arg6[%c0_24, %c0_25] : memref<1x640xf32, #tpu.memory_space<vmem>>, vector<1x640xf32>
      %cst_26 = arith.constant dense<0.000000e+00> : vector<1xf32>
      %86 = vector.multi_reduction <add>, %85, %cst_26 [1] : vector<1x640xf32> to vector<1xf32>
      %87 = vector.shape_cast %86 : vector<1xf32> to vector<1x1xf32>
      %c0_27 = arith.constant 0 : index
      %c0_28 = arith.constant 0 : index
      %88 = vector.load %arg7[%c0_27, %c0_28] : memref<1x640xf32, #tpu.memory_space<vmem>>, vector<1x640xf32>
      %cst_29 = arith.constant dense<0.000000e+00> : vector<1xf32>
      %89 = vector.multi_reduction <add>, %88, %cst_29 [1] : vector<1x640xf32> to vector<1xf32>
      %90 = vector.shape_cast %89 : vector<1xf32> to vector<1x1xf32>
      %c0_30 = arith.constant 0 : index
      %c0_31 = arith.constant 0 : index
      %91 = vector.load %arg8[%c0_30, %c0_31] : memref<1x640xf32, #tpu.memory_space<vmem>>, vector<1x640xf32>
      %cst_32 = arith.constant dense<0.000000e+00> : vector<1xf32>
      %92 = vector.multi_reduction <add>, %91, %cst_32 [1] : vector<1x640xf32> to vector<1xf32>
      %93 = vector.shape_cast %92 : vector<1xf32> to vector<1x1xf32>
      %c0_33 = arith.constant 0 : index
      %c0_34 = arith.constant 0 : index
      %94 = vector.load %arg9[%c0_33, %c0_34] : memref<1x640xf32, #tpu.memory_space<vmem>>, vector<1x640xf32>
      %cst_35 = arith.constant dense<0.000000e+00> : vector<1xf32>
      %95 = vector.multi_reduction <add>, %94, %cst_35 [1] : vector<1x640xf32> to vector<1xf32>
      %96 = vector.shape_cast %95 : vector<1xf32> to vector<1x1xf32>
      %97 = tpu.iota {dimensions = array<i32: 1>} : vector<1x8x128xi32>
      %98 = tpu.iota {dimensions = array<i32: 2>} : vector<1x8x128xi32>
      %c0_i32_36 = arith.constant 0 : i32
      %99 = vector.broadcast %c0_i32_36 : i32 to vector<1x8x128xi32>
      %100 = arith.cmpi eq, %97, %99 : vector<1x8x128xi32>
      %c0_i32_37 = arith.constant 0 : i32
      %101 = vector.broadcast %c0_i32_37 : i32 to vector<1x8x128xi32>
      %102 = arith.cmpi eq, %98, %101 : vector<1x8x128xi32>
      %103 = arith.andi %100, %102 : vector<1x8x128xi1>
      %cst_38 = arith.constant 0.000000e+00 : f32
      %104 = vector.shape_cast %84 : vector<1x1xf32> to vector<1x1x1xf32>
      %105 = vector.broadcast %104 : vector<1x1x1xf32> to vector<1x8x128xf32>
      %106 = vector.broadcast %cst_38 : f32 to vector<1x8x128xf32>
      %107 = arith.select %103, %105, %106 : vector<1x8x128xi1>, vector<1x8x128xf32>
      %c1_i32_39 = arith.constant 1 : i32
      %108 = vector.broadcast %c1_i32_39 : i32 to vector<1x8x128xi32>
      %109 = arith.cmpi eq, %98, %108 : vector<1x8x128xi32>
      %110 = arith.andi %100, %109 : vector<1x8x128xi1>
      %cst_40 = arith.constant 0.000000e+00 : f32
      %111 = vector.shape_cast %87 : vector<1x1xf32> to vector<1x1x1xf32>
      %112 = vector.broadcast %111 : vector<1x1x1xf32> to vector<1x8x128xf32>
      %113 = vector.broadcast %cst_40 : f32 to vector<1x8x128xf32>
      %114 = arith.select %110, %112, %113 : vector<1x8x128xi1>, vector<1x8x128xf32>
      %115 = arith.addf %107, %114 : vector<1x8x128xf32>
      %c2_i32 = arith.constant 2 : i32
      %116 = vector.broadcast %c2_i32 : i32 to vector<1x8x128xi32>
      %117 = arith.cmpi eq, %98, %116 : vector<1x8x128xi32>
      %118 = arith.andi %100, %117 : vector<1x8x128xi1>
      %cst_41 = arith.constant 0.000000e+00 : f32
      %119 = vector.shape_cast %90 : vector<1x1xf32> to vector<1x1x1xf32>
      %120 = vector.broadcast %119 : vector<1x1x1xf32> to vector<1x8x128xf32>
      %121 = vector.broadcast %cst_41 : f32 to vector<1x8x128xf32>
      %122 = arith.select %118, %120, %121 : vector<1x8x128xi1>, vector<1x8x128xf32>
      %123 = arith.addf %115, %122 : vector<1x8x128xf32>
      %c3_i32 = arith.constant 3 : i32
      %124 = vector.broadcast %c3_i32 : i32 to vector<1x8x128xi32>
      %125 = arith.cmpi eq, %98, %124 : vector<1x8x128xi32>
      %126 = arith.andi %100, %125 : vector<1x8x128xi1>
      %cst_42 = arith.constant 0.000000e+00 : f32
      %127 = vector.shape_cast %93 : vector<1x1xf32> to vector<1x1x1xf32>
      %128 = vector.broadcast %127 : vector<1x1x1xf32> to vector<1x8x128xf32>
      %129 = vector.broadcast %cst_42 : f32 to vector<1x8x128xf32>
      %130 = arith.select %126, %128, %129 : vector<1x8x128xi1>, vector<1x8x128xf32>
      %131 = arith.addf %123, %130 : vector<1x8x128xf32>
      %c4_i32 = arith.constant 4 : i32
      %132 = vector.broadcast %c4_i32 : i32 to vector<1x8x128xi32>
      %133 = arith.cmpi eq, %98, %132 : vector<1x8x128xi32>
      %134 = arith.andi %100, %133 : vector<1x8x128xi1>
      %cst_43 = arith.constant 0.000000e+00 : f32
      %135 = vector.shape_cast %96 : vector<1x1xf32> to vector<1x1x1xf32>
      %136 = vector.broadcast %135 : vector<1x1x1xf32> to vector<1x8x128xf32>
      %137 = vector.broadcast %cst_43 : f32 to vector<1x8x128xf32>
      %138 = arith.select %134, %136, %137 : vector<1x8x128xi1>, vector<1x8x128xf32>
      %139 = arith.addf %131, %138 : vector<1x8x128xf32>
      %c0_44 = arith.constant 0 : index
      %c0_45 = arith.constant 0 : index
      %c0_46 = arith.constant 0 : index
      %140 = vector.load %arg4[%c0_44, %c0_45, %c0_46] : memref<1x8x128xf32, #tpu.memory_space<vmem>>, vector<1x8x128xf32>
      tpu.vector_store %arg4[%c0_44, %c0_45, %c0_46], %139 {strides = array<i32>} : memref<1x8x128xf32, #tpu.memory_space<vmem>>, vector<1x8x128xf32>,
    } else {
    }
    return
  }
  func.func @transform_0(%arg0: i32, %arg1: i32) -> (i32, i32) {
    %c1_i32 = arith.constant 1 : i32
    %0 = arith.muli %arg0, %c1_i32 : i32
    %1 = arith.addi %0, %arg1 : i32
    %c0_i32 = arith.constant 0 : i32
    %c0_i32_0 = arith.constant 0 : i32
    return %c0_i32, %1 : i32, i32
  }
  func.func @transform_1(%arg0: i32, %arg1: i32) -> (i32, i32, i32) {
    %c0_i32 = arith.constant 0 : i32
    %c0_i32_0 = arith.constant 0 : i32
    %c0_i32_1 = arith.constant 0 : i32
    %c0_i32_2 = arith.constant 0 : i32
    return %c0_i32, %c0_i32_0, %c0_i32_1 : i32, i32, i32
  }
  func.func @transform_2(%arg0: i32, %arg1: i32) -> (i32, i32, i32) {
    %c0_i32 = arith.constant 0 : i32
    %c0_i32_0 = arith.constant 0 : i32
    %c0_i32_1 = arith.constant 0 : i32
    return %arg0, %c0_i32, %c0_i32_0 : i32, i32, i32
  }
}

</mosaic_0001>

<llo_original>
// kernel: tpu_custom_call.1
$region0: #{tpu_custom_call.1}
  #allocation0 [shape = 'u32[]', space=smem, size = 0x4, offset = 0x4, fixed_abs, tag = 'smem constant byte address 0x4 - core index']
  #allocation1 [shape = 'u32[72,128]{1,0:T(1,128)}', space=vmem, size = 0x9000, scoped, tag = 'internal scratch']
  #allocation2 [shape = 'f32[1,640]{1,0:T(1,128)}', space=vmem, size = 0xa00, scoped, tag = 'scratch operand']
  #allocation3 [shape = 'f32[1,640]{1,0:T(1,128)}', space=vmem, size = 0xa00, scoped, tag = 'scratch operand']
  #allocation4 [shape = 'f32[1,640]{1,0:T(1,128)}', space=vmem, size = 0xa00, scoped, tag = 'scratch operand']
  #allocation5 [shape = 'f32[1,640]{1,0:T(1,128)}', space=vmem, size = 0xa00, scoped, tag = 'scratch operand']
  #allocation6 [shape = 'f32[1,640]{1,0:T(1,128)}', space=vmem, size = 0xa00, scoped, tag = 'scratch operand']
  %s0 = inlined_call_operand.vmem [shape: f32[2,1280], index: 0, kind: input, shape index: {}]
  %s1 = inlined_call_operand.vmem [shape: f32[2,15,36], index: 1, kind: input, shape index: {}]
  %s2 = inlined_call_operand.hbm [shape: f32[2,8,128], index: 2, kind: output, shape index: {}]
  %s3 = sld [smem:[#allocation0]]
  $region57: #{tpu_custom_call.1} parent=0
    _
  %s5 = ssub.s32 1, %s3
  %s6 = scalar_select 0, %s5, %s3
  $region1: #{tpu_custom_call.1} parent=0
    #allocation7 [shape = 'u8[8192]{0}', space=vmem, size = 0x2000, scoped, tag = 'output window, operand 0']
    #allocation8 [shape = 's32[2]{0}', space=sflag, size = 0x8, scoped, tag = 'scoped memory for tpu_custom_call.1']
    %7 = vsyncpa [#allocation8], 0
    %s8 = scalar_lea.sflag [#allocation8], 1
    %9 = vsyncpa %s8, 0
    loop: start=0, step=1, limit=4
    $region2: #{tpu_custom_call.1} parent=1 // loop_pre_header
      _
    $region3: #{tpu_custom_call.1} parent=1 // loop_header
      %s11 = sphi 0, %s15
      %p12 = scmp.ge.s32.totalorder %s11, 4
      %s18 = sphi 0, %s30
      %s19 = sphi 0, %s26
      %s20 = sphi 0, %s18
      %s21 = sphi 0, %s19
      %s22 = sphi 0, %s20
      %s23 = sphi 0, %s21
      %s35 = sphi 0, %s37
      %s38 = sphi 0, %s35
      %s39 = sphi 0, %s38
      %s55 = sphi 0, %s39
      %s59 = sphi 0, %s59
      %s61 = sphi 0, %s59
      %s62 = sphi 0, %s61
      %s76 = sphi 0, %s62
      %s82 = sphi 0, %s84
      %s85 = sphi 0, %s82
      %s86 = sphi 0, %s85
      %s102 = sphi 0, %s86
    $region4: #{tpu_custom_call.1} parent=1 // loop_header_branch
      %14 = sbr.rel (%p12) target = $region8
    $region5: #{tpu_custom_call.1} parent=1 // loop_body
      %s16 = ssub.s32 %s11, 1
      %s17 = ssub.s32 %s11, 2
      %s24 = sadd.s32 1, %s19
      %p25 = scmp.ge.s32.totalorder %s24, 1
      %s26 = scalar_select %p25, 0, %s24
      %s27 = sadd.s32 1, %s18
      %s28 = scalar_select %p25, %s27, %s18
      %p29 = scmp.ge.s32.totalorder %s28, 2
      %s30 = scalar_select %p29, 0, %s28
      %s31 = sadd.s32 %s18, %s19
      %s32 = sadd.s32 %s30, %s26
      %s33 = ssub.s32 %s31, %s32
      %p34 = scmp.eq.s32.totalorder %s33, 0
      %s36 = sadd.s32 %s35, 1
      %s37 = scalar_select %p34, %s35, %s36
      %p40 = pneg %p34
      %p41 = scmp.eq.s32.totalorder %s11, 1
      %p42 = por %p40, %p41
      %p43 = scmp.ne.s32.totalorder %s35, %s38
      %p44 = scmp.eq.s32.totalorder %s11, 0
      %p45 = por %p43, %p44
      %p46 = scmp.ne.s32.totalorder %s35, %s38
      %p47 = scmp.eq.s32.totalorder %s16, 1
      %p48 = por %p46, %p47
      %p49 = scmp.ne.s32.totalorder %s38, %s39
      %p50 = scmp.eq.s32.totalorder %s16, 0
      %p51 = por %p49, %p50
      %p52 = scmp.ne.s32.totalorder %s38, %s39
      %p53 = scmp.eq.s32.totalorder %s17, 1
      %p54 = por %p52, %p53
      %p56 = scmp.ne.s32.totalorder %s39, %s55
      %p57 = scmp.eq.s32.totalorder %s17, 0
      %p58 = por %p56, %p57
      %s60 = sadd.s32 %s59, 1
      %p63 = scmp.eq.s32.totalorder %s11, 1
      %p64 = scmp.ne.s32.totalorder %s59, %s61
      %p65 = scmp.eq.s32.totalorder %s11, 0
      %p66 = por %p64, %p65
      %p67 = scmp.ne.s32.totalorder %s59, %s61
      %p68 = scmp.eq.s32.totalorder %s16, 1
      %p69 = por %p67, %p68
      %p70 = scmp.ne.s32.totalorder %s61, %s62
      %p71 = scmp.eq.s32.totalorder %s16, 0
      %p72 = por %p70, %p71
      %p73 = scmp.ne.s32.totalorder %s61, %s62
      %p74 = scmp.eq.s32.totalorder %s17, 1
      %p75 = por %p73, %p74
      %p77 = scmp.ne.s32.totalorder %s62, %s76
      %p78 = scmp.eq.s32.totalorder %s17, 0
      %p79 = por %p77, %p78
      %s80 = ssub.s32 %s18, %s30
      %p81 = scmp.eq.s32.totalorder %s80, 0
      %s83 = sadd.s32 %s82, 1
      %s84 = scalar_select %p81, %s82, %s83
      %p87 = pneg %p81
      %p88 = scmp.eq.s32.totalorder %s11, 1
      %p89 = por %p87, %p88
      %p90 = scmp.ne.s32.totalorder %s82, %s85
      %p91 = scmp.eq.s32.totalorder %s11, 0
      %p92 = por %p90, %p91
      %p93 = scmp.ne.s32.totalorder %s82, %s85
      %p94 = scmp.eq.s32.totalorder %s16, 1
      %p95 = por %p93, %p94
      %p96 = scmp.ne.s32.totalorder %s85, %s86
      %p97 = scmp.eq.s32.totalorder %s16, 0
      %p98 = por %p96, %p97
      %p99 = scmp.ne.s32.totalorder %s85, %s86
      %p100 = scmp.eq.s32.totalorder %s17, 1
      %p101 = por %p99, %p100
      %p103 = scmp.ne.s32.totalorder %s86, %s102
      %p104 = scmp.eq.s32.totalorder %s17, 0
      %p105 = por %p103, %p104
      %p106 = scmp.le.s32.totalorder 1, %s11
      %p107 = scmp.lt.s32.totalorder %s11, 3
      %p108 = pnand %p106, %p107
      %p109 = pneg %p108
      // Predicated region
      $region9: #{tpu_custom_call.1} parent=5 // pred_check
        _
      $region10: #{tpu_custom_call.1} parent=5 // pred_check_branch
        %111 = sbr.rel (%p108) target = $region12
      $region11: #{tpu_custom_call.1} parent=5 // pred_region
        %s112 = ssub.s32 %s11, 1
        // Predicated region
        $region13: #{tpu_custom_call.1} parent=11 // pred_check
          %p113 = pneg %p72
        $region14: #{tpu_custom_call.1} parent=11 // pred_check_branch
          %115 = sbr.rel (%p113) target = $region16
        $region15: #{tpu_custom_call.1} parent=11 // pred_region
          _
        $region16: #{tpu_custom_call.1} parent=11 // pred_fallthru
          _
      $region12: #{tpu_custom_call.1} parent=5 // pred_fallthru
        _
      %p116 = scmp.lt.s32.totalorder %s11, 2
      // Predicated region
      $region17: #{tpu_custom_call.1} parent=5 // pred_check
        %p117 = pneg %p116
      $region18: #{tpu_custom_call.1} parent=5 // pred_check_branch
        %119 = sbr.rel (%p117) target = $region20
      $region19: #{tpu_custom_call.1} parent=5 // pred_region
        // Predicated region
        $region21: #{tpu_custom_call.1} parent=19 // pred_check
          %p120 = pneg %p45
        $region22: #{tpu_custom_call.1} parent=19 // pred_check_branch
          %122 = sbr.rel (%p120) target = $region24
        $region23: #{tpu_custom_call.1} parent=19 // pred_region
          %s123 = sadd.s32 %s18, %s19
          %s124 = smul.u32 5, %s123
          %p125 = scmp.lt.s32.totalorder %s124, 9
          %s126 = scalar_select %p125, %s124, 9
          %s127 = smul.addr %s126, 2
          %s128 = scalar_lea.vmem %s0, %s127
          %s129 = sadd.s32 %s18, %s19
          %s130 = smul.u32 5, %s129
        $region24: #{tpu_custom_call.1} parent=19 // pred_fallthru
          _
      $region20: #{tpu_custom_call.1} parent=5 // pred_fallthru
        _
      %p131 = scmp.le.s32.totalorder 1, %s11
      %p132 = scmp.lt.s32.totalorder %s11, 3
      %p133 = pnand %p131, %p132
      %p134 = pneg %p133
      // Predicated region
      $region25: #{tpu_custom_call.1} parent=5 // pred_check
        _
      $region26: #{tpu_custom_call.1} parent=5 // pred_check_branch
        %136 = sbr.rel (%p133) target = $region28
      $region27: #{tpu_custom_call.1} parent=5 // pred_region
        %s137 = ssub.s32 %s11, 1
        %s138 = sadd.s32 %s20, %s21
        %s139 = smul.u32 5, %s138
        %p140 = scmp.lt.s32.totalorder %s139, 9
        %s141 = scalar_select %p140, %s139, 9
        %s142 = smul.addr %s141, 2
        %s143 = scalar_lea.vmem %s0, %s142
        %p144 = pneg %p51
        %p145 = pneg %p48
        %p146 = pneg %p72
        %p147 = pneg %p69
        %p148 = pneg %p98
        %p149 = pneg %p95
        %s150 = sand.u32 %s85, 1
        %s151 = scalar_lea.sflag [#allocation8], %s150
        %s152 = sand.u32 %s85, 1
        %s153 = smul.addr %s152, 8
        %s154 = scalar_lea.vmem [#allocation7], %s153
        %s155 = sadd.s32 %s20, %s21
        %s156 = smul.u32 5, %s155
        %p157 = scmp.lt.s32.totalorder %s156, 9
        %s158 = scalar_select %p157, %s156, 9
        %s159 = smul.addr %s158, 2
        %s160 = scalar_lea.vmem %s0, %s159
        %s161 = sadd.s32 %s20, %s21
        %s162 = smul.u32 5, %s161
        %p163 = scmp.eq.s32.totalorder %s21, 0
        // Predicated region
        $region29: #{tpu_custom_call.1} parent=27 // pred_check
          %p164 = pneg %p163
        $region30: #{tpu_custom_call.1} parent=27 // pred_check_branch
          %166 = sbr.rel (%p164) target = $region32
        $region31: #{tpu_custom_call.1} parent=27 // pred_region
          %v167 = vlaneseq
          %vm168 = vcmp.ge.s32.totalorder %v167, 0
          %vm169 = vcmp.lt.s32.totalorder %v167, 640
          %vm170 = vmand %vm168, %vm169
          %171 = vst.msk [vmem:[#allocation2] sm:$0x1f] %vm170, 0.0
          %172 = vst.msk [vmem:[#allocation3] sm:$0x1f] %vm170, 0.0
          %173 = vst.msk [vmem:[#allocation4] sm:$0x1f] %vm170, 0.0
          %174 = vst.msk [vmem:[#allocation5] sm:$0x1f] %vm170, 0.0
          %175 = vst.msk [vmem:[#allocation6] sm:$0x1f] %vm170, 0.0
        $region32: #{tpu_custom_call.1} parent=27 // pred_fallthru
          _
        %v176 = vld [vmem:[%s160] ss:$2 sm:$0x1f]
        %v177 = vld [vmem:[%s1] sm:$0xff]
        %v178 = vld [vmem:[%s1 + $0x8] sm:$0x7f]
        %180 = vset.pattern.permute.xlu0 0
        %181 = vperm.xlu0 %180, %v177
        %v182 = vpop.permute.xlu0 %181
        %185 = vset.pattern.permute.xlu0 0
        %186 = vperm.xlu0 %185, %v178
        %v187 = vpop.permute.xlu0 %186
        %v190 = vperm.slane %v176, 0
        %v191 = vperm.slane %v176, 1
        %v192 = vperm.slane %v176, 2
        %v193 = vperm.slane %v176, 3
        %v194 = vperm.slane %v176, 4
        %v200 = vmul.f32 %v182, %v190
        %v201 = vmul.f32 %v182, %v191
        %v202 = vmul.f32 %v182, %v192
        %v203 = vmul.f32 %v182, %v193
        %v204 = vmul.f32 %v182, %v194
        %v205 = vmul.f32 %v187, %v190
        %v206 = vmul.f32 %v187, %v191
        %v207 = vmul.f32 %v187, %v192
        %v208 = vmul.f32 %v187, %v193
        %v209 = vmul.f32 %v187, %v194
        %210 = vset.pattern.permute.xlu0 1
        %211 = vperm.xlu0 %210, %v177
        %v212 = vpop.permute.xlu0 %211
        %214 = vset.pattern.permute.xlu0 1
        %215 = vperm.xlu0 %214, %v178
        %v216 = vpop.permute.xlu0 %215
        %v218 = vadd.f32 %v200, %v212
        %v219 = vadd.f32 %v201, %v212
        %v220 = vadd.f32 %v202, %v212
        %v221 = vadd.f32 %v203, %v212
        %v222 = vadd.f32 %v204, %v212
        %v223 = vadd.f32 %v205, %v216
        %v224 = vadd.f32 %v206, %v216
        %v225 = vadd.f32 %v207, %v216
        %v226 = vadd.f32 %v208, %v216
        %v227 = vadd.f32 %v209, %v216
        %v228 = vtanh.pop %v218
        %v229 = vtanh.pop %v219
        %v230 = vtanh.pop %v220
        %v231 = vtanh.pop %v221
        %v232 = vtanh.pop %v222
        %v233 = vtanh.pop %v223
        %v234 = vtanh.pop %v224
        %v235 = vtanh.pop %v225
        %v236 = vtanh.pop %v226
        %v237 = vtanh.pop %v227
        %238 = vset.pattern.permute.xlu0 17
        %239 = vperm.xlu0 %238, %v177
        %v240 = vpop.permute.xlu0 %239
        %242 = vset.pattern.permute.xlu0 17
        %243 = vperm.xlu0 %242, %v178
        %v244 = vpop.permute.xlu0 %243
        %246 = vrot.lane.b32.xlu0 %v177, 126
        %v247 = vpop.permute.xlu0 %246
        %248 = vrot.lane.b32.xlu0 %v178, 126
        %v249 = vpop.permute.xlu0 %248
        %vm250 = vcmask 121856
        %v251 = vsel %vm250, %v247, 0
        %v253 = vsel %vm250, %v249, 0
        %vm255 = vcmask 1046528
        %v257 = vsel %vm255, %v233, 0
        %v260 = vsel %vm255, %v234, 0
        %v263 = vsel %vm255, %v235, 0
        %v266 = vsel %vm255, %v236, 0
        %v269 = vsel %vm255, %v237, 0
        %271 = vmatpush.msra.mxu0 0.0
        %272 = vmatpush.msra.mxu0 0.0
        %273 = vmatpush.msra.mxu0 0.0
        %274 = vmatpush.msra.mxu0 0.0
        %275 = vmatpush.msra.mxu0 0.0
        %276 = vmatpush.msra.mxu0 0.0
        %277 = vmatpush.msra.mxu0 0.0
        %278 = vmatpush.msra.mxu0 0.0
        %279 = vmatpush.msra.mxu0 0.0
        %280 = vmatpush.msra.mxu0 0.0
        %281 = vmatpush.msra.mxu0 0.0
        %282 = vmatpush.msra.mxu0 0.0
        %283 = vmatpush.msra.mxu0 0.0
        %284 = vmatpush.msra.mxu0 0.0
        %v285 = vand.u32 %v257, 4294901760
        %286 = vmatpush.msra.mxu0 %v285
        %v287 = vand.u32 %v228, 4294901760
        %288 = vmatpush.msra.mxu0 %v287
        %v289 = vand.u32 %v251, 4294901760
        %v290 = vsub.f32 %v251, %v289
        %v291 = vand.u32 %v290, 4294901760
        %v292 = vsub.f32 %v290, %v291
        %v293 = vand.u32 %v292, 4294901760
        %294 = vmatmul.f32.gmra.mxu0 %v293
        %v295 = vpop.f32.mrf.mxu0
        %v296 = vadd.f32 %v240, %v295
        %v297 = vand.u32 %v253, 4294901760
        %v298 = vsub.f32 %v253, %v297
        %v299 = vand.u32 %v298, 4294901760
        %v300 = vsub.f32 %v298, %v299
        %v301 = vand.u32 %v300, 4294901760
        %302 = vmatmul.f32.gmra.mxu0 %v301
        %v303 = vpop.f32.mrf.mxu0
        %v304 = vadd.f32 %v244, %v303
        %305 = vdwg.mxu0
        %306 = vmatpush.msra.mxu0 0.0
        %307 = vmatpush.msra.mxu0 0.0
        %308 = vmatpush.msra.mxu0 0.0
        %309 = vmatpush.msra.mxu0 0.0
        %310 = vmatpush.msra.mxu0 0.0
        %311 = vmatpush.msra.mxu0 0.0
        %312 = vmatpush.msra.mxu0 0.0
        %313 = vmatpush.msra.mxu0 0.0
        %314 = vmatpush.msra.mxu0 0.0
        %315 = vmatpush.msra.mxu0 0.0
        %316 = vmatpush.msra.mxu0 0.0
        %317 = vmatpush.msra.mxu0 0.0
        %318 = vmatpush.msra.mxu0 0.0
        %319 = vmatpush.msra.mxu0 0.0
        %v320 = vand.u32 %v257, 4294901760
        %v321 = vsub.f32 %v257, %v320
        %v322 = vand.u32 %v321, 4294901760
        %v323 = vsub.f32 %v321, %v322
        %v324 = vand.u32 %v323, 4294901760
        %325 = vmatpush.msra.mxu0 %v324
        %v326 = vand.u32 %v228, 4294901760
        %v327 = vsub.f32 %v228, %v326
        %v328 = vand.u32 %v327, 4294901760
        %v329 = vsub.f32 %v327, %v328
        %v330 = vand.u32 %v329, 4294901760
        %331 = vmatpush.msra.mxu0 %v330
        %v332 = vand.u32 %v251, 4294901760
        %333 = vmatmul.f32.gmra.mxu0 %v332
        %v334 = vpop.f32.mrf.mxu0
        %v335 = vadd.f32 %v296, %v334
        %v336 = vand.u32 %v253, 4294901760
        %337 = vmatmul.f32.gmra.mxu0 %v336
        %v338 = vpop.f32.mrf.mxu0
        %v339 = vadd.f32 %v304, %v338
        %340 = vdwg.mxu0
        %341 = vmatpush.msra.mxu0 0.0
        %342 = vmatpush.msra.mxu0 0.0
        %343 = vmatpush.msra.mxu0 0.0
        %344 = vmatpush.msra.mxu0 0.0
        %345 = vmatpush.msra.mxu0 0.0
        %346 = vmatpush.msra.mxu0 0.0
        %347 = vmatpush.msra.mxu0 0.0
        %348 = vmatpush.msra.mxu0 0.0
        %349 = vmatpush.msra.mxu0 0.0
        %350 = vmatpush.msra.mxu0 0.0
        %351 = vmatpush.msra.mxu0 0.0
        %352 = vmatpush.msra.mxu0 0.0
        %353 = vmatpush.msra.mxu0 0.0
        %354 = vmatpush.msra.mxu0 0.0
        %v355 = vand.u32 %v257, 4294901760
        %v356 = vsub.f32 %v257, %v355
        %357 = vmatpush.msra.mxu0 %v356
        %v358 = vand.u32 %v228, 4294901760
        %v359 = vsub.f32 %v228, %v358
        %360 = vmatpush.msra.mxu0 %v359
        %v361 = vand.u32 %v251, 4294901760
        %v362 = vsub.f32 %v251, %v361
        %363 = vmatmul.f32.gmra.mxu0 %v362
        %v364 = vpop.f32.mrf.mxu0
        %v365 = vadd.f32 %v335, %v364
        %v366 = vand.u32 %v253, 4294901760
        %v367 = vsub.f32 %v253, %v366
        %368 = vmatmul.f32.gmra.mxu0 %v367
        %v369 = vpop.f32.mrf.mxu0
        %v370 = vadd.f32 %v339, %v369
        %371 = vdwg.mxu0
        %372 = vmatpush.msra.mxu0 0.0
        %373 = vmatpush.msra.mxu0 0.0
        %374 = vmatpush.msra.mxu0 0.0
        %375 = vmatpush.msra.mxu0 0.0
        %376 = vmatpush.msra.mxu0 0.0
        %377 = vmatpush.msra.mxu0 0.0
        %378 = vmatpush.msra.mxu0 0.0
        %379 = vmatpush.msra.mxu0 0.0
        %380 = vmatpush.msra.mxu0 0.0
        %381 = vmatpush.msra.mxu0 0.0
        %382 = vmatpush.msra.mxu0 0.0
        %383 = vmatpush.msra.mxu0 0.0
        %384 = vmatpush.msra.mxu0 0.0
        %385 = vmatpush.msra.mxu0 0.0
        %v386 = vand.u32 %v257, 4294901760
        %387 = vmatpush.msra.mxu0 %v386
        %v388 = vand.u32 %v228, 4294901760
        %389 = vmatpush.msra.mxu0 %v388
        %v390 = vand.u32 %v251, 4294901760
        %v391 = vsub.f32 %v251, %v390
        %v392 = vand.u32 %v391, 4294901760
        %393 = vmatmul.f32.gmra.mxu0 %v392
        %v394 = vpop.f32.mrf.mxu0
        %v395 = vadd.f32 %v365, %v394
        %v396 = vand.u32 %v253, 4294901760
        %v397 = vsub.f32 %v253, %v396
        %v398 = vand.u32 %v397, 4294901760
        %399 = vmatmul.f32.gmra.mxu0 %v398
        %v400 = vpop.f32.mrf.mxu0
        %v401 = vadd.f32 %v370, %v400
        %402 = vdwg.mxu0
        %403 = vmatpush.msra.mxu0 0.0
        %404 = vmatpush.msra.mxu0 0.0
        %405 = vmatpush.msra.mxu0 0.0
        %406 = vmatpush.msra.mxu0 0.0
        %407 = vmatpush.msra.mxu0 0.0
        %408 = vmatpush.msra.mxu0 0.0
        %409 = vmatpush.msra.mxu0 0.0
        %410 = vmatpush.msra.mxu0 0.0
        %411 = vmatpush.msra.mxu0 0.0
        %412 = vmatpush.msra.mxu0 0.0
        %413 = vmatpush.msra.mxu0 0.0
        %414 = vmatpush.msra.mxu0 0.0
        %415 = vmatpush.msra.mxu0 0.0
        %416 = vmatpush.msra.mxu0 0.0
        %v417 = vand.u32 %v257, 4294901760
        %v418 = vsub.f32 %v257, %v417
        %v419 = vand.u32 %v418, 4294901760
        %420 = vmatpush.msra.mxu0 %v419
        %v421 = vand.u32 %v228, 4294901760
        %v422 = vsub.f32 %v228, %v421
        %v423 = vand.u32 %v422, 4294901760
        %424 = vmatpush.msra.mxu0 %v423
        %v425 = vand.u32 %v251, 4294901760
        %426 = vmatmul.f32.gmra.mxu0 %v425
        %v427 = vpop.f32.mrf.mxu0
        %v428 = vadd.f32 %v395, %v427
        %v429 = vand.u32 %v253, 4294901760
        %430 = vmatmul.f32.gmra.mxu0 %v429
        %v431 = vpop.f32.mrf.mxu0
        %v432 = vadd.f32 %v401, %v431
        %433 = vdwg.mxu0
        %434 = vmatpush.msra.mxu0 0.0
        %435 = vmatpush.msra.mxu0 0.0
        %436 = vmatpush.msra.mxu0 0.0
        %437 = vmatpush.msra.mxu0 0.0
        %438 = vmatpush.msra.mxu0 0.0
        %439 = vmatpush.msra.mxu0 0.0
        %440 = vmatpush.msra.mxu0 0.0
        %441 = vmatpush.msra.mxu0 0.0
        %442 = vmatpush.msra.mxu0 0.0
        %443 = vmatpush.msra.mxu0 0.0
        %444 = vmatpush.msra.mxu0 0.0
        %445 = vmatpush.msra.mxu0 0.0
        %446 = vmatpush.msra.mxu0 0.0
        %447 = vmatpush.msra.mxu0 0.0
        %v448 = vand.u32 %v257, 4294901760
        %449 = vmatpush.msra.mxu0 %v448
        %v450 = vand.u32 %v228, 4294901760
        %451 = vmatpush.msra.mxu0 %v450
        %v452 = vand.u32 %v251, 4294901760
        %453 = vmatmul.f32.gmra.mxu0 %v452
        %v454 = vpop.f32.mrf.mxu0
        %v455 = vadd.f32 %v428, %v454
        %v456 = vand.u32 %v253, 4294901760
        %457 = vmatmul.f32.gmra.mxu0 %v456
        %v458 = vpop.f32.mrf.mxu0
        %v459 = vadd.f32 %v432, %v458
        %460 = vdwg.mxu0
        %461 = vmatpush.msra.mxu0 0.0
        %462 = vmatpush.msra.mxu0 0.0
        %463 = vmatpush.msra.mxu0 0.0
        %464 = vmatpush.msra.mxu0 0.0
        %465 = vmatpush.msra.mxu0 0.0
        %466 = vmatpush.msra.mxu0 0.0
        %467 = vmatpush.msra.mxu0 0.0
        %468 = vmatpush.msra.mxu0 0.0
        %469 = vmatpush.msra.mxu0 0.0
        %470 = vmatpush.msra.mxu0 0.0
        %471 = vmatpush.msra.mxu0 0.0
        %472 = vmatpush.msra.mxu0 0.0
        %473 = vmatpush.msra.mxu0 0.0
        %474 = vmatpush.msra.mxu0 0.0
        %v475 = vand.u32 %v260, 4294901760
        %476 = vmatpush.msra.mxu0 %v475
        %v477 = vand.u32 %v229, 4294901760
        %478 = vmatpush.msra.mxu0 %v477
        %v479 = vand.u32 %v251, 4294901760
        %v480 = vsub.f32 %v251, %v479
        %v481 = vand.u32 %v480, 4294901760
        %v482 = vsub.f32 %v480, %v481
        %v483 = vand.u32 %v482, 4294901760
        %484 = vmatmul.f32.gmra.mxu0 %v483
        %v485 = vpop.f32.mrf.mxu0
        %v486 = vadd.f32 %v240, %v485
        %v487 = vand.u32 %v253, 4294901760
        %v488 = vsub.f32 %v253, %v487
        %v489 = vand.u32 %v488, 4294901760
        %v490 = vsub.f32 %v488, %v489
        %v491 = vand.u32 %v490, 4294901760
        %492 = vmatmul.f32.gmra.mxu0 %v491
        %v493 = vpop.f32.mrf.mxu0
        %v494 = vadd.f32 %v244, %v493
        %495 = vdwg.mxu0
        %496 = vmatpush.msra.mxu0 0.0
        %497 = vmatpush.msra.mxu0 0.0
        %498 = vmatpush.msra.mxu0 0.0
        %499 = vmatpush.msra.mxu0 0.0
        %500 = vmatpush.msra.mxu0 0.0
        %501 = vmatpush.msra.mxu0 0.0
        %502 = vmatpush.msra.mxu0 0.0
        %503 = vmatpush.msra.mxu0 0.0
        %504 = vmatpush.msra.mxu0 0.0
        %505 = vmatpush.msra.mxu0 0.0
        %506 = vmatpush.msra.mxu0 0.0
        %507 = vmatpush.msra.mxu0 0.0
        %508 = vmatpush.msra.mxu0 0.0
        %509 = vmatpush.msra.mxu0 0.0
        %v510 = vand.u32 %v260, 4294901760
        %v511 = vsub.f32 %v260, %v510
        %v512 = vand.u32 %v511, 4294901760
        %v513 = vsub.f32 %v511, %v512
        %v514 = vand.u32 %v513, 4294901760
        %515 = vmatpush.msra.mxu0 %v514
        %v516 = vand.u32 %v229, 4294901760
        %v517 = vsub.f32 %v229, %v516
        %v518 = vand.u32 %v517, 4294901760
        %v519 = vsub.f32 %v517, %v518
        %v520 = vand.u32 %v519, 4294901760
        %521 = vmatpush.msra.mxu0 %v520
        %v522 = vand.u32 %v251, 4294901760
        %523 = vmatmul.f32.gmra.mxu0 %v522
        %v524 = vpop.f32.mrf.mxu0
        %v525 = vadd.f32 %v486, %v524
        %v526 = vand.u32 %v253, 4294901760
        %527 = vmatmul.f32.gmra.mxu0 %v526
        %v528 = vpop.f32.mrf.mxu0
        %v529 = vadd.f32 %v494, %v528
        %530 = vdwg.mxu0
        %531 = vmatpush.msra.mxu0 0.0
        %532 = vmatpush.msra.mxu0 0.0
        %533 = vmatpush.msra.mxu0 0.0
        %534 = vmatpush.msra.mxu0 0.0
        %535 = vmatpush.msra.mxu0 0.0
        %536 = vmatpush.msra.mxu0 0.0
        %537 = vmatpush.msra.mxu0 0.0
        %538 = vmatpush.msra.mxu0 0.0
        %539 = vmatpush.msra.mxu0 0.0
        %540 = vmatpush.msra.mxu0 0.0
        %541 = vmatpush.msra.mxu0 0.0
        %542 = vmatpush.msra.mxu0 0.0
        %543 = vmatpush.msra.mxu0 0.0
        %544 = vmatpush.msra.mxu0 0.0
        %v545 = vand.u32 %v260, 4294901760
        %v546 = vsub.f32 %v260, %v545
        %547 = vmatpush.msra.mxu0 %v546
        %v548 = vand.u32 %v229, 4294901760
        %v549 = vsub.f32 %v229, %v548
        %550 = vmatpush.msra.mxu0 %v549
        %v551 = vand.u32 %v251, 4294901760
        %v552 = vsub.f32 %v251, %v551
        %553 = vmatmul.f32.gmra.mxu0 %v552
        %v554 = vpop.f32.mrf.mxu0
        %v555 = vadd.f32 %v525, %v554
        %v556 = vand.u32 %v253, 4294901760
        %v557 = vsub.f32 %v253, %v556
        %558 = vmatmul.f32.gmra.mxu0 %v557
        %v559 = vpop.f32.mrf.mxu0
        %v560 = vadd.f32 %v529, %v559
        %561 = vdwg.mxu0
        %562 = vmatpush.msra.mxu0 0.0
        %563 = vmatpush.msra.mxu0 0.0
        %564 = vmatpush.msra.mxu0 0.0
        %565 = vmatpush.msra.mxu0 0.0
        %566 = vmatpush.msra.mxu0 0.0
        %567 = vmatpush.msra.mxu0 0.0
        %568 = vmatpush.msra.mxu0 0.0
        %569 = vmatpush.msra.mxu0 0.0
        %570 = vmatpush.msra.mxu0 0.0
        %571 = vmatpush.msra.mxu0 0.0
        %572 = vmatpush.msra.mxu0 0.0
        %573 = vmatpush.msra.mxu0 0.0
        %574 = vmatpush.msra.mxu0 0.0
        %575 = vmatpush.msra.mxu0 0.0
        %v576 = vand.u32 %v260, 4294901760
        %577 = vmatpush.msra.mxu0 %v576
        %v578 = vand.u32 %v229, 4294901760
        %579 = vmatpush.msra.mxu0 %v578
        %v580 = vand.u32 %v251, 4294901760
        %v581 = vsub.f32 %v251, %v580
        %v582 = vand.u32 %v581, 4294901760
        %583 = vmatmul.f32.gmra.mxu0 %v582
        %v584 = vpop.f32.mrf.mxu0
        %v585 = vadd.f32 %v555, %v584
        %v586 = vand.u32 %v253, 4294901760
        %v587 = vsub.f32 %v253, %v586
        %v588 = vand.u32 %v587, 4294901760
        %589 = vmatmul.f32.gmra.mxu0 %v588
        %v590 = vpop.f32.mrf.mxu0
        %v591 = vadd.f32 %v560, %v590
        %592 = vdwg.mxu0
        %593 = vmatpush.msra.mxu0 0.0
        %594 = vmatpush.msra.mxu0 0.0
        %595 = vmatpush.msra.mxu0 0.0
        %596 = vmatpush.msra.mxu0 0.0
        %597 = vmatpush.msra.mxu0 0.0
        %598 = vmatpush.msra.mxu0 0.0
        %599 = vmatpush.msra.mxu0 0.0
        %600 = vmatpush.msra.mxu0 0.0
        %601 = vmatpush.msra.mxu0 0.0
        %602 = vmatpush.msra.mxu0 0.0
        %603 = vmatpush.msra.mxu0 0.0
        %604 = vmatpush.msra.mxu0 0.0
        %605 = vmatpush.msra.mxu0 0.0
        %606 = vmatpush.msra.mxu0 0.0
        %v607 = vand.u32 %v260, 4294901760
        %v608 = vsub.f32 %v260, %v607
        %v609 = vand.u32 %v608, 4294901760
        %610 = vmatpush.msra.mxu0 %v609
        %v611 = vand.u32 %v229, 4294901760
        %v612 = vsub.f32 %v229, %v611
        %v613 = vand.u32 %v612, 4294901760
        %614 = vmatpush.msra.mxu0 %v613
        %v615 = vand.u32 %v251, 4294901760
        %616 = vmatmul.f32.gmra.mxu0 %v615
        %v617 = vpop.f32.mrf.mxu0
        %v618 = vadd.f32 %v585, %v617
        %v619 = vand.u32 %v253, 4294901760
        %620 = vmatmul.f32.gmra.mxu0 %v619
        %v621 = vpop.f32.mrf.mxu0
        %v622 = vadd.f32 %v591, %v621
        %623 = vdwg.mxu0
        %624 = vmatpush.msra.mxu0 0.0
        %625 = vmatpush.msra.mxu0 0.0
        %626 = vmatpush.msra.mxu0 0.0
        %627 = vmatpush.msra.mxu0 0.0
        %628 = vmatpush.msra.mxu0 0.0
        %629 = vmatpush.msra.mxu0 0.0
        %630 = vmatpush.msra.mxu0 0.0
        %631 = vmatpush.msra.mxu0 0.0
        %632 = vmatpush.msra.mxu0 0.0
        %633 = vmatpush.msra.mxu0 0.0
        %634 = vmatpush.msra.mxu0 0.0
        %635 = vmatpush.msra.mxu0 0.0
        %636 = vmatpush.msra.mxu0 0.0
        %637 = vmatpush.msra.mxu0 0.0
        %v638 = vand.u32 %v260, 4294901760
        %639 = vmatpush.msra.mxu0 %v638
        %v640 = vand.u32 %v229, 4294901760
        %641 = vmatpush.msra.mxu0 %v640
        %v642 = vand.u32 %v251, 4294901760
        %643 = vmatmul.f32.gmra.mxu0 %v642
        %v644 = vpop.f32.mrf.mxu0
        %v645 = vadd.f32 %v618, %v644
        %v646 = vand.u32 %v253, 4294901760
        %647 = vmatmul.f32.gmra.mxu0 %v646
        %v648 = vpop.f32.mrf.mxu0
        %v649 = vadd.f32 %v622, %v648
        %650 = vdwg.mxu0
        %651 = vmatpush.msra.mxu0 0.0
        %652 = vmatpush.msra.mxu0 0.0
        %653 = vmatpush.msra.mxu0 0.0
        %654 = vmatpush.msra.mxu0 0.0
        %655 = vmatpush.msra.mxu0 0.0
        %656 = vmatpush.msra.mxu0 0.0
        %657 = vmatpush.msra.mxu0 0.0
        %658 = vmatpush.msra.mxu0 0.0
        %659 = vmatpush.msra.mxu0 0.0
        %660 = vmatpush.msra.mxu0 0.0
        %661 = vmatpush.msra.mxu0 0.0
        %662 = vmatpush.msra.mxu0 0.0
        %663 = vmatpush.msra.mxu0 0.0
        %664 = vmatpush.msra.mxu0 0.0
        %v665 = vand.u32 %v263, 4294901760
        %666 = vmatpush.msra.mxu0 %v665
        %v667 = vand.u32 %v230, 4294901760
        %668 = vmatpush.msra.mxu0 %v667
        %v669 = vand.u32 %v251, 4294901760
        %v670 = vsub.f32 %v251, %v669
        %v671 = vand.u32 %v670, 4294901760
        %v672 = vsub.f32 %v670, %v671
        %v673 = vand.u32 %v672, 4294901760
        %674 = vmatmul.f32.gmra.mxu0 %v673
        %v675 = vpop.f32.mrf.mxu0
        %v676 = vadd.f32 %v240, %v675
        %v677 = vand.u32 %v253, 4294901760
        %v678 = vsub.f32 %v253, %v677
        %v679 = vand.u32 %v678, 4294901760
        %v680 = vsub.f32 %v678, %v679
        %v681 = vand.u32 %v680, 4294901760
        %682 = vmatmul.f32.gmra.mxu0 %v681
        %v683 = vpop.f32.mrf.mxu0
        %v684 = vadd.f32 %v244, %v683
        %685 = vdwg.mxu0
        %686 = vmatpush.msra.mxu0 0.0
        %687 = vmatpush.msra.mxu0 0.0
        %688 = vmatpush.msra.mxu0 0.0
        %689 = vmatpush.msra.mxu0 0.0
        %690 = vmatpush.msra.mxu0 0.0
        %691 = vmatpush.msra.mxu0 0.0
        %692 = vmatpush.msra.mxu0 0.0
        %693 = vmatpush.msra.mxu0 0.0
        %694 = vmatpush.msra.mxu0 0.0
        %695 = vmatpush.msra.mxu0 0.0
        %696 = vmatpush.msra.mxu0 0.0
        %697 = vmatpush.msra.mxu0 0.0
        %698 = vmatpush.msra.mxu0 0.0
        %699 = vmatpush.msra.mxu0 0.0
        %v700 = vand.u32 %v263, 4294901760
        %v701 = vsub.f32 %v263, %v700
        %v702 = vand.u32 %v701, 4294901760
        %v703 = vsub.f32 %v701, %v702
        %v704 = vand.u32 %v703, 4294901760
        %705 = vmatpush.msra.mxu0 %v704
        %v706 = vand.u32 %v230, 4294901760
        %v707 = vsub.f32 %v230, %v706
        %v708 = vand.u32 %v707, 4294901760
        %v709 = vsub.f32 %v707, %v708
        %v710 = vand.u32 %v709, 4294901760
        %711 = vmatpush.msra.mxu0 %v710
        %v712 = vand.u32 %v251, 4294901760
        %713 = vmatmul.f32.gmra.mxu0 %v712
        %v714 = vpop.f32.mrf.mxu0
        %v715 = vadd.f32 %v676, %v714
        %v716 = vand.u32 %v253, 4294901760
        %717 = vmatmul.f32.gmra.mxu0 %v716
        %v718 = vpop.f32.mrf.mxu0
        %v719 = vadd.f32 %v684, %v718
        %720 = vdwg.mxu0
        %721 = vmatpush.msra.mxu0 0.0
        %722 = vmatpush.msra.mxu0 0.0
        %723 = vmatpush.msra.mxu0 0.0
        %724 = vmatpush.msra.mxu0 0.0
        %725 = vmatpush.msra.mxu0 0.0
        %726 = vmatpush.msra.mxu0 0.0
        %727 = vmatpush.msra.mxu0 0.0
        %728 = vmatpush.msra.mxu0 0.0
        %729 = vmatpush.msra.mxu0 0.0
        %730 = vmatpush.msra.mxu0 0.0
        %731 = vmatpush.msra.mxu0 0.0
        %732 = vmatpush.msra.mxu0 0.0
        %733 = vmatpush.msra.mxu0 0.0
        %734 = vmatpush.msra.mxu0 0.0
        %v735 = vand.u32 %v263, 4294901760
        %v736 = vsub.f32 %v263, %v735
        %737 = vmatpush.msra.mxu0 %v736
        %v738 = vand.u32 %v230, 4294901760
        %v739 = vsub.f32 %v230, %v738
        %740 = vmatpush.msra.mxu0 %v739
        %v741 = vand.u32 %v251, 4294901760
        %v742 = vsub.f32 %v251, %v741
        %743 = vmatmul.f32.gmra.mxu0 %v742
        %v744 = vpop.f32.mrf.mxu0
        %v745 = vadd.f32 %v715, %v744
        %v746 = vand.u32 %v253, 4294901760
        %v747 = vsub.f32 %v253, %v746
        %748 = vmatmul.f32.gmra.mxu0 %v747
        %v749 = vpop.f32.mrf.mxu0
        %v750 = vadd.f32 %v719, %v749
        %751 = vdwg.mxu0
        %752 = vmatpush.msra.mxu0 0.0
        %753 = vmatpush.msra.mxu0 0.0
        %754 = vmatpush.msra.mxu0 0.0
        %755 = vmatpush.msra.mxu0 0.0
        %756 = vmatpush.msra.mxu0 0.0
        %757 = vmatpush.msra.mxu0 0.0
        %758 = vmatpush.msra.mxu0 0.0
        %759 = vmatpush.msra.mxu0 0.0
        %760 = vmatpush.msra.mxu0 0.0
        %761 = vmatpush.msra.mxu0 0.0
        %762 = vmatpush.msra.mxu0 0.0
        %763 = vmatpush.msra.mxu0 0.0
        %764 = vmatpush.msra.mxu0 0.0
        %765 = vmatpush.msra.mxu0 0.0
        %v766 = vand.u32 %v263, 4294901760
        %767 = vmatpush.msra.mxu0 %v766
        %v768 = vand.u32 %v230, 4294901760
        %769 = vmatpush.msra.mxu0 %v768
        %v770 = vand.u32 %v251, 4294901760
        %v771 = vsub.f32 %v251, %v770
        %v772 = vand.u32 %v771, 4294901760
        %773 = vmatmul.f32.gmra.mxu0 %v772
        %v774 = vpop.f32.mrf.mxu0
        %v775 = vadd.f32 %v745, %v774
        %v776 = vand.u32 %v253, 4294901760
        %v777 = vsub.f32 %v253, %v776
        %v778 = vand.u32 %v777, 4294901760
        %779 = vmatmul.f32.gmra.mxu0 %v778
        %v780 = vpop.f32.mrf.mxu0
        %v781 = vadd.f32 %v750, %v780
        %782 = vdwg.mxu0
        %783 = vmatpush.msra.mxu0 0.0
        %784 = vmatpush.msra.mxu0 0.0
        %785 = vmatpush.msra.mxu0 0.0
        %786 = vmatpush.msra.mxu0 0.0
        %787 = vmatpush.msra.mxu0 0.0
        %788 = vmatpush.msra.mxu0 0.0
        %789 = vmatpush.msra.mxu0 0.0
        %790 = vmatpush.msra.mxu0 0.0
        %791 = vmatpush.msra.mxu0 0.0
        %792 = vmatpush.msra.mxu0 0.0
        %793 = vmatpush.msra.mxu0 0.0
        %794 = vmatpush.msra.mxu0 0.0
        %795 = vmatpush.msra.mxu0 0.0
        %796 = vmatpush.msra.mxu0 0.0
        %v797 = vand.u32 %v263, 4294901760
        %v798 = vsub.f32 %v263, %v797
        %v799 = vand.u32 %v798, 4294901760
        %800 = vmatpush.msra.mxu0 %v799
        %v801 = vand.u32 %v230, 4294901760
        %v802 = vsub.f32 %v230, %v801
        %v803 = vand.u32 %v802, 4294901760
        %804 = vmatpush.msra.mxu0 %v803
        %v805 = vand.u32 %v251, 4294901760
        %806 = vmatmul.f32.gmra.mxu0 %v805
        %v807 = vpop.f32.mrf.mxu0
        %v808 = vadd.f32 %v775, %v807
        %v809 = vand.u32 %v253, 4294901760
        %810 = vmatmul.f32.gmra.mxu0 %v809
        %v811 = vpop.f32.mrf.mxu0
        %v812 = vadd.f32 %v781, %v811
        %813 = vdwg.mxu0
        %814 = vmatpush.msra.mxu0 0.0
        %815 = vmatpush.msra.mxu0 0.0
        %816 = vmatpush.msra.mxu0 0.0
        %817 = vmatpush.msra.mxu0 0.0
        %818 = vmatpush.msra.mxu0 0.0
        %819 = vmatpush.msra.mxu0 0.0
        %820 = vmatpush.msra.mxu0 0.0
        %821 = vmatpush.msra.mxu0 0.0
        %822 = vmatpush.msra.mxu0 0.0
        %823 = vmatpush.msra.mxu0 0.0
        %824 = vmatpush.msra.mxu0 0.0
        %825 = vmatpush.msra.mxu0 0.0
        %826 = vmatpush.msra.mxu0 0.0
        %827 = vmatpush.msra.mxu0 0.0
        %v828 = vand.u32 %v263, 4294901760
        %829 = vmatpush.msra.mxu0 %v828
        %v830 = vand.u32 %v230, 4294901760
        %831 = vmatpush.msra.mxu0 %v830
        %v832 = vand.u32 %v251, 4294901760
        %833 = vmatmul.f32.gmra.mxu0 %v832
        %v834 = vpop.f32.mrf.mxu0
        %v835 = vadd.f32 %v808, %v834
        %v836 = vand.u32 %v253, 4294901760
        %837 = vmatmul.f32.gmra.mxu0 %v836
        %v838 = vpop.f32.mrf.mxu0
        %v839 = vadd.f32 %v812, %v838
        %840 = vdwg.mxu0
        %841 = vmatpush.msra.mxu0 0.0
        %842 = vmatpush.msra.mxu0 0.0
        %843 = vmatpush.msra.mxu0 0.0
        %844 = vmatpush.msra.mxu0 0.0
        %845 = vmatpush.msra.mxu0 0.0
        %846 = vmatpush.msra.mxu0 0.0
        %847 = vmatpush.msra.mxu0 0.0
        %848 = vmatpush.msra.mxu0 0.0
        %849 = vmatpush.msra.mxu0 0.0
        %850 = vmatpush.msra.mxu0 0.0
        %851 = vmatpush.msra.mxu0 0.0
        %852 = vmatpush.msra.mxu0 0.0
        %853 = vmatpush.msra.mxu0 0.0
        %854 = vmatpush.msra.mxu0 0.0
        %v855 = vand.u32 %v266, 4294901760
        %856 = vmatpush.msra.mxu0 %v855
        %v857 = vand.u32 %v231, 4294901760
        %858 = vmatpush.msra.mxu0 %v857
        %v859 = vand.u32 %v251, 4294901760
        %v860 = vsub.f32 %v251, %v859
        %v861 = vand.u32 %v860, 4294901760
        %v862 = vsub.f32 %v860, %v861
        %v863 = vand.u32 %v862, 4294901760
        %864 = vmatmul.f32.gmra.mxu0 %v863
        %v865 = vpop.f32.mrf.mxu0
        %v866 = vadd.f32 %v240, %v865
        %v867 = vand.u32 %v253, 4294901760
        %v868 = vsub.f32 %v253, %v867
        %v869 = vand.u32 %v868, 4294901760
        %v870 = vsub.f32 %v868, %v869
        %v871 = vand.u32 %v870, 4294901760
        %872 = vmatmul.f32.gmra.mxu0 %v871
        %v873 = vpop.f32.mrf.mxu0
        %v874 = vadd.f32 %v244, %v873
        %875 = vdwg.mxu0
        %876 = vmatpush.msra.mxu0 0.0
        %877 = vmatpush.msra.mxu0 0.0
        %878 = vmatpush.msra.mxu0 0.0
        %879 = vmatpush.msra.mxu0 0.0
        %880 = vmatpush.msra.mxu0 0.0
        %881 = vmatpush.msra.mxu0 0.0
        %882 = vmatpush.msra.mxu0 0.0
        %883 = vmatpush.msra.mxu0 0.0
        %884 = vmatpush.msra.mxu0 0.0
        %885 = vmatpush.msra.mxu0 0.0
        %886 = vmatpush.msra.mxu0 0.0
        %887 = vmatpush.msra.mxu0 0.0
        %888 = vmatpush.msra.mxu0 0.0
        %889 = vmatpush.msra.mxu0 0.0
        %v890 = vand.u32 %v266, 4294901760
        %v891 = vsub.f32 %v266, %v890
        %v892 = vand.u32 %v891, 4294901760
        %v893 = vsub.f32 %v891, %v892
        %v894 = vand.u32 %v893, 4294901760
        %895 = vmatpush.msra.mxu0 %v894
        %v896 = vand.u32 %v231, 4294901760
        %v897 = vsub.f32 %v231, %v896
        %v898 = vand.u32 %v897, 4294901760
        %v899 = vsub.f32 %v897, %v898
        %v900 = vand.u32 %v899, 4294901760
        %901 = vmatpush.msra.mxu0 %v900
        %v902 = vand.u32 %v251, 4294901760
        %903 = vmatmul.f32.gmra.mxu0 %v902
        %v904 = vpop.f32.mrf.mxu0
        %v905 = vadd.f32 %v866, %v904
        %v906 = vand.u32 %v253, 4294901760
        %907 = vmatmul.f32.gmra.mxu0 %v906
        %v908 = vpop.f32.mrf.mxu0
        %v909 = vadd.f32 %v874, %v908
        %910 = vdwg.mxu0
        %911 = vmatpush.msra.mxu0 0.0
        %912 = vmatpush.msra.mxu0 0.0
        %913 = vmatpush.msra.mxu0 0.0
        %914 = vmatpush.msra.mxu0 0.0
        %915 = vmatpush.msra.mxu0 0.0
        %916 = vmatpush.msra.mxu0 0.0
        %917 = vmatpush.msra.mxu0 0.0
        %918 = vmatpush.msra.mxu0 0.0
        %919 = vmatpush.msra.mxu0 0.0
        %920 = vmatpush.msra.mxu0 0.0
        %921 = vmatpush.msra.mxu0 0.0
        %922 = vmatpush.msra.mxu0 0.0
        %923 = vmatpush.msra.mxu0 0.0
        %924 = vmatpush.msra.mxu0 0.0
        %v925 = vand.u32 %v266, 4294901760
        %v926 = vsub.f32 %v266, %v925
        %927 = vmatpush.msra.mxu0 %v926
        %v928 = vand.u32 %v231, 4294901760
        %v929 = vsub.f32 %v231, %v928
        %930 = vmatpush.msra.mxu0 %v929
        %v931 = vand.u32 %v251, 4294901760
        %v932 = vsub.f32 %v251, %v931
        %933 = vmatmul.f32.gmra.mxu0 %v932
        %v934 = vpop.f32.mrf.mxu0
        %v935 = vadd.f32 %v905, %v934
        %v936 = vand.u32 %v253, 4294901760
        %v937 = vsub.f32 %v253, %v936
        %938 = vmatmul.f32.gmra.mxu0 %v937
        %v939 = vpop.f32.mrf.mxu0
        %v940 = vadd.f32 %v909, %v939
        %941 = vdwg.mxu0
        %942 = vmatpush.msra.mxu0 0.0
        %943 = vmatpush.msra.mxu0 0.0
        %944 = vmatpush.msra.mxu0 0.0
        %945 = vmatpush.msra.mxu0 0.0
        %946 = vmatpush.msra.mxu0 0.0
        %947 = vmatpush.msra.mxu0 0.0
        %948 = vmatpush.msra.mxu0 0.0
        %949 = vmatpush.msra.mxu0 0.0
        %950 = vmatpush.msra.mxu0 0.0
        %951 = vmatpush.msra.mxu0 0.0
        %952 = vmatpush.msra.mxu0 0.0
        %953 = vmatpush.msra.mxu0 0.0
        %954 = vmatpush.msra.mxu0 0.0
        %955 = vmatpush.msra.mxu0 0.0
        %v956 = vand.u32 %v266, 4294901760
        %957 = vmatpush.msra.mxu0 %v956
        %v958 = vand.u32 %v231, 4294901760
        %959 = vmatpush.msra.mxu0 %v958
        %v960 = vand.u32 %v251, 4294901760
        %v961 = vsub.f32 %v251, %v960
        %v962 = vand.u32 %v961, 4294901760
        %963 = vmatmul.f32.gmra.mxu0 %v962
        %v964 = vpop.f32.mrf.mxu0
        %v965 = vadd.f32 %v935, %v964
        %v966 = vand.u32 %v253, 4294901760
        %v967 = vsub.f32 %v253, %v966
        %v968 = vand.u32 %v967, 4294901760
        %969 = vmatmul.f32.gmra.mxu0 %v968
        %v970 = vpop.f32.mrf.mxu0
        %v971 = vadd.f32 %v940, %v970
        %972 = vdwg.mxu0
        %973 = vmatpush.msra.mxu0 0.0
        %974 = vmatpush.msra.mxu0 0.0
        %975 = vmatpush.msra.mxu0 0.0
        %976 = vmatpush.msra.mxu0 0.0
        %977 = vmatpush.msra.mxu0 0.0
        %978 = vmatpush.msra.mxu0 0.0
        %979 = vmatpush.msra.mxu0 0.0
        %980 = vmatpush.msra.mxu0 0.0
        %981 = vmatpush.msra.mxu0 0.0
        %982 = vmatpush.msra.mxu0 0.0
        %983 = vmatpush.msra.mxu0 0.0
        %984 = vmatpush.msra.mxu0 0.0
        %985 = vmatpush.msra.mxu0 0.0
        %986 = vmatpush.msra.mxu0 0.0
        %v987 = vand.u32 %v266, 4294901760
        %v988 = vsub.f32 %v266, %v987
        %v989 = vand.u32 %v988, 4294901760
        %990 = vmatpush.msra.mxu0 %v989
        %v991 = vand.u32 %v231, 4294901760
        %v992 = vsub.f32 %v231, %v991
        %v993 = vand.u32 %v992, 4294901760
        %994 = vmatpush.msra.mxu0 %v993
        %v995 = vand.u32 %v251, 4294901760
        %996 = vmatmul.f32.gmra.mxu0 %v995
        %v997 = vpop.f32.mrf.mxu0
        %v998 = vadd.f32 %v965, %v997
        %v999 = vand.u32 %v253, 4294901760
        %1000 = vmatmul.f32.gmra.mxu0 %v999
        %v1001 = vpop.f32.mrf.mxu0
        %v1002 = vadd.f32 %v971, %v1001
        %1003 = vdwg.mxu0
        %1004 = vmatpush.msra.mxu0 0.0
        %1005 = vmatpush.msra.mxu0 0.0
        %1006 = vmatpush.msra.mxu0 0.0
        %1007 = vmatpush.msra.mxu0 0.0
        %1008 = vmatpush.msra.mxu0 0.0
        %1009 = vmatpush.msra.mxu0 0.0
        %1010 = vmatpush.msra.mxu0 0.0
        %1011 = vmatpush.msra.mxu0 0.0
        %1012 = vmatpush.msra.mxu0 0.0
        %1013 = vmatpush.msra.mxu0 0.0
        %1014 = vmatpush.msra.mxu0 0.0
        %1015 = vmatpush.msra.mxu0 0.0
        %1016 = vmatpush.msra.mxu0 0.0
        %1017 = vmatpush.msra.mxu0 0.0
        %v1018 = vand.u32 %v266, 4294901760
        %1019 = vmatpush.msra.mxu0 %v1018
        %v1020 = vand.u32 %v231, 4294901760
        %1021 = vmatpush.msra.mxu0 %v1020
        %v1022 = vand.u32 %v251, 4294901760
        %1023 = vmatmul.f32.gmra.mxu0 %v1022
        %v1024 = vpop.f32.mrf.mxu0
        %v1025 = vadd.f32 %v998, %v1024
        %v1026 = vand.u32 %v253, 4294901760
        %1027 = vmatmul.f32.gmra.mxu0 %v1026
        %v1028 = vpop.f32.mrf.mxu0
        %v1029 = vadd.f32 %v1002, %v1028
        %1030 = vdwg.mxu0
        %1031 = vmatpush.msra.mxu0 0.0
        %1032 = vmatpush.msra.mxu0 0.0
        %1033 = vmatpush.msra.mxu0 0.0
        %1034 = vmatpush.msra.mxu0 0.0
        %1035 = vmatpush.msra.mxu0 0.0
        %1036 = vmatpush.msra.mxu0 0.0
        %1037 = vmatpush.msra.mxu0 0.0
        %1038 = vmatpush.msra.mxu0 0.0
        %1039 = vmatpush.msra.mxu0 0.0
        %1040 = vmatpush.msra.mxu0 0.0
        %1041 = vmatpush.msra.mxu0 0.0
        %1042 = vmatpush.msra.mxu0 0.0
        %1043 = vmatpush.msra.mxu0 0.0
        %1044 = vmatpush.msra.mxu0 0.0
        %v1045 = vand.u32 %v269, 4294901760
        %1046 = vmatpush.msra.mxu0 %v1045
        %v1047 = vand.u32 %v232, 4294901760
        %1048 = vmatpush.msra.mxu0 %v1047
        %v1049 = vand.u32 %v251, 4294901760
        %v1050 = vsub.f32 %v251, %v1049
        %v1051 = vand.u32 %v1050, 4294901760
        %v1052 = vsub.f32 %v1050, %v1051
        %v1053 = vand.u32 %v1052, 4294901760
        %1054 = vmatmul.f32.gmra.mxu0 %v1053
        %v1055 = vpop.f32.mrf.mxu0
        %v1056 = vadd.f32 %v240, %v1055
        %v1057 = vand.u32 %v253, 4294901760
        %v1058 = vsub.f32 %v253, %v1057
        %v1059 = vand.u32 %v1058, 4294901760
        %v1060 = vsub.f32 %v1058, %v1059
        %v1061 = vand.u32 %v1060, 4294901760
        %1062 = vmatmul.f32.gmra.mxu0 %v1061
        %v1063 = vpop.f32.mrf.mxu0
        %v1064 = vadd.f32 %v244, %v1063
        %1065 = vdwg.mxu0
        %1066 = vmatpush.msra.mxu0 0.0
        %1067 = vmatpush.msra.mxu0 0.0
        %1068 = vmatpush.msra.mxu0 0.0
        %1069 = vmatpush.msra.mxu0 0.0
        %1070 = vmatpush.msra.mxu0 0.0
        %1071 = vmatpush.msra.mxu0 0.0
        %1072 = vmatpush.msra.mxu0 0.0
        %1073 = vmatpush.msra.mxu0 0.0
        %1074 = vmatpush.msra.mxu0 0.0
        %1075 = vmatpush.msra.mxu0 0.0
        %1076 = vmatpush.msra.mxu0 0.0
        %1077 = vmatpush.msra.mxu0 0.0
        %1078 = vmatpush.msra.mxu0 0.0
        %1079 = vmatpush.msra.mxu0 0.0
        %v1080 = vand.u32 %v269, 4294901760
        %v1081 = vsub.f32 %v269, %v1080
        %v1082 = vand.u32 %v1081, 4294901760
        %v1083 = vsub.f32 %v1081, %v1082
        %v1084 = vand.u32 %v1083, 4294901760
        %1085 = vmatpush.msra.mxu0 %v1084
        %v1086 = vand.u32 %v232, 4294901760
        %v1087 = vsub.f32 %v232, %v1086
        %v1088 = vand.u32 %v1087, 4294901760
        %v1089 = vsub.f32 %v1087, %v1088
        %v1090 = vand.u32 %v1089, 4294901760
        %1091 = vmatpush.msra.mxu0 %v1090
        %v1092 = vand.u32 %v251, 4294901760
        %1093 = vmatmul.f32.gmra.mxu0 %v1092
        %v1094 = vpop.f32.mrf.mxu0
        %v1095 = vadd.f32 %v1056, %v1094
        %v1096 = vand.u32 %v253, 4294901760
        %1097 = vmatmul.f32.gmra.mxu0 %v1096
        %v1098 = vpop.f32.mrf.mxu0
        %v1099 = vadd.f32 %v1064, %v1098
        %1100 = vdwg.mxu0
        %1101 = vmatpush.msra.mxu0 0.0
        %1102 = vmatpush.msra.mxu0 0.0
        %1103 = vmatpush.msra.mxu0 0.0
        %1104 = vmatpush.msra.mxu0 0.0
        %1105 = vmatpush.msra.mxu0 0.0
        %1106 = vmatpush.msra.mxu0 0.0
        %1107 = vmatpush.msra.mxu0 0.0
        %1108 = vmatpush.msra.mxu0 0.0
        %1109 = vmatpush.msra.mxu0 0.0
        %1110 = vmatpush.msra.mxu0 0.0
        %1111 = vmatpush.msra.mxu0 0.0
        %1112 = vmatpush.msra.mxu0 0.0
        %1113 = vmatpush.msra.mxu0 0.0
        %1114 = vmatpush.msra.mxu0 0.0
        %v1115 = vand.u32 %v269, 4294901760
        %v1116 = vsub.f32 %v269, %v1115
        %1117 = vmatpush.msra.mxu0 %v1116
        %v1118 = vand.u32 %v232, 4294901760
        %v1119 = vsub.f32 %v232, %v1118
        %1120 = vmatpush.msra.mxu0 %v1119
        %v1121 = vand.u32 %v251, 4294901760
        %v1122 = vsub.f32 %v251, %v1121
        %1123 = vmatmul.f32.gmra.mxu0 %v1122
        %v1124 = vpop.f32.mrf.mxu0
        %v1125 = vadd.f32 %v1095, %v1124
        %v1126 = vand.u32 %v253, 4294901760
        %v1127 = vsub.f32 %v253, %v1126
        %1128 = vmatmul.f32.gmra.mxu0 %v1127
        %v1129 = vpop.f32.mrf.mxu0
        %v1130 = vadd.f32 %v1099, %v1129
        %1131 = vdwg.mxu0
        %1132 = vmatpush.msra.mxu0 0.0
        %1133 = vmatpush.msra.mxu0 0.0
        %1134 = vmatpush.msra.mxu0 0.0
        %1135 = vmatpush.msra.mxu0 0.0
        %1136 = vmatpush.msra.mxu0 0.0
        %1137 = vmatpush.msra.mxu0 0.0
        %1138 = vmatpush.msra.mxu0 0.0
        %1139 = vmatpush.msra.mxu0 0.0
        %1140 = vmatpush.msra.mxu0 0.0
        %1141 = vmatpush.msra.mxu0 0.0
        %1142 = vmatpush.msra.mxu0 0.0
        %1143 = vmatpush.msra.mxu0 0.0
        %1144 = vmatpush.msra.mxu0 0.0
        %1145 = vmatpush.msra.mxu0 0.0
        %v1146 = vand.u32 %v269, 4294901760
        %1147 = vmatpush.msra.mxu0 %v1146
        %v1148 = vand.u32 %v232, 4294901760
        %1149 = vmatpush.msra.mxu0 %v1148
        %v1150 = vand.u32 %v251, 4294901760
        %v1151 = vsub.f32 %v251, %v1150
        %v1152 = vand.u32 %v1151, 4294901760
        %1153 = vmatmul.f32.gmra.mxu0 %v1152
        %v1154 = vpop.f32.mrf.mxu0
        %v1155 = vadd.f32 %v1125, %v1154
        %v1156 = vand.u32 %v253, 4294901760
        %v1157 = vsub.f32 %v253, %v1156
        %v1158 = vand.u32 %v1157, 4294901760
        %1159 = vmatmul.f32.gmra.mxu0 %v1158
        %v1160 = vpop.f32.mrf.mxu0
        %v1161 = vadd.f32 %v1130, %v1160
        %1162 = vdwg.mxu0
        %1163 = vmatpush.msra.mxu0 0.0
        %1164 = vmatpush.msra.mxu0 0.0
        %1165 = vmatpush.msra.mxu0 0.0
        %1166 = vmatpush.msra.mxu0 0.0
        %1167 = vmatpush.msra.mxu0 0.0
        %1168 = vmatpush.msra.mxu0 0.0
        %1169 = vmatpush.msra.mxu0 0.0
        %1170 = vmatpush.msra.mxu0 0.0
        %1171 = vmatpush.msra.mxu0 0.0
        %1172 = vmatpush.msra.mxu0 0.0
        %1173 = vmatpush.msra.mxu0 0.0
        %1174 = vmatpush.msra.mxu0 0.0
        %1175 = vmatpush.msra.mxu0 0.0
        %1176 = vmatpush.msra.mxu0 0.0
        %v1177 = vand.u32 %v269, 4294901760
        %v1178 = vsub.f32 %v269, %v1177
        %v1179 = vand.u32 %v1178, 4294901760
        %1180 = vmatpush.msra.mxu0 %v1179
        %v1181 = vand.u32 %v232, 4294901760
        %v1182 = vsub.f32 %v232, %v1181
        %v1183 = vand.u32 %v1182, 4294901760
        %1184 = vmatpush.msra.mxu0 %v1183
        %v1185 = vand.u32 %v251, 4294901760
        %1186 = vmatmul.f32.gmra.mxu0 %v1185
        %v1187 = vpop.f32.mrf.mxu0
        %v1188 = vadd.f32 %v1155, %v1187
        %v1189 = vand.u32 %v253, 4294901760
        %1190 = vmatmul.f32.gmra.mxu0 %v1189
        %v1191 = vpop.f32.mrf.mxu0
        %v1192 = vadd.f32 %v1161, %v1191
        %1193 = vdwg.mxu0
        %1194 = vmatpush.msra.mxu0 0.0
        %1195 = vmatpush.msra.mxu0 0.0
        %1196 = vmatpush.msra.mxu0 0.0
        %1197 = vmatpush.msra.mxu0 0.0
        %1198 = vmatpush.msra.mxu0 0.0
        %1199 = vmatpush.msra.mxu0 0.0
        %1200 = vmatpush.msra.mxu0 0.0
        %1201 = vmatpush.msra.mxu0 0.0
        %1202 = vmatpush.msra.mxu0 0.0
        %1203 = vmatpush.msra.mxu0 0.0
        %1204 = vmatpush.msra.mxu0 0.0
        %1205 = vmatpush.msra.mxu0 0.0
        %1206 = vmatpush.msra.mxu0 0.0
        %1207 = vmatpush.msra.mxu0 0.0
        %v1208 = vand.u32 %v269, 4294901760
        %1209 = vmatpush.msra.mxu0 %v1208
        %v1210 = vand.u32 %v232, 4294901760
        %1211 = vmatpush.msra.mxu0 %v1210
        %v1212 = vand.u32 %v251, 4294901760
        %1213 = vmatmul.f32.gmra.mxu0 %v1212
        %v1214 = vpop.f32.mrf.mxu0
        %v1215 = vadd.f32 %v1188, %v1214
        %v1216 = vand.u32 %v253, 4294901760
        %1217 = vmatmul.f32.gmra.mxu0 %v1216
        %v1218 = vpop.f32.mrf.mxu0
        %v1219 = vadd.f32 %v1192, %v1218
        %1220 = vdwg.mxu0
        %v1221 = vmax.f32 %v455, 0.0
        %v1222 = vmax.f32 %v645, 0.0
        %v1223 = vmax.f32 %v835, 0.0
        %v1224 = vmax.f32 %v1025, 0.0
        %v1225 = vmax.f32 %v1215, 0.0
        %v1226 = vmax.f32 %v459, 0.0
        %v1227 = vmax.f32 %v649, 0.0
        %v1228 = vmax.f32 %v839, 0.0
        %v1229 = vmax.f32 %v1029, 0.0
        %v1230 = vmax.f32 %v1219, 0.0
        %1231 = vset.pattern.permute.xlu0 33
        %1232 = vperm.xlu0 %1231, %v177
        %v1233 = vpop.permute.xlu0 %1232
        %1235 = vset.pattern.permute.xlu0 33
        %1236 = vperm.xlu0 %1235, %v178
        %v1237 = vpop.permute.xlu0 %1236
        %1239 = vrot.lane.b32.xlu0 %v177, 110
        %v1240 = vpop.permute.xlu0 %1239
        %1241 = vrot.lane.b32.xlu0 %v178, 110
        %v1242 = vpop.permute.xlu0 %1241
        %v1243 = vsel %vm250, %v1240, 0
        %v1245 = vsel %vm250, %v1242, 0
        %v1248 = vsel %vm255, %v1226, 0
        %v1251 = vsel %vm255, %v1227, 0
        %v1254 = vsel %vm255, %v1228, 0
        %v1257 = vsel %vm255, %v1229, 0
        %v1260 = vsel %vm255, %v1230, 0
        %1262 = vmatpush.msra.mxu0 0.0
        %1263 = vmatpush.msra.mxu0 0.0
        %1264 = vmatpush.msra.mxu0 0.0
        %1265 = vmatpush.msra.mxu0 0.0
        %1266 = vmatpush.msra.mxu0 0.0
        %1267 = vmatpush.msra.mxu0 0.0
        %1268 = vmatpush.msra.mxu0 0.0
        %1269 = vmatpush.msra.mxu0 0.0
        %1270 = vmatpush.msra.mxu0 0.0
        %1271 = vmatpush.msra.mxu0 0.0
        %1272 = vmatpush.msra.mxu0 0.0
        %1273 = vmatpush.msra.mxu0 0.0
        %1274 = vmatpush.msra.mxu0 0.0
        %1275 = vmatpush.msra.mxu0 0.0
        %v1276 = vand.u32 %v1248, 4294901760
        %1277 = vmatpush.msra.mxu0 %v1276
        %v1278 = vand.u32 %v1221, 4294901760
        %1279 = vmatpush.msra.mxu0 %v1278
        %v1280 = vand.u32 %v1243, 4294901760
        %v1281 = vsub.f32 %v1243, %v1280
        %v1282 = vand.u32 %v1281, 4294901760
        %v1283 = vsub.f32 %v1281, %v1282
        %v1284 = vand.u32 %v1283, 4294901760
        %1285 = vmatmul.f32.gmra.mxu0 %v1284
        %v1286 = vpop.f32.mrf.mxu0
        %v1287 = vadd.f32 %v1233, %v1286
        %v1288 = vand.u32 %v1245, 4294901760
        %v1289 = vsub.f32 %v1245, %v1288
        %v1290 = vand.u32 %v1289, 4294901760
        %v1291 = vsub.f32 %v1289, %v1290
        %v1292 = vand.u32 %v1291, 4294901760
        %1293 = vmatmul.f32.gmra.mxu0 %v1292
        %v1294 = vpop.f32.mrf.mxu0
        %v1295 = vadd.f32 %v1237, %v1294
        %1296 = vdwg.mxu0
        %1297 = vmatpush.msra.mxu0 0.0
        %1298 = vmatpush.msra.mxu0 0.0
        %1299 = vmatpush.msra.mxu0 0.0
        %1300 = vmatpush.msra.mxu0 0.0
        %1301 = vmatpush.msra.mxu0 0.0
        %1302 = vmatpush.msra.mxu0 0.0
        %1303 = vmatpush.msra.mxu0 0.0
        %1304 = vmatpush.msra.mxu0 0.0
        %1305 = vmatpush.msra.mxu0 0.0
        %1306 = vmatpush.msra.mxu0 0.0
        %1307 = vmatpush.msra.mxu0 0.0
        %1308 = vmatpush.msra.mxu0 0.0
        %1309 = vmatpush.msra.mxu0 0.0
        %1310 = vmatpush.msra.mxu0 0.0
        %v1311 = vand.u32 %v1248, 4294901760
        %v1312 = vsub.f32 %v1248, %v1311
        %v1313 = vand.u32 %v1312, 4294901760
        %v1314 = vsub.f32 %v1312, %v1313
        %v1315 = vand.u32 %v1314, 4294901760
        %1316 = vmatpush.msra.mxu0 %v1315
        %v1317 = vand.u32 %v1221, 4294901760
        %v1318 = vsub.f32 %v1221, %v1317
        %v1319 = vand.u32 %v1318, 4294901760
        %v1320 = vsub.f32 %v1318, %v1319
        %v1321 = vand.u32 %v1320, 4294901760
        %1322 = vmatpush.msra.mxu0 %v1321
        %v1323 = vand.u32 %v1243, 4294901760
        %1324 = vmatmul.f32.gmra.mxu0 %v1323
        %v1325 = vpop.f32.mrf.mxu0
        %v1326 = vadd.f32 %v1287, %v1325
        %v1327 = vand.u32 %v1245, 4294901760
        %1328 = vmatmul.f32.gmra.mxu0 %v1327
        %v1329 = vpop.f32.mrf.mxu0
        %v1330 = vadd.f32 %v1295, %v1329
        %1331 = vdwg.mxu0
        %1332 = vmatpush.msra.mxu0 0.0
        %1333 = vmatpush.msra.mxu0 0.0
        %1334 = vmatpush.msra.mxu0 0.0
        %1335 = vmatpush.msra.mxu0 0.0
        %1336 = vmatpush.msra.mxu0 0.0
        %1337 = vmatpush.msra.mxu0 0.0
        %1338 = vmatpush.msra.mxu0 0.0
        %1339 = vmatpush.msra.mxu0 0.0
        %1340 = vmatpush.msra.mxu0 0.0
        %1341 = vmatpush.msra.mxu0 0.0
        %1342 = vmatpush.msra.mxu0 0.0
        %1343 = vmatpush.msra.mxu0 0.0
        %1344 = vmatpush.msra.mxu0 0.0
        %1345 = vmatpush.msra.mxu0 0.0
        %v1346 = vand.u32 %v1248, 4294901760
        %v1347 = vsub.f32 %v1248, %v1346
        %1348 = vmatpush.msra.mxu0 %v1347
        %v1349 = vand.u32 %v1221, 4294901760
        %v1350 = vsub.f32 %v1221, %v1349
        %1351 = vmatpush.msra.mxu0 %v1350
        %v1352 = vand.u32 %v1243, 4294901760
        %v1353 = vsub.f32 %v1243, %v1352
        %1354 = vmatmul.f32.gmra.mxu0 %v1353
        %v1355 = vpop.f32.mrf.mxu0
        %v1356 = vadd.f32 %v1326, %v1355
        %v1357 = vand.u32 %v1245, 4294901760
        %v1358 = vsub.f32 %v1245, %v1357
        %1359 = vmatmul.f32.gmra.mxu0 %v1358
        %v1360 = vpop.f32.mrf.mxu0
        %v1361 = vadd.f32 %v1330, %v1360
        %1362 = vdwg.mxu0
        %1363 = vmatpush.msra.mxu0 0.0
        %1364 = vmatpush.msra.mxu0 0.0
        %1365 = vmatpush.msra.mxu0 0.0
        %1366 = vmatpush.msra.mxu0 0.0
        %1367 = vmatpush.msra.mxu0 0.0
        %1368 = vmatpush.msra.mxu0 0.0
        %1369 = vmatpush.msra.mxu0 0.0
        %1370 = vmatpush.msra.mxu0 0.0
        %1371 = vmatpush.msra.mxu0 0.0
        %1372 = vmatpush.msra.mxu0 0.0
        %1373 = vmatpush.msra.mxu0 0.0
        %1374 = vmatpush.msra.mxu0 0.0
        %1375 = vmatpush.msra.mxu0 0.0
        %1376 = vmatpush.msra.mxu0 0.0
        %v1377 = vand.u32 %v1248, 4294901760
        %1378 = vmatpush.msra.mxu0 %v1377
        %v1379 = vand.u32 %v1221, 4294901760
        %1380 = vmatpush.msra.mxu0 %v1379
        %v1381 = vand.u32 %v1243, 4294901760
        %v1382 = vsub.f32 %v1243, %v1381
        %v1383 = vand.u32 %v1382, 4294901760
        %1384 = vmatmul.f32.gmra.mxu0 %v1383
        %v1385 = vpop.f32.mrf.mxu0
        %v1386 = vadd.f32 %v1356, %v1385
        %v1387 = vand.u32 %v1245, 4294901760
        %v1388 = vsub.f32 %v1245, %v1387
        %v1389 = vand.u32 %v1388, 4294901760
        %1390 = vmatmul.f32.gmra.mxu0 %v1389
        %v1391 = vpop.f32.mrf.mxu0
        %v1392 = vadd.f32 %v1361, %v1391
        %1393 = vdwg.mxu0
        %1394 = vmatpush.msra.mxu0 0.0
        %1395 = vmatpush.msra.mxu0 0.0
        %1396 = vmatpush.msra.mxu0 0.0
        %1397 = vmatpush.msra.mxu0 0.0
        %1398 = vmatpush.msra.mxu0 0.0
        %1399 = vmatpush.msra.mxu0 0.0
        %1400 = vmatpush.msra.mxu0 0.0
        %1401 = vmatpush.msra.mxu0 0.0
        %1402 = vmatpush.msra.mxu0 0.0
        %1403 = vmatpush.msra.mxu0 0.0
        %1404 = vmatpush.msra.mxu0 0.0
        %1405 = vmatpush.msra.mxu0 0.0
        %1406 = vmatpush.msra.mxu0 0.0
        %1407 = vmatpush.msra.mxu0 0.0
        %v1408 = vand.u32 %v1248, 4294901760
        %v1409 = vsub.f32 %v1248, %v1408
        %v1410 = vand.u32 %v1409, 4294901760
        %1411 = vmatpush.msra.mxu0 %v1410
        %v1412 = vand.u32 %v1221, 4294901760
        %v1413 = vsub.f32 %v1221, %v1412
        %v1414 = vand.u32 %v1413, 4294901760
        %1415 = vmatpush.msra.mxu0 %v1414
        %v1416 = vand.u32 %v1243, 4294901760
        %1417 = vmatmul.f32.gmra.mxu0 %v1416
        %v1418 = vpop.f32.mrf.mxu0
        %v1419 = vadd.f32 %v1386, %v1418
        %v1420 = vand.u32 %v1245, 4294901760
        %1421 = vmatmul.f32.gmra.mxu0 %v1420
        %v1422 = vpop.f32.mrf.mxu0
        %v1423 = vadd.f32 %v1392, %v1422
        %1424 = vdwg.mxu0
        %1425 = vmatpush.msra.mxu0 0.0
        %1426 = vmatpush.msra.mxu0 0.0
        %1427 = vmatpush.msra.mxu0 0.0
        %1428 = vmatpush.msra.mxu0 0.0
        %1429 = vmatpush.msra.mxu0 0.0
        %1430 = vmatpush.msra.mxu0 0.0
        %1431 = vmatpush.msra.mxu0 0.0
        %1432 = vmatpush.msra.mxu0 0.0
        %1433 = vmatpush.msra.mxu0 0.0
        %1434 = vmatpush.msra.mxu0 0.0
        %1435 = vmatpush.msra.mxu0 0.0
        %1436 = vmatpush.msra.mxu0 0.0
        %1437 = vmatpush.msra.mxu0 0.0
        %1438 = vmatpush.msra.mxu0 0.0
        %v1439 = vand.u32 %v1248, 4294901760
        %1440 = vmatpush.msra.mxu0 %v1439
        %v1441 = vand.u32 %v1221, 4294901760
        %1442 = vmatpush.msra.mxu0 %v1441
        %v1443 = vand.u32 %v1243, 4294901760
        %1444 = vmatmul.f32.gmra.mxu0 %v1443
        %v1445 = vpop.f32.mrf.mxu0
        %v1446 = vadd.f32 %v1419, %v1445
        %v1447 = vand.u32 %v1245, 4294901760
        %1448 = vmatmul.f32.gmra.mxu0 %v1447
        %v1449 = vpop.f32.mrf.mxu0
        %v1450 = vadd.f32 %v1423, %v1449
        %1451 = vdwg.mxu0
        %1452 = vmatpush.msra.mxu0 0.0
        %1453 = vmatpush.msra.mxu0 0.0
        %1454 = vmatpush.msra.mxu0 0.0
        %1455 = vmatpush.msra.mxu0 0.0
        %1456 = vmatpush.msra.mxu0 0.0
        %1457 = vmatpush.msra.mxu0 0.0
        %1458 = vmatpush.msra.mxu0 0.0
        %1459 = vmatpush.msra.mxu0 0.0
        %1460 = vmatpush.msra.mxu0 0.0
        %1461 = vmatpush.msra.mxu0 0.0
        %1462 = vmatpush.msra.mxu0 0.0
        %1463 = vmatpush.msra.mxu0 0.0
        %1464 = vmatpush.msra.mxu0 0.0
        %1465 = vmatpush.msra.mxu0 0.0
        %v1466 = vand.u32 %v1251, 4294901760
        %1467 = vmatpush.msra.mxu0 %v1466
        %v1468 = vand.u32 %v1222, 4294901760
        %1469 = vmatpush.msra.mxu0 %v1468
        %v1470 = vand.u32 %v1243, 4294901760
        %v1471 = vsub.f32 %v1243, %v1470
        %v1472 = vand.u32 %v1471, 4294901760
        %v1473 = vsub.f32 %v1471, %v1472
        %v1474 = vand.u32 %v1473, 4294901760
        %1475 = vmatmul.f32.gmra.mxu0 %v1474
        %v1476 = vpop.f32.mrf.mxu0
        %v1477 = vadd.f32 %v1233, %v1476
        %v1478 = vand.u32 %v1245, 4294901760
        %v1479 = vsub.f32 %v1245, %v1478
        %v1480 = vand.u32 %v1479, 4294901760
        %v1481 = vsub.f32 %v1479, %v1480
        %v1482 = vand.u32 %v1481, 4294901760
        %1483 = vmatmul.f32.gmra.mxu0 %v1482
        %v1484 = vpop.f32.mrf.mxu0
        %v1485 = vadd.f32 %v1237, %v1484
        %1486 = vdwg.mxu0
        %1487 = vmatpush.msra.mxu0 0.0
        %1488 = vmatpush.msra.mxu0 0.0
        %1489 = vmatpush.msra.mxu0 0.0
        %1490 = vmatpush.msra.mxu0 0.0
        %1491 = vmatpush.msra.mxu0 0.0
        %1492 = vmatpush.msra.mxu0 0.0
        %1493 = vmatpush.msra.mxu0 0.0
        %1494 = vmatpush.msra.mxu0 0.0
        %1495 = vmatpush.msra.mxu0 0.0
        %1496 = vmatpush.msra.mxu0 0.0
        %1497 = vmatpush.msra.mxu0 0.0
        %1498 = vmatpush.msra.mxu0 0.0
        %1499 = vmatpush.msra.mxu0 0.0
        %1500 = vmatpush.msra.mxu0 0.0
        %v1501 = vand.u32 %v1251, 4294901760
        %v1502 = vsub.f32 %v1251, %v1501
        %v1503 = vand.u32 %v1502, 4294901760
        %v1504 = vsub.f32 %v1502, %v1503
        %v1505 = vand.u32 %v1504, 4294901760
        %1506 = vmatpush.msra.mxu0 %v1505
        %v1507 = vand.u32 %v1222, 4294901760
        %v1508 = vsub.f32 %v1222, %v1507
        %v1509 = vand.u32 %v1508, 4294901760
        %v1510 = vsub.f32 %v1508, %v1509
        %v1511 = vand.u32 %v1510, 4294901760
        %1512 = vmatpush.msra.mxu0 %v1511
        %v1513 = vand.u32 %v1243, 4294901760
        %1514 = vmatmul.f32.gmra.mxu0 %v1513
        %v1515 = vpop.f32.mrf.mxu0
        %v1516 = vadd.f32 %v1477, %v1515
        %v1517 = vand.u32 %v1245, 4294901760
        %1518 = vmatmul.f32.gmra.mxu0 %v1517
        %v1519 = vpop.f32.mrf.mxu0
        %v1520 = vadd.f32 %v1485, %v1519
        %1521 = vdwg.mxu0
        %1522 = vmatpush.msra.mxu0 0.0
        %1523 = vmatpush.msra.mxu0 0.0
        %1524 = vmatpush.msra.mxu0 0.0
        %1525 = vmatpush.msra.mxu0 0.0
        %1526 = vmatpush.msra.mxu0 0.0
        %1527 = vmatpush.msra.mxu0 0.0
        %1528 = vmatpush.msra.mxu0 0.0
        %1529 = vmatpush.msra.mxu0 0.0
        %1530 = vmatpush.msra.mxu0 0.0
        %1531 = vmatpush.msra.mxu0 0.0
        %1532 = vmatpush.msra.mxu0 0.0
        %1533 = vmatpush.msra.mxu0 0.0
        %1534 = vmatpush.msra.mxu0 0.0
        %1535 = vmatpush.msra.mxu0 0.0
        %v1536 = vand.u32 %v1251, 4294901760
        %v1537 = vsub.f32 %v1251, %v1536
        %1538 = vmatpush.msra.mxu0 %v1537
        %v1539 = vand.u32 %v1222, 4294901760
        %v1540 = vsub.f32 %v1222, %v1539
        %1541 = vmatpush.msra.mxu0 %v1540
        %v1542 = vand.u32 %v1243, 4294901760
        %v1543 = vsub.f32 %v1243, %v1542
        %1544 = vmatmul.f32.gmra.mxu0 %v1543
        %v1545 = vpop.f32.mrf.mxu0
        %v1546 = vadd.f32 %v1516, %v1545
        %v1547 = vand.u32 %v1245, 4294901760
        %v1548 = vsub.f32 %v1245, %v1547
        %1549 = vmatmul.f32.gmra.mxu0 %v1548
        %v1550 = vpop.f32.mrf.mxu0
        %v1551 = vadd.f32 %v1520, %v1550
        %1552 = vdwg.mxu0
        %1553 = vmatpush.msra.mxu0 0.0
        %1554 = vmatpush.msra.mxu0 0.0
        %1555 = vmatpush.msra.mxu0 0.0
        %1556 = vmatpush.msra.mxu0 0.0
        %1557 = vmatpush.msra.mxu0 0.0
        %1558 = vmatpush.msra.mxu0 0.0
        %1559 = vmatpush.msra.mxu0 0.0
        %1560 = vmatpush.msra.mxu0 0.0
        %1561 = vmatpush.msra.mxu0 0.0
        %1562 = vmatpush.msra.mxu0 0.0
        %1563 = vmatpush.msra.mxu0 0.0
        %1564 = vmatpush.msra.mxu0 0.0
        %1565 = vmatpush.msra.mxu0 0.0
        %1566 = vmatpush.msra.mxu0 0.0
        %v1567 = vand.u32 %v1251, 4294901760
        %1568 = vmatpush.msra.mxu0 %v1567
        %v1569 = vand.u32 %v1222, 4294901760
        %1570 = vmatpush.msra.mxu0 %v1569
        %v1571 = vand.u32 %v1243, 4294901760
        %v1572 = vsub.f32 %v1243, %v1571
        %v1573 = vand.u32 %v1572, 4294901760
        %1574 = vmatmul.f32.gmra.mxu0 %v1573
        %v1575 = vpop.f32.mrf.mxu0
        %v1576 = vadd.f32 %v1546, %v1575
        %v1577 = vand.u32 %v1245, 4294901760
        %v1578 = vsub.f32 %v1245, %v1577
        %v1579 = vand.u32 %v1578, 4294901760
        %1580 = vmatmul.f32.gmra.mxu0 %v1579
        %v1581 = vpop.f32.mrf.mxu0
        %v1582 = vadd.f32 %v1551, %v1581
        %1583 = vdwg.mxu0
        %1584 = vmatpush.msra.mxu0 0.0
        %1585 = vmatpush.msra.mxu0 0.0
        %1586 = vmatpush.msra.mxu0 0.0
        %1587 = vmatpush.msra.mxu0 0.0
        %1588 = vmatpush.msra.mxu0 0.0
        %1589 = vmatpush.msra.mxu0 0.0
        %1590 = vmatpush.msra.mxu0 0.0
        %1591 = vmatpush.msra.mxu0 0.0
        %1592 = vmatpush.msra.mxu0 0.0
        %1593 = vmatpush.msra.mxu0 0.0
        %1594 = vmatpush.msra.mxu0 0.0
        %1595 = vmatpush.msra.mxu0 0.0
        %1596 = vmatpush.msra.mxu0 0.0
        %1597 = vmatpush.msra.mxu0 0.0
        %v1598 = vand.u32 %v1251, 4294901760
        %v1599 = vsub.f32 %v1251, %v1598
        %v1600 = vand.u32 %v1599, 4294901760
        %1601 = vmatpush.msra.mxu0 %v1600
        %v1602 = vand.u32 %v1222, 4294901760
        %v1603 = vsub.f32 %v1222, %v1602
        %v1604 = vand.u32 %v1603, 4294901760
        %1605 = vmatpush.msra.mxu0 %v1604
        %v1606 = vand.u32 %v1243, 4294901760
        %1607 = vmatmul.f32.gmra.mxu0 %v1606
        %v1608 = vpop.f32.mrf.mxu0
        %v1609 = vadd.f32 %v1576, %v1608
        %v1610 = vand.u32 %v1245, 4294901760
        %1611 = vmatmul.f32.gmra.mxu0 %v1610
        %v1612 = vpop.f32.mrf.mxu0
        %v1613 = vadd.f32 %v1582, %v1612
        %1614 = vdwg.mxu0
        %1615 = vmatpush.msra.mxu0 0.0
        %1616 = vmatpush.msra.mxu0 0.0
        %1617 = vmatpush.msra.mxu0 0.0
        %1618 = vmatpush.msra.mxu0 0.0
        %1619 = vmatpush.msra.mxu0 0.0
        %1620 = vmatpush.msra.mxu0 0.0
        %1621 = vmatpush.msra.mxu0 0.0
        %1622 = vmatpush.msra.mxu0 0.0
        %1623 = vmatpush.msra.mxu0 0.0
        %1624 = vmatpush.msra.mxu0 0.0
        %1625 = vmatpush.msra.mxu0 0.0
        %1626 = vmatpush.msra.mxu0 0.0
        %1627 = vmatpush.msra.mxu0 0.0
        %1628 = vmatpush.msra.mxu0 0.0
        %v1629 = vand.u32 %v1251, 4294901760
        %1630 = vmatpush.msra.mxu0 %v1629
        %v1631 = vand.u32 %v1222, 4294901760
        %1632 = vmatpush.msra.mxu0 %v1631
        %v1633 = vand.u32 %v1243, 4294901760
        %1634 = vmatmul.f32.gmra.mxu0 %v1633
        %v1635 = vpop.f32.mrf.mxu0
        %v1636 = vadd.f32 %v1609, %v1635
        %v1637 = vand.u32 %v1245, 4294901760
        %1638 = vmatmul.f32.gmra.mxu0 %v1637
        %v1639 = vpop.f32.mrf.mxu0
        %v1640 = vadd.f32 %v1613, %v1639
        %1641 = vdwg.mxu0
        %1642 = vmatpush.msra.mxu0 0.0
        %1643 = vmatpush.msra.mxu0 0.0
        %1644 = vmatpush.msra.mxu0 0.0
        %1645 = vmatpush.msra.mxu0 0.0
        %1646 = vmatpush.msra.mxu0 0.0
        %1647 = vmatpush.msra.mxu0 0.0
        %1648 = vmatpush.msra.mxu0 0.0
        %1649 = vmatpush.msra.mxu0 0.0
        %1650 = vmatpush.msra.mxu0 0.0
        %1651 = vmatpush.msra.mxu0 0.0
        %1652 = vmatpush.msra.mxu0 0.0
        %1653 = vmatpush.msra.mxu0 0.0
        %1654 = vmatpush.msra.mxu0 0.0
        %1655 = vmatpush.msra.mxu0 0.0
        %v1656 = vand.u32 %v1254, 4294901760
        %1657 = vmatpush.msra.mxu0 %v1656
        %v1658 = vand.u32 %v1223, 4294901760
        %1659 = vmatpush.msra.mxu0 %v1658
        %v1660 = vand.u32 %v1243, 4294901760
        %v1661 = vsub.f32 %v1243, %v1660
        %v1662 = vand.u32 %v1661, 4294901760
        %v1663 = vsub.f32 %v1661, %v1662
        %v1664 = vand.u32 %v1663, 4294901760
        %1665 = vmatmul.f32.gmra.mxu0 %v1664
        %v1666 = vpop.f32.mrf.mxu0
        %v1667 = vadd.f32 %v1233, %v1666
        %v1668 = vand.u32 %v1245, 4294901760
        %v1669 = vsub.f32 %v1245, %v1668
        %v1670 = vand.u32 %v1669, 4294901760
        %v1671 = vsub.f32 %v1669, %v1670
        %v1672 = vand.u32 %v1671, 4294901760
        %1673 = vmatmul.f32.gmra.mxu0 %v1672
        %v1674 = vpop.f32.mrf.mxu0
        %v1675 = vadd.f32 %v1237, %v1674
        %1676 = vdwg.mxu0
        %1677 = vmatpush.msra.mxu0 0.0
        %1678 = vmatpush.msra.mxu0 0.0
        %1679 = vmatpush.msra.mxu0 0.0
        %1680 = vmatpush.msra.mxu0 0.0
        %1681 = vmatpush.msra.mxu0 0.0
        %1682 = vmatpush.msra.mxu0 0.0
        %1683 = vmatpush.msra.mxu0 0.0
        %1684 = vmatpush.msra.mxu0 0.0
        %1685 = vmatpush.msra.mxu0 0.0
        %1686 = vmatpush.msra.mxu0 0.0
        %1687 = vmatpush.msra.mxu0 0.0
        %1688 = vmatpush.msra.mxu0 0.0
        %1689 = vmatpush.msra.mxu0 0.0
        %1690 = vmatpush.msra.mxu0 0.0
        %v1691 = vand.u32 %v1254, 4294901760
        %v1692 = vsub.f32 %v1254, %v1691
        %v1693 = vand.u32 %v1692, 4294901760
        %v1694 = vsub.f32 %v1692, %v1693
        %v1695 = vand.u32 %v1694, 4294901760
        %1696 = vmatpush.msra.mxu0 %v1695
        %v1697 = vand.u32 %v1223, 4294901760
        %v1698 = vsub.f32 %v1223, %v1697
        %v1699 = vand.u32 %v1698, 4294901760
        %v1700 = vsub.f32 %v1698, %v1699
        %v1701 = vand.u32 %v1700, 4294901760
        %1702 = vmatpush.msra.mxu0 %v1701
        %v1703 = vand.u32 %v1243, 4294901760
        %1704 = vmatmul.f32.gmra.mxu0 %v1703
        %v1705 = vpop.f32.mrf.mxu0
        %v1706 = vadd.f32 %v1667, %v1705
        %v1707 = vand.u32 %v1245, 4294901760
        %1708 = vmatmul.f32.gmra.mxu0 %v1707
        %v1709 = vpop.f32.mrf.mxu0
        %v1710 = vadd.f32 %v1675, %v1709
        %1711 = vdwg.mxu0
        %1712 = vmatpush.msra.mxu0 0.0
        %1713 = vmatpush.msra.mxu0 0.0
        %1714 = vmatpush.msra.mxu0 0.0
        %1715 = vmatpush.msra.mxu0 0.0
        %1716 = vmatpush.msra.mxu0 0.0
        %1717 = vmatpush.msra.mxu0 0.0
        %1718 = vmatpush.msra.mxu0 0.0
        %1719 = vmatpush.msra.mxu0 0.0
        %1720 = vmatpush.msra.mxu0 0.0
        %1721 = vmatpush.msra.mxu0 0.0
        %1722 = vmatpush.msra.mxu0 0.0
        %1723 = vmatpush.msra.mxu0 0.0
        %1724 = vmatpush.msra.mxu0 0.0
        %1725 = vmatpush.msra.mxu0 0.0
        %v1726 = vand.u32 %v1254, 4294901760
        %v1727 = vsub.f32 %v1254, %v1726
        %1728 = vmatpush.msra.mxu0 %v1727
        %v1729 = vand.u32 %v1223, 4294901760
        %v1730 = vsub.f32 %v1223, %v1729
        %1731 = vmatpush.msra.mxu0 %v1730
        %v1732 = vand.u32 %v1243, 4294901760
        %v1733 = vsub.f32 %v1243, %v1732
        %1734 = vmatmul.f32.gmra.mxu0 %v1733
        %v1735 = vpop.f32.mrf.mxu0
        %v1736 = vadd.f32 %v1706, %v1735
        %v1737 = vand.u32 %v1245, 4294901760
        %v1738 = vsub.f32 %v1245, %v1737
        %1739 = vmatmul.f32.gmra.mxu0 %v1738
        %v1740 = vpop.f32.mrf.mxu0
        %v1741 = vadd.f32 %v1710, %v1740
        %1742 = vdwg.mxu0
        %1743 = vmatpush.msra.mxu0 0.0
        %1744 = vmatpush.msra.mxu0 0.0
        %1745 = vmatpush.msra.mxu0 0.0
        %1746 = vmatpush.msra.mxu0 0.0
        %1747 = vmatpush.msra.mxu0 0.0
        %1748 = vmatpush.msra.mxu0 0.0
        %1749 = vmatpush.msra.mxu0 0.0
        %1750 = vmatpush.msra.mxu0 0.0
        %1751 = vmatpush.msra.mxu0 0.0
        %1752 = vmatpush.msra.mxu0 0.0
        %1753 = vmatpush.msra.mxu0 0.0
        %1754 = vmatpush.msra.mxu0 0.0
        %1755 = vmatpush.msra.mxu0 0.0
        %1756 = vmatpush.msra.mxu0 0.0
        %v1757 = vand.u32 %v1254, 4294901760
        %1758 = vmatpush.msra.mxu0 %v1757
        %v1759 = vand.u32 %v1223, 4294901760
        %1760 = vmatpush.msra.mxu0 %v1759
        %v1761 = vand.u32 %v1243, 4294901760
        %v1762 = vsub.f32 %v1243, %v1761
        %v1763 = vand.u32 %v1762, 4294901760
        %1764 = vmatmul.f32.gmra.mxu0 %v1763
        %v1765 = vpop.f32.mrf.mxu0
        %v1766 = vadd.f32 %v1736, %v1765
        %v1767 = vand.u32 %v1245, 4294901760
        %v1768 = vsub.f32 %v1245, %v1767
        %v1769 = vand.u32 %v1768, 4294901760
        %1770 = vmatmul.f32.gmra.mxu0 %v1769
        %v1771 = vpop.f32.mrf.mxu0
        %v1772 = vadd.f32 %v1741, %v1771
        %1773 = vdwg.mxu0
        %1774 = vmatpush.msra.mxu0 0.0
        %1775 = vmatpush.msra.mxu0 0.0
        %1776 = vmatpush.msra.mxu0 0.0
        %1777 = vmatpush.msra.mxu0 0.0
        %1778 = vmatpush.msra.mxu0 0.0
        %1779 = vmatpush.msra.mxu0 0.0
        %1780 = vmatpush.msra.mxu0 0.0
        %1781 = vmatpush.msra.mxu0 0.0
        %1782 = vmatpush.msra.mxu0 0.0
        %1783 = vmatpush.msra.mxu0 0.0
        %1784 = vmatpush.msra.mxu0 0.0
        %1785 = vmatpush.msra.mxu0 0.0
        %1786 = vmatpush.msra.mxu0 0.0
        %1787 = vmatpush.msra.mxu0 0.0
        %v1788 = vand.u32 %v1254, 4294901760
        %v1789 = vsub.f32 %v1254, %v1788
        %v1790 = vand.u32 %v1789, 4294901760
        %1791 = vmatpush.msra.mxu0 %v1790
        %v1792 = vand.u32 %v1223, 4294901760
        %v1793 = vsub.f32 %v1223, %v1792
        %v1794 = vand.u32 %v1793, 4294901760
        %1795 = vmatpush.msra.mxu0 %v1794
        %v1796 = vand.u32 %v1243, 4294901760
        %1797 = vmatmul.f32.gmra.mxu0 %v1796
        %v1798 = vpop.f32.mrf.mxu0
        %v1799 = vadd.f32 %v1766, %v1798
        %v1800 = vand.u32 %v1245, 4294901760
        %1801 = vmatmul.f32.gmra.mxu0 %v1800
        %v1802 = vpop.f32.mrf.mxu0
        %v1803 = vadd.f32 %v1772, %v1802
        %1804 = vdwg.mxu0
        %1805 = vmatpush.msra.mxu0 0.0
        %1806 = vmatpush.msra.mxu0 0.0
        %1807 = vmatpush.msra.mxu0 0.0
        %1808 = vmatpush.msra.mxu0 0.0
        %1809 = vmatpush.msra.mxu0 0.0
        %1810 = vmatpush.msra.mxu0 0.0
        %1811 = vmatpush.msra.mxu0 0.0
        %1812 = vmatpush.msra.mxu0 0.0
        %1813 = vmatpush.msra.mxu0 0.0
        %1814 = vmatpush.msra.mxu0 0.0
        %1815 = vmatpush.msra.mxu0 0.0
        %1816 = vmatpush.msra.mxu0 0.0
        %1817 = vmatpush.msra.mxu0 0.0
        %1818 = vmatpush.msra.mxu0 0.0
        %v1819 = vand.u32 %v1254, 4294901760
        %1820 = vmatpush.msra.mxu0 %v1819
        %v1821 = vand.u32 %v1223, 4294901760
        %1822 = vmatpush.msra.mxu0 %v1821
        %v1823 = vand.u32 %v1243, 4294901760
        %1824 = vmatmul.f32.gmra.mxu0 %v1823
        %v1825 = vpop.f32.mrf.mxu0
        %v1826 = vadd.f32 %v1799, %v1825
        %v1827 = vand.u32 %v1245, 4294901760
        %1828 = vmatmul.f32.gmra.mxu0 %v1827
        %v1829 = vpop.f32.mrf.mxu0
        %v1830 = vadd.f32 %v1803, %v1829
        %1831 = vdwg.mxu0
        %1832 = vmatpush.msra.mxu0 0.0
        %1833 = vmatpush.msra.mxu0 0.0
        %1834 = vmatpush.msra.mxu0 0.0
        %1835 = vmatpush.msra.mxu0 0.0
        %1836 = vmatpush.msra.mxu0 0.0
        %1837 = vmatpush.msra.mxu0 0.0
        %1838 = vmatpush.msra.mxu0 0.0
        %1839 = vmatpush.msra.mxu0 0.0
        %1840 = vmatpush.msra.mxu0 0.0
        %1841 = vmatpush.msra.mxu0 0.0
        %1842 = vmatpush.msra.mxu0 0.0
        %1843 = vmatpush.msra.mxu0 0.0
        %1844 = vmatpush.msra.mxu0 0.0
        %1845 = vmatpush.msra.mxu0 0.0
        %v1846 = vand.u32 %v1257, 4294901760
        %1847 = vmatpush.msra.mxu0 %v1846
        %v1848 = vand.u32 %v1224, 4294901760
        %1849 = vmatpush.msra.mxu0 %v1848
        %v1850 = vand.u32 %v1243, 4294901760
        %v1851 = vsub.f32 %v1243, %v1850
        %v1852 = vand.u32 %v1851, 4294901760
        %v1853 = vsub.f32 %v1851, %v1852
        %v1854 = vand.u32 %v1853, 4294901760
        %1855 = vmatmul.f32.gmra.mxu0 %v1854
        %v1856 = vpop.f32.mrf.mxu0
        %v1857 = vadd.f32 %v1233, %v1856
        %v1858 = vand.u32 %v1245, 4294901760
        %v1859 = vsub.f32 %v1245, %v1858
        %v1860 = vand.u32 %v1859, 4294901760
        %v1861 = vsub.f32 %v1859, %v1860
        %v1862 = vand.u32 %v1861, 4294901760
        %1863 = vmatmul.f32.gmra.mxu0 %v1862
        %v1864 = vpop.f32.mrf.mxu0
        %v1865 = vadd.f32 %v1237, %v1864
        %1866 = vdwg.mxu0
        %1867 = vmatpush.msra.mxu0 0.0
        %1868 = vmatpush.msra.mxu0 0.0
        %1869 = vmatpush.msra.mxu0 0.0
        %1870 = vmatpush.msra.mxu0 0.0
        %1871 = vmatpush.msra.mxu0 0.0
        %1872 = vmatpush.msra.mxu0 0.0
        %1873 = vmatpush.msra.mxu0 0.0
        %1874 = vmatpush.msra.mxu0 0.0
        %1875 = vmatpush.msra.mxu0 0.0
        %1876 = vmatpush.msra.mxu0 0.0
        %1877 = vmatpush.msra.mxu0 0.0
        %1878 = vmatpush.msra.mxu0 0.0
        %1879 = vmatpush.msra.mxu0 0.0
        %1880 = vmatpush.msra.mxu0 0.0
        %v1881 = vand.u32 %v1257, 4294901760
        %v1882 = vsub.f32 %v1257, %v1881
        %v1883 = vand.u32 %v1882, 4294901760
        %v1884 = vsub.f32 %v1882, %v1883
        %v1885 = vand.u32 %v1884, 4294901760
        %1886 = vmatpush.msra.mxu0 %v1885
        %v1887 = vand.u32 %v1224, 4294901760
        %v1888 = vsub.f32 %v1224, %v1887
        %v1889 = vand.u32 %v1888, 4294901760
        %v1890 = vsub.f32 %v1888, %v1889
        %v1891 = vand.u32 %v1890, 4294901760
        %1892 = vmatpush.msra.mxu0 %v1891
        %v1893 = vand.u32 %v1243, 4294901760
        %1894 = vmatmul.f32.gmra.mxu0 %v1893
        %v1895 = vpop.f32.mrf.mxu0
        %v1896 = vadd.f32 %v1857, %v1895
        %v1897 = vand.u32 %v1245, 4294901760
        %1898 = vmatmul.f32.gmra.mxu0 %v1897
        %v1899 = vpop.f32.mrf.mxu0
        %v1900 = vadd.f32 %v1865, %v1899
        %1901 = vdwg.mxu0
        %1902 = vmatpush.msra.mxu0 0.0
        %1903 = vmatpush.msra.mxu0 0.0
        %1904 = vmatpush.msra.mxu0 0.0
        %1905 = vmatpush.msra.mxu0 0.0
        %1906 = vmatpush.msra.mxu0 0.0
        %1907 = vmatpush.msra.mxu0 0.0
        %1908 = vmatpush.msra.mxu0 0.0
        %1909 = vmatpush.msra.mxu0 0.0
        %1910 = vmatpush.msra.mxu0 0.0
        %1911 = vmatpush.msra.mxu0 0.0
        %1912 = vmatpush.msra.mxu0 0.0
        %1913 = vmatpush.msra.mxu0 0.0
        %1914 = vmatpush.msra.mxu0 0.0
        %1915 = vmatpush.msra.mxu0 0.0
        %v1916 = vand.u32 %v1257, 4294901760
        %v1917 = vsub.f32 %v1257, %v1916
        %1918 = vmatpush.msra.mxu0 %v1917
        %v1919 = vand.u32 %v1224, 4294901760
        %v1920 = vsub.f32 %v1224, %v1919
        %1921 = vmatpush.msra.mxu0 %v1920
        %v1922 = vand.u32 %v1243, 4294901760
        %v1923 = vsub.f32 %v1243, %v1922
        %1924 = vmatmul.f32.gmra.mxu0 %v1923
        %v1925 = vpop.f32.mrf.mxu0
        %v1926 = vadd.f32 %v1896, %v1925
        %v1927 = vand.u32 %v1245, 4294901760
        %v1928 = vsub.f32 %v1245, %v1927
        %1929 = vmatmul.f32.gmra.mxu0 %v1928
        %v1930 = vpop.f32.mrf.mxu0
        %v1931 = vadd.f32 %v1900, %v1930
        %1932 = vdwg.mxu0
        %1933 = vmatpush.msra.mxu0 0.0
        %1934 = vmatpush.msra.mxu0 0.0
        %1935 = vmatpush.msra.mxu0 0.0
        %1936 = vmatpush.msra.mxu0 0.0
        %1937 = vmatpush.msra.mxu0 0.0
        %1938 = vmatpush.msra.mxu0 0.0
        %1939 = vmatpush.msra.mxu0 0.0
        %1940 = vmatpush.msra.mxu0 0.0
        %1941 = vmatpush.msra.mxu0 0.0
        %1942 = vmatpush.msra.mxu0 0.0
        %1943 = vmatpush.msra.mxu0 0.0
        %1944 = vmatpush.msra.mxu0 0.0
        %1945 = vmatpush.msra.mxu0 0.0
        %1946 = vmatpush.msra.mxu0 0.0
        %v1947 = vand.u32 %v1257, 4294901760
        %1948 = vmatpush.msra.mxu0 %v1947
        %v1949 = vand.u32 %v1224, 4294901760
        %1950 = vmatpush.msra.mxu0 %v1949
        %v1951 = vand.u32 %v1243, 4294901760
        %v1952 = vsub.f32 %v1243, %v1951
        %v1953 = vand.u32 %v1952, 4294901760
        %1954 = vmatmul.f32.gmra.mxu0 %v1953
        %v1955 = vpop.f32.mrf.mxu0
        %v1956 = vadd.f32 %v1926, %v1955
        %v1957 = vand.u32 %v1245, 4294901760
        %v1958 = vsub.f32 %v1245, %v1957
        %v1959 = vand.u32 %v1958, 4294901760
        %1960 = vmatmul.f32.gmra.mxu0 %v1959
        %v1961 = vpop.f32.mrf.mxu0
        %v1962 = vadd.f32 %v1931, %v1961
        %1963 = vdwg.mxu0
        %1964 = vmatpush.msra.mxu0 0.0
        %1965 = vmatpush.msra.mxu0 0.0
        %1966 = vmatpush.msra.mxu0 0.0
        %1967 = vmatpush.msra.mxu0 0.0
        %1968 = vmatpush.msra.mxu0 0.0
        %1969 = vmatpush.msra.mxu0 0.0
        %1970 = vmatpush.msra.mxu0 0.0
        %1971 = vmatpush.msra.mxu0 0.0
        %1972 = vmatpush.msra.mxu0 0.0
        %1973 = vmatpush.msra.mxu0 0.0
        %1974 = vmatpush.msra.mxu0 0.0
        %1975 = vmatpush.msra.mxu0 0.0
        %1976 = vmatpush.msra.mxu0 0.0
        %1977 = vmatpush.msra.mxu0 0.0
        %v1978 = vand.u32 %v1257, 4294901760
        %v1979 = vsub.f32 %v1257, %v1978
        %v1980 = vand.u32 %v1979, 4294901760
        %1981 = vmatpush.msra.mxu0 %v1980
        %v1982 = vand.u32 %v1224, 4294901760
        %v1983 = vsub.f32 %v1224, %v1982
        %v1984 = vand.u32 %v1983, 4294901760
        %1985 = vmatpush.msra.mxu0 %v1984
        %v1986 = vand.u32 %v1243, 4294901760
        %1987 = vmatmul.f32.gmra.mxu0 %v1986
        %v1988 = vpop.f32.mrf.mxu0
        %v1989 = vadd.f32 %v1956, %v1988
        %v1990 = vand.u32 %v1245, 4294901760
        %1991 = vmatmul.f32.gmra.mxu0 %v1990
        %v1992 = vpop.f32.mrf.mxu0
        %v1993 = vadd.f32 %v1962, %v1992
        %1994 = vdwg.mxu0
        %1995 = vmatpush.msra.mxu0 0.0
        %1996 = vmatpush.msra.mxu0 0.0
        %1997 = vmatpush.msra.mxu0 0.0
        %1998 = vmatpush.msra.mxu0 0.0
        %1999 = vmatpush.msra.mxu0 0.0
        %2000 = vmatpush.msra.mxu0 0.0
        %2001 = vmatpush.msra.mxu0 0.0
        %2002 = vmatpush.msra.mxu0 0.0
        %2003 = vmatpush.msra.mxu0 0.0
        %2004 = vmatpush.msra.mxu0 0.0
        %2005 = vmatpush.msra.mxu0 0.0
        %2006 = vmatpush.msra.mxu0 0.0
        %2007 = vmatpush.msra.mxu0 0.0
        %2008 = vmatpush.msra.mxu0 0.0
        %v2009 = vand.u32 %v1257, 4294901760
        %2010 = vmatpush.msra.mxu0 %v2009
        %v2011 = vand.u32 %v1224, 4294901760
        %2012 = vmatpush.msra.mxu0 %v2011
        %v2013 = vand.u32 %v1243, 4294901760
        %2014 = vmatmul.f32.gmra.mxu0 %v2013
        %v2015 = vpop.f32.mrf.mxu0
        %v2016 = vadd.f32 %v1989, %v2015
        %v2017 = vand.u32 %v1245, 4294901760
        %2018 = vmatmul.f32.gmra.mxu0 %v2017
        %v2019 = vpop.f32.mrf.mxu0
        %v2020 = vadd.f32 %v1993, %v2019
        %2021 = vdwg.mxu0
        %2022 = vmatpush.msra.mxu0 0.0
        %2023 = vmatpush.msra.mxu0 0.0
        %2024 = vmatpush.msra.mxu0 0.0
        %2025 = vmatpush.msra.mxu0 0.0
        %2026 = vmatpush.msra.mxu0 0.0
        %2027 = vmatpush.msra.mxu0 0.0
        %2028 = vmatpush.msra.mxu0 0.0
        %2029 = vmatpush.msra.mxu0 0.0
        %2030 = vmatpush.msra.mxu0 0.0
        %2031 = vmatpush.msra.mxu0 0.0
        %2032 = vmatpush.msra.mxu0 0.0
        %2033 = vmatpush.msra.mxu0 0.0
        %2034 = vmatpush.msra.mxu0 0.0
        %2035 = vmatpush.msra.mxu0 0.0
        %v2036 = vand.u32 %v1260, 4294901760
        %2037 = vmatpush.msra.mxu0 %v2036
        %v2038 = vand.u32 %v1225, 4294901760
        %2039 = vmatpush.msra.mxu0 %v2038
        %v2040 = vand.u32 %v1243, 4294901760
        %v2041 = vsub.f32 %v1243, %v2040
        %v2042 = vand.u32 %v2041, 4294901760
        %v2043 = vsub.f32 %v2041, %v2042
        %v2044 = vand.u32 %v2043, 4294901760
        %2045 = vmatmul.f32.gmra.mxu0 %v2044
        %v2046 = vpop.f32.mrf.mxu0
        %v2047 = vadd.f32 %v1233, %v2046
        %v2048 = vand.u32 %v1245, 4294901760
        %v2049 = vsub.f32 %v1245, %v2048
        %v2050 = vand.u32 %v2049, 4294901760
        %v2051 = vsub.f32 %v2049, %v2050
        %v2052 = vand.u32 %v2051, 4294901760
        %2053 = vmatmul.f32.gmra.mxu0 %v2052
        %v2054 = vpop.f32.mrf.mxu0
        %v2055 = vadd.f32 %v1237, %v2054
        %2056 = vdwg.mxu0
        %2057 = vmatpush.msra.mxu0 0.0
        %2058 = vmatpush.msra.mxu0 0.0
        %2059 = vmatpush.msra.mxu0 0.0
        %2060 = vmatpush.msra.mxu0 0.0
        %2061 = vmatpush.msra.mxu0 0.0
        %2062 = vmatpush.msra.mxu0 0.0
        %2063 = vmatpush.msra.mxu0 0.0
        %2064 = vmatpush.msra.mxu0 0.0
        %2065 = vmatpush.msra.mxu0 0.0
        %2066 = vmatpush.msra.mxu0 0.0
        %2067 = vmatpush.msra.mxu0 0.0
        %2068 = vmatpush.msra.mxu0 0.0
        %2069 = vmatpush.msra.mxu0 0.0
        %2070 = vmatpush.msra.mxu0 0.0
        %v2071 = vand.u32 %v1260, 4294901760
        %v2072 = vsub.f32 %v1260, %v2071
        %v2073 = vand.u32 %v2072, 4294901760
        %v2074 = vsub.f32 %v2072, %v2073
        %v2075 = vand.u32 %v2074, 4294901760
        %2076 = vmatpush.msra.mxu0 %v2075
        %v2077 = vand.u32 %v1225, 4294901760
        %v2078 = vsub.f32 %v1225, %v2077
        %v2079 = vand.u32 %v2078, 4294901760
        %v2080 = vsub.f32 %v2078, %v2079
        %v2081 = vand.u32 %v2080, 4294901760
        %2082 = vmatpush.msra.mxu0 %v2081
        %v2083 = vand.u32 %v1243, 4294901760
        %2084 = vmatmul.f32.gmra.mxu0 %v2083
        %v2085 = vpop.f32.mrf.mxu0
        %v2086 = vadd.f32 %v2047, %v2085
        %v2087 = vand.u32 %v1245, 4294901760
        %2088 = vmatmul.f32.gmra.mxu0 %v2087
        %v2089 = vpop.f32.mrf.mxu0
        %v2090 = vadd.f32 %v2055, %v2089
        %2091 = vdwg.mxu0
        %2092 = vmatpush.msra.mxu0 0.0
        %2093 = vmatpush.msra.mxu0 0.0
        %2094 = vmatpush.msra.mxu0 0.0
        %2095 = vmatpush.msra.mxu0 0.0
        %2096 = vmatpush.msra.mxu0 0.0
        %2097 = vmatpush.msra.mxu0 0.0
        %2098 = vmatpush.msra.mxu0 0.0
        %2099 = vmatpush.msra.mxu0 0.0
        %2100 = vmatpush.msra.mxu0 0.0
        %2101 = vmatpush.msra.mxu0 0.0
        %2102 = vmatpush.msra.mxu0 0.0
        %2103 = vmatpush.msra.mxu0 0.0
        %2104 = vmatpush.msra.mxu0 0.0
        %2105 = vmatpush.msra.mxu0 0.0
        %v2106 = vand.u32 %v1260, 4294901760
        %v2107 = vsub.f32 %v1260, %v2106
        %2108 = vmatpush.msra.mxu0 %v2107
        %v2109 = vand.u32 %v1225, 4294901760
        %v2110 = vsub.f32 %v1225, %v2109
        %2111 = vmatpush.msra.mxu0 %v2110
        %v2112 = vand.u32 %v1243, 4294901760
        %v2113 = vsub.f32 %v1243, %v2112
        %2114 = vmatmul.f32.gmra.mxu0 %v2113
        %v2115 = vpop.f32.mrf.mxu0
        %v2116 = vadd.f32 %v2086, %v2115
        %v2117 = vand.u32 %v1245, 4294901760
        %v2118 = vsub.f32 %v1245, %v2117
        %2119 = vmatmul.f32.gmra.mxu0 %v2118
        %v2120 = vpop.f32.mrf.mxu0
        %v2121 = vadd.f32 %v2090, %v2120
        %2122 = vdwg.mxu0
        %2123 = vmatpush.msra.mxu0 0.0
        %2124 = vmatpush.msra.mxu0 0.0
        %2125 = vmatpush.msra.mxu0 0.0
        %2126 = vmatpush.msra.mxu0 0.0
        %2127 = vmatpush.msra.mxu0 0.0
        %2128 = vmatpush.msra.mxu0 0.0
        %2129 = vmatpush.msra.mxu0 0.0
        %2130 = vmatpush.msra.mxu0 0.0
        %2131 = vmatpush.msra.mxu0 0.0
        %2132 = vmatpush.msra.mxu0 0.0
        %2133 = vmatpush.msra.mxu0 0.0
        %2134 = vmatpush.msra.mxu0 0.0
        %2135 = vmatpush.msra.mxu0 0.0
        %2136 = vmatpush.msra.mxu0 0.0
        %v2137 = vand.u32 %v1260, 4294901760
        %2138 = vmatpush.msra.mxu0 %v2137
        %v2139 = vand.u32 %v1225, 4294901760
        %2140 = vmatpush.msra.mxu0 %v2139
        %v2141 = vand.u32 %v1243, 4294901760
        %v2142 = vsub.f32 %v1243, %v2141
        %v2143 = vand.u32 %v2142, 4294901760
        %2144 = vmatmul.f32.gmra.mxu0 %v2143
        %v2145 = vpop.f32.mrf.mxu0
        %v2146 = vadd.f32 %v2116, %v2145
        %v2147 = vand.u32 %v1245, 4294901760
        %v2148 = vsub.f32 %v1245, %v2147
        %v2149 = vand.u32 %v2148, 4294901760
        %2150 = vmatmul.f32.gmra.mxu0 %v2149
        %v2151 = vpop.f32.mrf.mxu0
        %v2152 = vadd.f32 %v2121, %v2151
        %2153 = vdwg.mxu0
        %2154 = vmatpush.msra.mxu0 0.0
        %2155 = vmatpush.msra.mxu0 0.0
        %2156 = vmatpush.msra.mxu0 0.0
        %2157 = vmatpush.msra.mxu0 0.0
        %2158 = vmatpush.msra.mxu0 0.0
        %2159 = vmatpush.msra.mxu0 0.0
        %2160 = vmatpush.msra.mxu0 0.0
        %2161 = vmatpush.msra.mxu0 0.0
        %2162 = vmatpush.msra.mxu0 0.0
        %2163 = vmatpush.msra.mxu0 0.0
        %2164 = vmatpush.msra.mxu0 0.0
        %2165 = vmatpush.msra.mxu0 0.0
        %2166 = vmatpush.msra.mxu0 0.0
        %2167 = vmatpush.msra.mxu0 0.0
        %v2168 = vand.u32 %v1260, 4294901760
        %v2169 = vsub.f32 %v1260, %v2168
        %v2170 = vand.u32 %v2169, 4294901760
        %2171 = vmatpush.msra.mxu0 %v2170
        %v2172 = vand.u32 %v1225, 4294901760
        %v2173 = vsub.f32 %v1225, %v2172
        %v2174 = vand.u32 %v2173, 4294901760
        %2175 = vmatpush.msra.mxu0 %v2174
        %v2176 = vand.u32 %v1243, 4294901760
        %2177 = vmatmul.f32.gmra.mxu0 %v2176
        %v2178 = vpop.f32.mrf.mxu0
        %v2179 = vadd.f32 %v2146, %v2178
        %v2180 = vand.u32 %v1245, 4294901760
        %2181 = vmatmul.f32.gmra.mxu0 %v2180
        %v2182 = vpop.f32.mrf.mxu0
        %v2183 = vadd.f32 %v2152, %v2182
        %2184 = vdwg.mxu0
        %2185 = vmatpush.msra.mxu0 0.0
        %2186 = vmatpush.msra.mxu0 0.0
        %2187 = vmatpush.msra.mxu0 0.0
        %2188 = vmatpush.msra.mxu0 0.0
        %2189 = vmatpush.msra.mxu0 0.0
        %2190 = vmatpush.msra.mxu0 0.0
        %2191 = vmatpush.msra.mxu0 0.0
        %2192 = vmatpush.msra.mxu0 0.0
        %2193 = vmatpush.msra.mxu0 0.0
        %2194 = vmatpush.msra.mxu0 0.0
        %2195 = vmatpush.msra.mxu0 0.0
        %2196 = vmatpush.msra.mxu0 0.0
        %2197 = vmatpush.msra.mxu0 0.0
        %2198 = vmatpush.msra.mxu0 0.0
        %v2199 = vand.u32 %v1260, 4294901760
        %2200 = vmatpush.msra.mxu0 %v2199
        %v2201 = vand.u32 %v1225, 4294901760
        %2202 = vmatpush.msra.mxu0 %v2201
        %v2203 = vand.u32 %v1243, 4294901760
        %2204 = vmatmul.f32.gmra.mxu0 %v2203
        %v2205 = vpop.f32.mrf.mxu0
        %v2206 = vadd.f32 %v2179, %v2205
        %v2207 = vand.u32 %v1245, 4294901760
        %2208 = vmatmul.f32.gmra.mxu0 %v2207
        %v2209 = vpop.f32.mrf.mxu0
        %v2210 = vadd.f32 %v2183, %v2209
        %2211 = vdwg.mxu0
        %v2212 = vtanh.pop %v1446
        %v2213 = vtanh.pop %v1636
        %v2214 = vtanh.pop %v1826
        %v2215 = vtanh.pop %v2016
        %v2216 = vtanh.pop %v2206
        %v2217 = vtanh.pop %v1450
        %v2218 = vtanh.pop %v1640
        %v2219 = vtanh.pop %v1830
        %v2220 = vtanh.pop %v2020
        %v2221 = vtanh.pop %v2210
        %2222 = vset.pattern.permute.xlu0 34
        %2223 = vperm.xlu0 %2222, %v177
        %v2224 = vpop.permute.xlu0 %2223
        %2226 = vset.pattern.permute.xlu0 34
        %2227 = vperm.xlu0 %2226, %v178
        %v2228 = vpop.permute.xlu0 %2227
        %v2230 = vmul.f32 %v2224, %v2212
        %v2231 = vmul.f32 %v2224, %v2213
        %v2232 = vmul.f32 %v2224, %v2214
        %v2233 = vmul.f32 %v2224, %v2215
        %v2234 = vmul.f32 %v2224, %v2216
        %v2235 = vmul.f32 %v2228, %v2217
        %v2236 = vmul.f32 %v2228, %v2218
        %v2237 = vmul.f32 %v2228, %v2219
        %v2238 = vmul.f32 %v2228, %v2220
        %v2239 = vmul.f32 %v2228, %v2221
        %v2240 = vsel %vm255, %v2235, 0.0
        %v2241 = vadd.f32 %v2230, %v2240
        %v2242 = vrot.slane %v2241, 4
        %v2243 = vadd.f32 %v2241, %v2242
        %v2244 = vrot.slane %v2243, 2
        %v2245 = vadd.f32 %v2243, %v2244
        %v2246 = vrot.slane %v2245, 1
        %v2247 = vadd.f32 %v2245, %v2246
        %v2248 = vsel %vm255, %v2236, 0.0
        %v2249 = vadd.f32 %v2231, %v2248
        %v2250 = vrot.slane %v2249, 4
        %v2251 = vadd.f32 %v2249, %v2250
        %v2252 = vrot.slane %v2251, 2
        %v2253 = vadd.f32 %v2251, %v2252
        %v2254 = vrot.slane %v2253, 1
        %v2255 = vadd.f32 %v2253, %v2254
        %v2256 = vsel %vm255, %v2237, 0.0
        %v2257 = vadd.f32 %v2232, %v2256
        %v2258 = vrot.slane %v2257, 4
        %v2259 = vadd.f32 %v2257, %v2258
        %v2260 = vrot.slane %v2259, 2
        %v2261 = vadd.f32 %v2259, %v2260
        %v2262 = vrot.slane %v2261, 1
        %v2263 = vadd.f32 %v2261, %v2262
        %v2264 = vsel %vm255, %v2238, 0.0
        %v2265 = vadd.f32 %v2233, %v2264
        %v2266 = vrot.slane %v2265, 4
        %v2267 = vadd.f32 %v2265, %v2266
        %v2268 = vrot.slane %v2267, 2
        %v2269 = vadd.f32 %v2267, %v2268
        %v2270 = vrot.slane %v2269, 1
        %v2271 = vadd.f32 %v2269, %v2270
        %v2272 = vsel %vm255, %v2239, 0.0
        %v2273 = vadd.f32 %v2234, %v2272
        %v2274 = vrot.slane %v2273, 4
        %v2275 = vadd.f32 %v2273, %v2274
        %v2276 = vrot.slane %v2275, 2
        %v2277 = vadd.f32 %v2275, %v2276
        %v2278 = vrot.slane %v2277, 1
        %v2279 = vadd.f32 %v2277, %v2278
        %2280 = vset.pattern.permute.xlu0 35
        %2281 = vperm.xlu0 %2280, %v177
        %v2282 = vpop.permute.xlu0 %2281
        %v2284 = vadd.f32 %v2247, %v2282
        %v2285 = vadd.f32 %v2255, %v2282
        %v2286 = vadd.f32 %v2263, %v2282
        %v2287 = vadd.f32 %v2271, %v2282
        %v2288 = vadd.f32 %v2279, %v2282
        %v2289 = vtanh.pop %v2284
        %v2290 = vtanh.pop %v2285
        %v2291 = vtanh.pop %v2286
        %v2292 = vtanh.pop %v2287
        %v2293 = vtanh.pop %v2288
        %s2294 = scalar_lea.vmem %s160, 1
        %v2295 = vld [vmem:[%s2294] ss:$2 sm:$0x1f]
        %s2296 = scalar_lea.vmem %s1, 16
        %v2297 = vld [vmem:[%s2296] sm:$0xff]
        %v2298 = vld [vmem:[%s2296 + $0x8] sm:$0x7f]
        %2300 = vset.pattern.permute.xlu0 0
        %2301 = vperm.xlu0 %2300, %v2297
        %v2302 = vpop.permute.xlu0 %2301
        %2305 = vset.pattern.permute.xlu0 0
        %2306 = vperm.xlu0 %2305, %v2298
        %v2307 = vpop.permute.xlu0 %2306
        %v2310 = vperm.slane %v2295, 0
        %v2311 = vperm.slane %v2295, 1
        %v2312 = vperm.slane %v2295, 2
        %v2313 = vperm.slane %v2295, 3
        %v2314 = vperm.slane %v2295, 4
        %v2320 = vmul.f32 %v2302, %v2310
        %v2321 = vmul.f32 %v2302, %v2311
        %v2322 = vmul.f32 %v2302, %v2312
        %v2323 = vmul.f32 %v2302, %v2313
        %v2324 = vmul.f32 %v2302, %v2314
        %v2325 = vmul.f32 %v2307, %v2310
        %v2326 = vmul.f32 %v2307, %v2311
        %v2327 = vmul.f32 %v2307, %v2312
        %v2328 = vmul.f32 %v2307, %v2313
        %v2329 = vmul.f32 %v2307, %v2314
        %2330 = vset.pattern.permute.xlu0 1
        %2331 = vperm.xlu0 %2330, %v2297
        %v2332 = vpop.permute.xlu0 %2331
        %2334 = vset.pattern.permute.xlu0 1
        %2335 = vperm.xlu0 %2334, %v2298
        %v2336 = vpop.permute.xlu0 %2335
        %v2338 = vadd.f32 %v2320, %v2332
        %v2339 = vadd.f32 %v2321, %v2332
        %v2340 = vadd.f32 %v2322, %v2332
        %v2341 = vadd.f32 %v2323, %v2332
        %v2342 = vadd.f32 %v2324, %v2332
        %v2343 = vadd.f32 %v2325, %v2336
        %v2344 = vadd.f32 %v2326, %v2336
        %v2345 = vadd.f32 %v2327, %v2336
        %v2346 = vadd.f32 %v2328, %v2336
        %v2347 = vadd.f32 %v2329, %v2336
        %v2348 = vtanh.pop %v2338
        %v2349 = vtanh.pop %v2339
        %v2350 = vtanh.pop %v2340
        %v2351 = vtanh.pop %v2341
        %v2352 = vtanh.pop %v2342
        %v2353 = vtanh.pop %v2343
        %v2354 = vtanh.pop %v2344
        %v2355 = vtanh.pop %v2345
        %v2356 = vtanh.pop %v2346
        %v2357 = vtanh.pop %v2347
        %2358 = vset.pattern.permute.xlu0 17
        %2359 = vperm.xlu0 %2358, %v2297
        %v2360 = vpop.permute.xlu0 %2359
        %2362 = vset.pattern.permute.xlu0 17
        %2363 = vperm.xlu0 %2362, %v2298
        %v2364 = vpop.permute.xlu0 %2363
        %2366 = vrot.lane.b32.xlu0 %v2297, 126
        %v2367 = vpop.permute.xlu0 %2366
        %2368 = vrot.lane.b32.xlu0 %v2298, 126
        %v2369 = vpop.permute.xlu0 %2368
        %v2370 = vsel %vm250, %v2367, 0
        %v2372 = vsel %vm250, %v2369, 0
        %v2375 = vsel %vm255, %v2353, 0
        %v2378 = vsel %vm255, %v2354, 0
        %v2381 = vsel %vm255, %v2355, 0
        %v2384 = vsel %vm255, %v2356, 0
        %v2387 = vsel %vm255, %v2357, 0
        %2389 = vmatpush.msra.mxu0 0.0
        %2390 = vmatpush.msra.mxu0 0.0
        %2391 = vmatpush.msra.mxu0 0.0
        %2392 = vmatpush.msra.mxu0 0.0
        %2393 = vmatpush.msra.mxu0 0.0
        %2394 = vmatpush.msra.mxu0 0.0
        %2395 = vmatpush.msra.mxu0 0.0
        %2396 = vmatpush.msra.mxu0 0.0
        %2397 = vmatpush.msra.mxu0 0.0
        %2398 = vmatpush.msra.mxu0 0.0
        %2399 = vmatpush.msra.mxu0 0.0
        %2400 = vmatpush.msra.mxu0 0.0
        %2401 = vmatpush.msra.mxu0 0.0
        %2402 = vmatpush.msra.mxu0 0.0
        %v2403 = vand.u32 %v2375, 4294901760
        %2404 = vmatpush.msra.mxu0 %v2403
        %v2405 = vand.u32 %v2348, 4294901760
        %2406 = vmatpush.msra.mxu0 %v2405
        %v2407 = vand.u32 %v2370, 4294901760
        %v2408 = vsub.f32 %v2370, %v2407
        %v2409 = vand.u32 %v2408, 4294901760
        %v2410 = vsub.f32 %v2408, %v2409
        %v2411 = vand.u32 %v2410, 4294901760
        %2412 = vmatmul.f32.gmra.mxu0 %v2411
        %v2413 = vpop.f32.mrf.mxu0
        %v2414 = vadd.f32 %v2360, %v2413
        %v2415 = vand.u32 %v2372, 4294901760
        %v2416 = vsub.f32 %v2372, %v2415
        %v2417 = vand.u32 %v2416, 4294901760
        %v2418 = vsub.f32 %v2416, %v2417
        %v2419 = vand.u32 %v2418, 4294901760
        %2420 = vmatmul.f32.gmra.mxu0 %v2419
        %v2421 = vpop.f32.mrf.mxu0
        %v2422 = vadd.f32 %v2364, %v2421
        %2423 = vdwg.mxu0
        %2424 = vmatpush.msra.mxu0 0.0
        %2425 = vmatpush.msra.mxu0 0.0
        %2426 = vmatpush.msra.mxu0 0.0
        %2427 = vmatpush.msra.mxu0 0.0
        %2428 = vmatpush.msra.mxu0 0.0
        %2429 = vmatpush.msra.mxu0 0.0
        %2430 = vmatpush.msra.mxu0 0.0
        %2431 = vmatpush.msra.mxu0 0.0
        %2432 = vmatpush.msra.mxu0 0.0
        %2433 = vmatpush.msra.mxu0 0.0
        %2434 = vmatpush.msra.mxu0 0.0
        %2435 = vmatpush.msra.mxu0 0.0
        %2436 = vmatpush.msra.mxu0 0.0
        %2437 = vmatpush.msra.mxu0 0.0
        %v2438 = vand.u32 %v2375, 4294901760
        %v2439 = vsub.f32 %v2375, %v2438
        %v2440 = vand.u32 %v2439, 4294901760
        %v2441 = vsub.f32 %v2439, %v2440
        %v2442 = vand.u32 %v2441, 4294901760
        %2443 = vmatpush.msra.mxu0 %v2442
        %v2444 = vand.u32 %v2348, 4294901760
        %v2445 = vsub.f32 %v2348, %v2444
        %v2446 = vand.u32 %v2445, 4294901760
        %v2447 = vsub.f32 %v2445, %v2446
        %v2448 = vand.u32 %v2447, 4294901760
        %2449 = vmatpush.msra.mxu0 %v2448
        %v2450 = vand.u32 %v2370, 4294901760
        %2451 = vmatmul.f32.gmra.mxu0 %v2450
        %v2452 = vpop.f32.mrf.mxu0
        %v2453 = vadd.f32 %v2414, %v2452
        %v2454 = vand.u32 %v2372, 4294901760
        %2455 = vmatmul.f32.gmra.mxu0 %v2454
        %v2456 = vpop.f32.mrf.mxu0
        %v2457 = vadd.f32 %v2422, %v2456
        %2458 = vdwg.mxu0
        %2459 = vmatpush.msra.mxu0 0.0
        %2460 = vmatpush.msra.mxu0 0.0
        %2461 = vmatpush.msra.mxu0 0.0
        %2462 = vmatpush.msra.mxu0 0.0
        %2463 = vmatpush.msra.mxu0 0.0
        %2464 = vmatpush.msra.mxu0 0.0
        %2465 = vmatpush.msra.mxu0 0.0
        %2466 = vmatpush.msra.mxu0 0.0
        %2467 = vmatpush.msra.mxu0 0.0
        %2468 = vmatpush.msra.mxu0 0.0
        %2469 = vmatpush.msra.mxu0 0.0
        %2470 = vmatpush.msra.mxu0 0.0
        %2471 = vmatpush.msra.mxu0 0.0
        %2472 = vmatpush.msra.mxu0 0.0
        %v2473 = vand.u32 %v2375, 4294901760
        %v2474 = vsub.f32 %v2375, %v2473
        %2475 = vmatpush.msra.mxu0 %v2474
        %v2476 = vand.u32 %v2348, 4294901760
        %v2477 = vsub.f32 %v2348, %v2476
        %2478 = vmatpush.msra.mxu0 %v2477
        %v2479 = vand.u32 %v2370, 4294901760
        %v2480 = vsub.f32 %v2370, %v2479
        %2481 = vmatmul.f32.gmra.mxu0 %v2480
        %v2482 = vpop.f32.mrf.mxu0
        %v2483 = vadd.f32 %v2453, %v2482
        %v2484 = vand.u32 %v2372, 4294901760
        %v2485 = vsub.f32 %v2372, %v2484
        %2486 = vmatmul.f32.gmra.mxu0 %v2485
        %v2487 = vpop.f32.mrf.mxu0
        %v2488 = vadd.f32 %v2457, %v2487
        %2489 = vdwg.mxu0
        %2490 = vmatpush.msra.mxu0 0.0
        %2491 = vmatpush.msra.mxu0 0.0
        %2492 = vmatpush.msra.mxu0 0.0
        %2493 = vmatpush.msra.mxu0 0.0
        %2494 = vmatpush.msra.mxu0 0.0
        %2495 = vmatpush.msra.mxu0 0.0
        %2496 = vmatpush.msra.mxu0 0.0
        %2497 = vmatpush.msra.mxu0 0.0
        %2498 = vmatpush.msra.mxu0 0.0
        %2499 = vmatpush.msra.mxu0 0.0
        %2500 = vmatpush.msra.mxu0 0.0
        %2501 = vmatpush.msra.mxu0 0.0
        %2502 = vmatpush.msra.mxu0 0.0
        %2503 = vmatpush.msra.mxu0 0.0
        %v2504 = vand.u32 %v2375, 4294901760
        %2505 = vmatpush.msra.mxu0 %v2504
        %v2506 = vand.u32 %v2348, 4294901760
        %2507 = vmatpush.msra.mxu0 %v2506
        %v2508 = vand.u32 %v2370, 4294901760
        %v2509 = vsub.f32 %v2370, %v2508
        %v2510 = vand.u32 %v2509, 4294901760
        %2511 = vmatmul.f32.gmra.mxu0 %v2510
        %v2512 = vpop.f32.mrf.mxu0
        %v2513 = vadd.f32 %v2483, %v2512
        %v2514 = vand.u32 %v2372, 4294901760
        %v2515 = vsub.f32 %v2372, %v2514
        %v2516 = vand.u32 %v2515, 4294901760
        %2517 = vmatmul.f32.gmra.mxu0 %v2516
        %v2518 = vpop.f32.mrf.mxu0
        %v2519 = vadd.f32 %v2488, %v2518
        %2520 = vdwg.mxu0
        %2521 = vmatpush.msra.mxu0 0.0
        %2522 = vmatpush.msra.mxu0 0.0
        %2523 = vmatpush.msra.mxu0 0.0
        %2524 = vmatpush.msra.mxu0 0.0
        %2525 = vmatpush.msra.mxu0 0.0
        %2526 = vmatpush.msra.mxu0 0.0
        %2527 = vmatpush.msra.mxu0 0.0
        %2528 = vmatpush.msra.mxu0 0.0
        %2529 = vmatpush.msra.mxu0 0.0
        %2530 = vmatpush.msra.mxu0 0.0
        %2531 = vmatpush.msra.mxu0 0.0
        %2532 = vmatpush.msra.mxu0 0.0
        %2533 = vmatpush.msra.mxu0 0.0
        %2534 = vmatpush.msra.mxu0 0.0
        %v2535 = vand.u32 %v2375, 4294901760
        %v2536 = vsub.f32 %v2375, %v2535
        %v2537 = vand.u32 %v2536, 4294901760
        %2538 = vmatpush.msra.mxu0 %v2537
        %v2539 = vand.u32 %v2348, 4294901760
        %v2540 = vsub.f32 %v2348, %v2539
        %v2541 = vand.u32 %v2540, 4294901760
        %2542 = vmatpush.msra.mxu0 %v2541
        %v2543 = vand.u32 %v2370, 4294901760
        %2544 = vmatmul.f32.gmra.mxu0 %v2543
        %v2545 = vpop.f32.mrf.mxu0
        %v2546 = vadd.f32 %v2513, %v2545
        %v2547 = vand.u32 %v2372, 4294901760
        %2548 = vmatmul.f32.gmra.mxu0 %v2547
        %v2549 = vpop.f32.mrf.mxu0
        %v2550 = vadd.f32 %v2519, %v2549
        %2551 = vdwg.mxu0
        %2552 = vmatpush.msra.mxu0 0.0
        %2553 = vmatpush.msra.mxu0 0.0
        %2554 = vmatpush.msra.mxu0 0.0
        %2555 = vmatpush.msra.mxu0 0.0
        %2556 = vmatpush.msra.mxu0 0.0
        %2557 = vmatpush.msra.mxu0 0.0
        %2558 = vmatpush.msra.mxu0 0.0
        %2559 = vmatpush.msra.mxu0 0.0
        %2560 = vmatpush.msra.mxu0 0.0
        %2561 = vmatpush.msra.mxu0 0.0
        %2562 = vmatpush.msra.mxu0 0.0
        %2563 = vmatpush.msra.mxu0 0.0
        %2564 = vmatpush.msra.mxu0 0.0
        %2565 = vmatpush.msra.mxu0 0.0
        %v2566 = vand.u32 %v2375, 4294901760
        %2567 = vmatpush.msra.mxu0 %v2566
        %v2568 = vand.u32 %v2348, 4294901760
        %2569 = vmatpush.msra.mxu0 %v2568
        %v2570 = vand.u32 %v2370, 4294901760
        %2571 = vmatmul.f32.gmra.mxu0 %v2570
        %v2572 = vpop.f32.mrf.mxu0
        %v2573 = vadd.f32 %v2546, %v2572
        %v2574 = vand.u32 %v2372, 4294901760
        %2575 = vmatmul.f32.gmra.mxu0 %v2574
        %v2576 = vpop.f32.mrf.mxu0
        %v2577 = vadd.f32 %v2550, %v2576
        %2578 = vdwg.mxu0
        %2579 = vmatpush.msra.mxu0 0.0
        %2580 = vmatpush.msra.mxu0 0.0
        %2581 = vmatpush.msra.mxu0 0.0
        %2582 = vmatpush.msra.mxu0 0.0
        %2583 = vmatpush.msra.mxu0 0.0
        %2584 = vmatpush.msra.mxu0 0.0
        %2585 = vmatpush.msra.mxu0 0.0
        %2586 = vmatpush.msra.mxu0 0.0
        %2587 = vmatpush.msra.mxu0 0.0
        %2588 = vmatpush.msra.mxu0 0.0
        %2589 = vmatpush.msra.mxu0 0.0
        %2590 = vmatpush.msra.mxu0 0.0
        %2591 = vmatpush.msra.mxu0 0.0
        %2592 = vmatpush.msra.mxu0 0.0
        %v2593 = vand.u32 %v2378, 4294901760
        %2594 = vmatpush.msra.mxu0 %v2593
        %v2595 = vand.u32 %v2349, 4294901760
        %2596 = vmatpush.msra.mxu0 %v2595
        %v2597 = vand.u32 %v2370, 4294901760
        %v2598 = vsub.f32 %v2370, %v2597
        %v2599 = vand.u32 %v2598, 4294901760
        %v2600 = vsub.f32 %v2598, %v2599
        %v2601 = vand.u32 %v2600, 4294901760
        %2602 = vmatmul.f32.gmra.mxu0 %v2601
        %v2603 = vpop.f32.mrf.mxu0
        %v2604 = vadd.f32 %v2360, %v2603
        %v2605 = vand.u32 %v2372, 4294901760
        %v2606 = vsub.f32 %v2372, %v2605
        %v2607 = vand.u32 %v2606, 4294901760
        %v2608 = vsub.f32 %v2606, %v2607
        %v2609 = vand.u32 %v2608, 4294901760
        %2610 = vmatmul.f32.gmra.mxu0 %v2609
        %v2611 = vpop.f32.mrf.mxu0
        %v2612 = vadd.f32 %v2364, %v2611
        %2613 = vdwg.mxu0
        %2614 = vmatpush.msra.mxu0 0.0
        %2615 = vmatpush.msra.mxu0 0.0
        %2616 = vmatpush.msra.mxu0 0.0
        %2617 = vmatpush.msra.mxu0 0.0
        %2618 = vmatpush.msra.mxu0 0.0
        %2619 = vmatpush.msra.mxu0 0.0
        %2620 = vmatpush.msra.mxu0 0.0
        %2621 = vmatpush.msra.mxu0 0.0
        %2622 = vmatpush.msra.mxu0 0.0
        %2623 = vmatpush.msra.mxu0 0.0
        %2624 = vmatpush.msra.mxu0 0.0
        %2625 = vmatpush.msra.mxu0 0.0
        %2626 = vmatpush.msra.mxu0 0.0
        %2627 = vmatpush.msra.mxu0 0.0
        %v2628 = vand.u32 %v2378, 4294901760
        %v2629 = vsub.f32 %v2378, %v2628
        %v2630 = vand.u32 %v2629, 4294901760
        %v2631 = vsub.f32 %v2629, %v2630
        %v2632 = vand.u32 %v2631, 4294901760
        %2633 = vmatpush.msra.mxu0 %v2632
        %v2634 = vand.u32 %v2349, 4294901760
        %v2635 = vsub.f32 %v2349, %v2634
        %v2636 = vand.u32 %v2635, 4294901760
        %v2637 = vsub.f32 %v2635, %v2636
        %v2638 = vand.u32 %v2637, 4294901760
        %2639 = vmatpush.msra.mxu0 %v2638
        %v2640 = vand.u32 %v2370, 4294901760
        %2641 = vmatmul.f32.gmra.mxu0 %v2640
        %v2642 = vpop.f32.mrf.mxu0
        %v2643 = vadd.f32 %v2604, %v2642
        %v2644 = vand.u32 %v2372, 4294901760
        %2645 = vmatmul.f32.gmra.mxu0 %v2644
        %v2646 = vpop.f32.mrf.mxu0
        %v2647 = vadd.f32 %v2612, %v2646
        %2648 = vdwg.mxu0
        %2649 = vmatpush.msra.mxu0 0.0
        %2650 = vmatpush.msra.mxu0 0.0
        %2651 = vmatpush.msra.mxu0 0.0
        %2652 = vmatpush.msra.mxu0 0.0
        %2653 = vmatpush.msra.mxu0 0.0
        %2654 = vmatpush.msra.mxu0 0.0
        %2655 = vmatpush.msra.mxu0 0.0
        %2656 = vmatpush.msra.mxu0 0.0
        %2657 = vmatpush.msra.mxu0 0.0
        %2658 = vmatpush.msra.mxu0 0.0
        %2659 = vmatpush.msra.mxu0 0.0
        %2660 = vmatpush.msra.mxu0 0.0
        %2661 = vmatpush.msra.mxu0 0.0
        %2662 = vmatpush.msra.mxu0 0.0
        %v2663 = vand.u32 %v2378, 4294901760
        %v2664 = vsub.f32 %v2378, %v2663
        %2665 = vmatpush.msra.mxu0 %v2664
        %v2666 = vand.u32 %v2349, 4294901760
        %v2667 = vsub.f32 %v2349, %v2666
        %2668 = vmatpush.msra.mxu0 %v2667
        %v2669 = vand.u32 %v2370, 4294901760
        %v2670 = vsub.f32 %v2370, %v2669
        %2671 = vmatmul.f32.gmra.mxu0 %v2670
        %v2672 = vpop.f32.mrf.mxu0
        %v2673 = vadd.f32 %v2643, %v2672
        %v2674 = vand.u32 %v2372, 4294901760
        %v2675 = vsub.f32 %v2372, %v2674
        %2676 = vmatmul.f32.gmra.mxu0 %v2675
        %v2677 = vpop.f32.mrf.mxu0
        %v2678 = vadd.f32 %v2647, %v2677
        %2679 = vdwg.mxu0
        %2680 = vmatpush.msra.mxu0 0.0
        %2681 = vmatpush.msra.mxu0 0.0
        %2682 = vmatpush.msra.mxu0 0.0
        %2683 = vmatpush.msra.mxu0 0.0
        %2684 = vmatpush.msra.mxu0 0.0
        %2685 = vmatpush.msra.mxu0 0.0
        %2686 = vmatpush.msra.mxu0 0.0
        %2687 = vmatpush.msra.mxu0 0.0
        %2688 = vmatpush.msra.mxu0 0.0
        %2689 = vmatpush.msra.mxu0 0.0
        %2690 = vmatpush.msra.mxu0 0.0
        %2691 = vmatpush.msra.mxu0 0.0
        %2692 = vmatpush.msra.mxu0 0.0
        %2693 = vmatpush.msra.mxu0 0.0
        %v2694 = vand.u32 %v2378, 4294901760
        %2695 = vmatpush.msra.mxu0 %v2694
        %v2696 = vand.u32 %v2349, 4294901760
        %2697 = vmatpush.msra.mxu0 %v2696
        %v2698 = vand.u32 %v2370, 4294901760
        %v2699 = vsub.f32 %v2370, %v2698
        %v2700 = vand.u32 %v2699, 4294901760
        %2701 = vmatmul.f32.gmra.mxu0 %v2700
        %v2702 = vpop.f32.mrf.mxu0
        %v2703 = vadd.f32 %v2673, %v2702
        %v2704 = vand.u32 %v2372, 4294901760
        %v2705 = vsub.f32 %v2372, %v2704
        %v2706 = vand.u32 %v2705, 4294901760
        %2707 = vmatmul.f32.gmra.mxu0 %v2706
        %v2708 = vpop.f32.mrf.mxu0
        %v2709 = vadd.f32 %v2678, %v2708
        %2710 = vdwg.mxu0
        %2711 = vmatpush.msra.mxu0 0.0
        %2712 = vmatpush.msra.mxu0 0.0
        %2713 = vmatpush.msra.mxu0 0.0
        %2714 = vmatpush.msra.mxu0 0.0
        %2715 = vmatpush.msra.mxu0 0.0
        %2716 = vmatpush.msra.mxu0 0.0
        %2717 = vmatpush.msra.mxu0 0.0
        %2718 = vmatpush.msra.mxu0 0.0
        %2719 = vmatpush.msra.mxu0 0.0
        %2720 = vmatpush.msra.mxu0 0.0
        %2721 = vmatpush.msra.mxu0 0.0
        %2722 = vmatpush.msra.mxu0 0.0
        %2723 = vmatpush.msra.mxu0 0.0
        %2724 = vmatpush.msra.mxu0 0.0
        %v2725 = vand.u32 %v2378, 4294901760
        %v2726 = vsub.f32 %v2378, %v2725
        %v2727 = vand.u32 %v2726, 4294901760
        %2728 = vmatpush.msra.mxu0 %v2727
        %v2729 = vand.u32 %v2349, 4294901760
        %v2730 = vsub.f32 %v2349, %v2729
        %v2731 = vand.u32 %v2730, 4294901760
        %2732 = vmatpush.msra.mxu0 %v2731
        %v2733 = vand.u32 %v2370, 4294901760
        %2734 = vmatmul.f32.gmra.mxu0 %v2733
        %v2735 = vpop.f32.mrf.mxu0
        %v2736 = vadd.f32 %v2703, %v2735
        %v2737 = vand.u32 %v2372, 4294901760
        %2738 = vmatmul.f32.gmra.mxu0 %v2737
        %v2739 = vpop.f32.mrf.mxu0
        %v2740 = vadd.f32 %v2709, %v2739
        %2741 = vdwg.mxu0
        %2742 = vmatpush.msra.mxu0 0.0
        %2743 = vmatpush.msra.mxu0 0.0
        %2744 = vmatpush.msra.mxu0 0.0
        %2745 = vmatpush.msra.mxu0 0.0
        %2746 = vmatpush.msra.mxu0 0.0
        %2747 = vmatpush.msra.mxu0 0.0
        %2748 = vmatpush.msra.mxu0 0.0
        %2749 = vmatpush.msra.mxu0 0.0
        %2750 = vmatpush.msra.mxu0 0.0
        %2751 = vmatpush.msra.mxu0 0.0
        %2752 = vmatpush.msra.mxu0 0.0
        %2753 = vmatpush.msra.mxu0 0.0
        %2754 = vmatpush.msra.mxu0 0.0
        %2755 = vmatpush.msra.mxu0 0.0
        %v2756 = vand.u32 %v2378, 4294901760
        %2757 = vmatpush.msra.mxu0 %v2756
        %v2758 = vand.u32 %v2349, 4294901760
        %2759 = vmatpush.msra.mxu0 %v2758
        %v2760 = vand.u32 %v2370, 4294901760
        %2761 = vmatmul.f32.gmra.mxu0 %v2760
        %v2762 = vpop.f32.mrf.mxu0
        %v2763 = vadd.f32 %v2736, %v2762
        %v2764 = vand.u32 %v2372, 4294901760
        %2765 = vmatmul.f32.gmra.mxu0 %v2764
        %v2766 = vpop.f32.mrf.mxu0
        %v2767 = vadd.f32 %v2740, %v2766
        %2768 = vdwg.mxu0
        %2769 = vmatpush.msra.mxu0 0.0
        %2770 = vmatpush.msra.mxu0 0.0
        %2771 = vmatpush.msra.mxu0 0.0
        %2772 = vmatpush.msra.mxu0 0.0
        %2773 = vmatpush.msra.mxu0 0.0
        %2774 = vmatpush.msra.mxu0 0.0
        %2775 = vmatpush.msra.mxu0 0.0
        %2776 = vmatpush.msra.mxu0 0.0
        %2777 = vmatpush.msra.mxu0 0.0
        %2778 = vmatpush.msra.mxu0 0.0
        %2779 = vmatpush.msra.mxu0 0.0
        %2780 = vmatpush.msra.mxu0 0.0
        %2781 = vmatpush.msra.mxu0 0.0
        %2782 = vmatpush.msra.mxu0 0.0
        %v2783 = vand.u32 %v2381, 4294901760
        %2784 = vmatpush.msra.mxu0 %v2783
        %v2785 = vand.u32 %v2350, 4294901760
        %2786 = vmatpush.msra.mxu0 %v2785
        %v2787 = vand.u32 %v2370, 4294901760
        %v2788 = vsub.f32 %v2370, %v2787
        %v2789 = vand.u32 %v2788, 4294901760
        %v2790 = vsub.f32 %v2788, %v2789
        %v2791 = vand.u32 %v2790, 4294901760
        %2792 = vmatmul.f32.gmra.mxu0 %v2791
        %v2793 = vpop.f32.mrf.mxu0
        %v2794 = vadd.f32 %v2360, %v2793
        %v2795 = vand.u32 %v2372, 4294901760
        %v2796 = vsub.f32 %v2372, %v2795
        %v2797 = vand.u32 %v2796, 4294901760
        %v2798 = vsub.f32 %v2796, %v2797
        %v2799 = vand.u32 %v2798, 4294901760
        %2800 = vmatmul.f32.gmra.mxu0 %v2799
        %v2801 = vpop.f32.mrf.mxu0
        %v2802 = vadd.f32 %v2364, %v2801
        %2803 = vdwg.mxu0
        %2804 = vmatpush.msra.mxu0 0.0
        %2805 = vmatpush.msra.mxu0 0.0
        %2806 = vmatpush.msra.mxu0 0.0
        %2807 = vmatpush.msra.mxu0 0.0
        %2808 = vmatpush.msra.mxu0 0.0
        %2809 = vmatpush.msra.mxu0 0.0
        %2810 = vmatpush.msra.mxu0 0.0
        %2811 = vmatpush.msra.mxu0 0.0
        %2812 = vmatpush.msra.mxu0 0.0
        %2813 = vmatpush.msra.mxu0 0.0
        %2814 = vmatpush.msra.mxu0 0.0
        %2815 = vmatpush.msra.mxu0 0.0
        %2816 = vmatpush.msra.mxu0 0.0
        %2817 = vmatpush.msra.mxu0 0.0
        %v2818 = vand.u32 %v2381, 4294901760
        %v2819 = vsub.f32 %v2381, %v2818
        %v2820 = vand.u32 %v2819, 4294901760
        %v2821 = vsub.f32 %v2819, %v2820
        %v2822 = vand.u32 %v2821, 4294901760
        %2823 = vmatpush.msra.mxu0 %v2822
        %v2824 = vand.u32 %v2350, 4294901760
        %v2825 = vsub.f32 %v2350, %v2824
        %v2826 = vand.u32 %v2825, 4294901760
        %v2827 = vsub.f32 %v2825, %v2826
        %v2828 = vand.u32 %v2827, 4294901760
        %2829 = vmatpush.msra.mxu0 %v2828
        %v2830 = vand.u32 %v2370, 4294901760
        %2831 = vmatmul.f32.gmra.mxu0 %v2830
        %v2832 = vpop.f32.mrf.mxu0
        %v2833 = vadd.f32 %v2794, %v2832
        %v2834 = vand.u32 %v2372, 4294901760
        %2835 = vmatmul.f32.gmra.mxu0 %v2834
        %v2836 = vpop.f32.mrf.mxu0
        %v2837 = vadd.f32 %v2802, %v2836
        %2838 = vdwg.mxu0
        %2839 = vmatpush.msra.mxu0 0.0
        %2840 = vmatpush.msra.mxu0 0.0
        %2841 = vmatpush.msra.mxu0 0.0
        %2842 = vmatpush.msra.mxu0 0.0
        %2843 = vmatpush.msra.mxu0 0.0
        %2844 = vmatpush.msra.mxu0 0.0
        %2845 = vmatpush.msra.mxu0 0.0
        %2846 = vmatpush.msra.mxu0 0.0
        %2847 = vmatpush.msra.mxu0 0.0
        %2848 = vmatpush.msra.mxu0 0.0
        %2849 = vmatpush.msra.mxu0 0.0
        %2850 = vmatpush.msra.mxu0 0.0
        %2851 = vmatpush.msra.mxu0 0.0
        %2852 = vmatpush.msra.mxu0 0.0
        %v2853 = vand.u32 %v2381, 4294901760
        %v2854 = vsub.f32 %v2381, %v2853
        %2855 = vmatpush.msra.mxu0 %v2854
        %v2856 = vand.u32 %v2350, 4294901760
        %v2857 = vsub.f32 %v2350, %v2856
        %2858 = vmatpush.msra.mxu0 %v2857
        %v2859 = vand.u32 %v2370, 4294901760
        %v2860 = vsub.f32 %v2370, %v2859
        %2861 = vmatmul.f32.gmra.mxu0 %v2860
        %v2862 = vpop.f32.mrf.mxu0
        %v2863 = vadd.f32 %v2833, %v2862
        %v2864 = vand.u32 %v2372, 4294901760
        %v2865 = vsub.f32 %v2372, %v2864
        %2866 = vmatmul.f32.gmra.mxu0 %v2865
        %v2867 = vpop.f32.mrf.mxu0
        %v2868 = vadd.f32 %v2837, %v2867
        %2869 = vdwg.mxu0
        %2870 = vmatpush.msra.mxu0 0.0
        %2871 = vmatpush.msra.mxu0 0.0
        %2872 = vmatpush.msra.mxu0 0.0
        %2873 = vmatpush.msra.mxu0 0.0
        %2874 = vmatpush.msra.mxu0 0.0
        %2875 = vmatpush.msra.mxu0 0.0
        %2876 = vmatpush.msra.mxu0 0.0
        %2877 = vmatpush.msra.mxu0 0.0
        %2878 = vmatpush.msra.mxu0 0.0
        %2879 = vmatpush.msra.mxu0 0.0
        %2880 = vmatpush.msra.mxu0 0.0
        %2881 = vmatpush.msra.mxu0 0.0
        %2882 = vmatpush.msra.mxu0 0.0
        %2883 = vmatpush.msra.mxu0 0.0
        %v2884 = vand.u32 %v2381, 4294901760
        %2885 = vmatpush.msra.mxu0 %v2884
        %v2886 = vand.u32 %v2350, 4294901760
        %2887 = vmatpush.msra.mxu0 %v2886
        %v2888 = vand.u32 %v2370, 4294901760
        %v2889 = vsub.f32 %v2370, %v2888
        %v2890 = vand.u32 %v2889, 4294901760
        %2891 = vmatmul.f32.gmra.mxu0 %v2890
        %v2892 = vpop.f32.mrf.mxu0
        %v2893 = vadd.f32 %v2863, %v2892
        %v2894 = vand.u32 %v2372, 4294901760
        %v2895 = vsub.f32 %v2372, %v2894
        %v2896 = vand.u32 %v2895, 4294901760
        %2897 = vmatmul.f32.gmra.mxu0 %v2896
        %v2898 = vpop.f32.mrf.mxu0
        %v2899 = vadd.f32 %v2868, %v2898
        %2900 = vdwg.mxu0
        %2901 = vmatpush.msra.mxu0 0.0
        %2902 = vmatpush.msra.mxu0 0.0
        %2903 = vmatpush.msra.mxu0 0.0
        %2904 = vmatpush.msra.mxu0 0.0
        %2905 = vmatpush.msra.mxu0 0.0
        %2906 = vmatpush.msra.mxu0 0.0
        %2907 = vmatpush.msra.mxu0 0.0
        %2908 = vmatpush.msra.mxu0 0.0
        %2909 = vmatpush.msra.mxu0 0.0
        %2910 = vmatpush.msra.mxu0 0.0
        %2911 = vmatpush.msra.mxu0 0.0
        %2912 = vmatpush.msra.mxu0 0.0
        %2913 = vmatpush.msra.mxu0 0.0
        %2914 = vmatpush.msra.mxu0 0.0
        %v2915 = vand.u32 %v2381, 4294901760
        %v2916 = vsub.f32 %v2381, %v2915
        %v2917 = vand.u32 %v2916, 4294901760
        %2918 = vmatpush.msra.mxu0 %v2917
        %v2919 = vand.u32 %v2350, 4294901760
        %v2920 = vsub.f32 %v2350, %v2919
        %v2921 = vand.u32 %v2920, 4294901760
        %2922 = vmatpush.msra.mxu0 %v2921
        %v2923 = vand.u32 %v2370, 4294901760
        %2924 = vmatmul.f32.gmra.mxu0 %v2923
        %v2925 = vpop.f32.mrf.mxu0
        %v2926 = vadd.f32 %v2893, %v2925
        %v2927 = vand.u32 %v2372, 4294901760
        %2928 = vmatmul.f32.gmra.mxu0 %v2927
        %v2929 = vpop.f32.mrf.mxu0
        %v2930 = vadd.f32 %v2899, %v2929
        %2931 = vdwg.mxu0
        %2932 = vmatpush.msra.mxu0 0.0
        %2933 = vmatpush.msra.mxu0 0.0
        %2934 = vmatpush.msra.mxu0 0.0
        %2935 = vmatpush.msra.mxu0 0.0
        %2936 = vmatpush.msra.mxu0 0.0
        %2937 = vmatpush.msra.mxu0 0.0
        %2938 = vmatpush.msra.mxu0 0.0
        %2939 = vmatpush.msra.mxu0 0.0
        %2940 = vmatpush.msra.mxu0 0.0
        %2941 = vmatpush.msra.mxu0 0.0
        %2942 = vmatpush.msra.mxu0 0.0
        %2943 = vmatpush.msra.mxu0 0.0
        %2944 = vmatpush.msra.mxu0 0.0
        %2945 = vmatpush.msra.mxu0 0.0
        %v2946 = vand.u32 %v2381, 4294901760
        %2947 = vmatpush.msra.mxu0 %v2946
        %v2948 = vand.u32 %v2350, 4294901760
        %2949 = vmatpush.msra.mxu0 %v2948
        %v2950 = vand.u32 %v2370, 4294901760
        %2951 = vmatmul.f32.gmra.mxu0 %v2950
        %v2952 = vpop.f32.mrf.mxu0
        %v2953 = vadd.f32 %v2926, %v2952
        %v2954 = vand.u32 %v2372, 4294901760
        %2955 = vmatmul.f32.gmra.mxu0 %v2954
        %v2956 = vpop.f32.mrf.mxu0
        %v2957 = vadd.f32 %v2930, %v2956
        %2958 = vdwg.mxu0
        %2959 = vmatpush.msra.mxu0 0.0
        %2960 = vmatpush.msra.mxu0 0.0
        %2961 = vmatpush.msra.mxu0 0.0
        %2962 = vmatpush.msra.mxu0 0.0
        %2963 = vmatpush.msra.mxu0 0.0
        %2964 = vmatpush.msra.mxu0 0.0
        %2965 = vmatpush.msra.mxu0 0.0
        %2966 = vmatpush.msra.mxu0 0.0
        %2967 = vmatpush.msra.mxu0 0.0
        %2968 = vmatpush.msra.mxu0 0.0
        %2969 = vmatpush.msra.mxu0 0.0
        %2970 = vmatpush.msra.mxu0 0.0
        %2971 = vmatpush.msra.mxu0 0.0
        %2972 = vmatpush.msra.mxu0 0.0
        %v2973 = vand.u32 %v2384, 4294901760
        %2974 = vmatpush.msra.mxu0 %v2973
        %v2975 = vand.u32 %v2351, 4294901760
        %2976 = vmatpush.msra.mxu0 %v2975
        %v2977 = vand.u32 %v2370, 4294901760
        %v2978 = vsub.f32 %v2370, %v2977
        %v2979 = vand.u32 %v2978, 4294901760
        %v2980 = vsub.f32 %v2978, %v2979
        %v2981 = vand.u32 %v2980, 4294901760
        %2982 = vmatmul.f32.gmra.mxu0 %v2981
        %v2983 = vpop.f32.mrf.mxu0
        %v2984 = vadd.f32 %v2360, %v2983
        %v2985 = vand.u32 %v2372, 4294901760
        %v2986 = vsub.f32 %v2372, %v2985
        %v2987 = vand.u32 %v2986, 4294901760
        %v2988 = vsub.f32 %v2986, %v2987
        %v2989 = vand.u32 %v2988, 4294901760
        %2990 = vmatmul.f32.gmra.mxu0 %v2989
        %v2991 = vpop.f32.mrf.mxu0
        %v2992 = vadd.f32 %v2364, %v2991
        %2993 = vdwg.mxu0
        %2994 = vmatpush.msra.mxu0 0.0
        %2995 = vmatpush.msra.mxu0 0.0
        %2996 = vmatpush.msra.mxu0 0.0
        %2997 = vmatpush.msra.mxu0 0.0
        %2998 = vmatpush.msra.mxu0 0.0
        %2999 = vmatpush.msra.mxu0 0.0
        %3000 = vmatpush.msra.mxu0 0.0
        %3001 = vmatpush.msra.mxu0 0.0
        %3002 = vmatpush.msra.mxu0 0.0
        %3003 = vmatpush.msra.mxu0 0.0
        %3004 = vmatpush.msra.mxu0 0.0
        %3005 = vmatpush.msra.mxu0 0.0
        %3006 = vmatpush.msra.mxu0 0.0
        %3007 = vmatpush.msra.mxu0 0.0
        %v3008 = vand.u32 %v2384, 4294901760
        %v3009 = vsub.f32 %v2384, %v3008
        %v3010 = vand.u32 %v3009, 4294901760
        %v3011 = vsub.f32 %v3009, %v3010
        %v3012 = vand.u32 %v3011, 4294901760
        %3013 = vmatpush.msra.mxu0 %v3012
        %v3014 = vand.u32 %v2351, 4294901760
        %v3015 = vsub.f32 %v2351, %v3014
        %v3016 = vand.u32 %v3015, 4294901760
        %v3017 = vsub.f32 %v3015, %v3016
        %v3018 = vand.u32 %v3017, 4294901760
        %3019 = vmatpush.msra.mxu0 %v3018
        %v3020 = vand.u32 %v2370, 4294901760
        %3021 = vmatmul.f32.gmra.mxu0 %v3020
        %v3022 = vpop.f32.mrf.mxu0
        %v3023 = vadd.f32 %v2984, %v3022
        %v3024 = vand.u32 %v2372, 4294901760
        %3025 = vmatmul.f32.gmra.mxu0 %v3024
        %v3026 = vpop.f32.mrf.mxu0
        %v3027 = vadd.f32 %v2992, %v3026
        %3028 = vdwg.mxu0
        %3029 = vmatpush.msra.mxu0 0.0
        %3030 = vmatpush.msra.mxu0 0.0
        %3031 = vmatpush.msra.mxu0 0.0
        %3032 = vmatpush.msra.mxu0 0.0
        %3033 = vmatpush.msra.mxu0 0.0
        %3034 = vmatpush.msra.mxu0 0.0
        %3035 = vmatpush.msra.mxu0 0.0
        %3036 = vmatpush.msra.mxu0 0.0
        %3037 = vmatpush.msra.mxu0 0.0
        %3038 = vmatpush.msra.mxu0 0.0
        %3039 = vmatpush.msra.mxu0 0.0
        %3040 = vmatpush.msra.mxu0 0.0
        %3041 = vmatpush.msra.mxu0 0.0
        %3042 = vmatpush.msra.mxu0 0.0
        %v3043 = vand.u32 %v2384, 4294901760
        %v3044 = vsub.f32 %v2384, %v3043
        %3045 = vmatpush.msra.mxu0 %v3044
        %v3046 = vand.u32 %v2351, 4294901760
        %v3047 = vsub.f32 %v2351, %v3046
        %3048 = vmatpush.msra.mxu0 %v3047
        %v3049 = vand.u32 %v2370, 4294901760
        %v3050 = vsub.f32 %v2370, %v3049
        %3051 = vmatmul.f32.gmra.mxu0 %v3050
        %v3052 = vpop.f32.mrf.mxu0
        %v3053 = vadd.f32 %v3023, %v3052
        %v3054 = vand.u32 %v2372, 4294901760
        %v3055 = vsub.f32 %v2372, %v3054
        %3056 = vmatmul.f32.gmra.mxu0 %v3055
        %v3057 = vpop.f32.mrf.mxu0
        %v3058 = vadd.f32 %v3027, %v3057
        %3059 = vdwg.mxu0
        %3060 = vmatpush.msra.mxu0 0.0
        %3061 = vmatpush.msra.mxu0 0.0
        %3062 = vmatpush.msra.mxu0 0.0
        %3063 = vmatpush.msra.mxu0 0.0
        %3064 = vmatpush.msra.mxu0 0.0
        %3065 = vmatpush.msra.mxu0 0.0
        %3066 = vmatpush.msra.mxu0 0.0
        %3067 = vmatpush.msra.mxu0 0.0
        %3068 = vmatpush.msra.mxu0 0.0
        %3069 = vmatpush.msra.mxu0 0.0
        %3070 = vmatpush.msra.mxu0 0.0
        %3071 = vmatpush.msra.mxu0 0.0
        %3072 = vmatpush.msra.mxu0 0.0
        %3073 = vmatpush.msra.mxu0 0.0
        %v3074 = vand.u32 %v2384, 4294901760
        %3075 = vmatpush.msra.mxu0 %v3074
        %v3076 = vand.u32 %v2351, 4294901760
        %3077 = vmatpush.msra.mxu0 %v3076
        %v3078 = vand.u32 %v2370, 4294901760
        %v3079 = vsub.f32 %v2370, %v3078
        %v3080 = vand.u32 %v3079, 4294901760
        %3081 = vmatmul.f32.gmra.mxu0 %v3080
        %v3082 = vpop.f32.mrf.mxu0
        %v3083 = vadd.f32 %v3053, %v3082
        %v3084 = vand.u32 %v2372, 4294901760
        %v3085 = vsub.f32 %v2372, %v3084
        %v3086 = vand.u32 %v3085, 4294901760
        %3087 = vmatmul.f32.gmra.mxu0 %v3086
        %v3088 = vpop.f32.mrf.mxu0
        %v3089 = vadd.f32 %v3058, %v3088
        %3090 = vdwg.mxu0
        %3091 = vmatpush.msra.mxu0 0.0
        %3092 = vmatpush.msra.mxu0 0.0
        %3093 = vmatpush.msra.mxu0 0.0
        %3094 = vmatpush.msra.mxu0 0.0
        %3095 = vmatpush.msra.mxu0 0.0
        %3096 = vmatpush.msra.mxu0 0.0
        %3097 = vmatpush.msra.mxu0 0.0
        %3098 = vmatpush.msra.mxu0 0.0
        %3099 = vmatpush.msra.mxu0 0.0
        %3100 = vmatpush.msra.mxu0 0.0
        %3101 = vmatpush.msra.mxu0 0.0
        %3102 = vmatpush.msra.mxu0 0.0
        %3103 = vmatpush.msra.mxu0 0.0
        %3104 = vmatpush.msra.mxu0 0.0
        %v3105 = vand.u32 %v2384, 4294901760
        %v3106 = vsub.f32 %v2384, %v3105
        %v3107 = vand.u32 %v3106, 4294901760
        %3108 = vmatpush.msra.mxu0 %v3107
        %v3109 = vand.u32 %v2351, 4294901760
        %v3110 = vsub.f32 %v2351, %v3109
        %v3111 = vand.u32 %v3110, 4294901760
        %3112 = vmatpush.msra.mxu0 %v3111
        %v3113 = vand.u32 %v2370, 4294901760
        %3114 = vmatmul.f32.gmra.mxu0 %v3113
        %v3115 = vpop.f32.mrf.mxu0
        %v3116 = vadd.f32 %v3083, %v3115
        %v3117 = vand.u32 %v2372, 4294901760
        %3118 = vmatmul.f32.gmra.mxu0 %v3117
        %v3119 = vpop.f32.mrf.mxu0
        %v3120 = vadd.f32 %v3089, %v3119
        %3121 = vdwg.mxu0
        %3122 = vmatpush.msra.mxu0 0.0
        %3123 = vmatpush.msra.mxu0 0.0
        %3124 = vmatpush.msra.mxu0 0.0
        %3125 = vmatpush.msra.mxu0 0.0
        %3126 = vmatpush.msra.mxu0 0.0
        %3127 = vmatpush.msra.mxu0 0.0
        %3128 = vmatpush.msra.mxu0 0.0
        %3129 = vmatpush.msra.mxu0 0.0
        %3130 = vmatpush.msra.mxu0 0.0
        %3131 = vmatpush.msra.mxu0 0.0
        %3132 = vmatpush.msra.mxu0 0.0
        %3133 = vmatpush.msra.mxu0 0.0
        %3134 = vmatpush.msra.mxu0 0.0
        %3135 = vmatpush.msra.mxu0 0.0
        %v3136 = vand.u32 %v2384, 4294901760
        %3137 = vmatpush.msra.mxu0 %v3136
        %v3138 = vand.u32 %v2351, 4294901760
        %3139 = vmatpush.msra.mxu0 %v3138
        %v3140 = vand.u32 %v2370, 4294901760
        %3141 = vmatmul.f32.gmra.mxu0 %v3140
        %v3142 = vpop.f32.mrf.mxu0
        %v3143 = vadd.f32 %v3116, %v3142
        %v3144 = vand.u32 %v2372, 4294901760
        %3145 = vmatmul.f32.gmra.mxu0 %v3144
        %v3146 = vpop.f32.mrf.mxu0
        %v3147 = vadd.f32 %v3120, %v3146
        %3148 = vdwg.mxu0
        %3149 = vmatpush.msra.mxu0 0.0
        %3150 = vmatpush.msra.mxu0 0.0
        %3151 = vmatpush.msra.mxu0 0.0
        %3152 = vmatpush.msra.mxu0 0.0
        %3153 = vmatpush.msra.mxu0 0.0
        %3154 = vmatpush.msra.mxu0 0.0
        %3155 = vmatpush.msra.mxu0 0.0
        %3156 = vmatpush.msra.mxu0 0.0
        %3157 = vmatpush.msra.mxu0 0.0
        %3158 = vmatpush.msra.mxu0 0.0
        %3159 = vmatpush.msra.mxu0 0.0
        %3160 = vmatpush.msra.mxu0 0.0
        %3161 = vmatpush.msra.mxu0 0.0
        %3162 = vmatpush.msra.mxu0 0.0
        %v3163 = vand.u32 %v2387, 4294901760
        %3164 = vmatpush.msra.mxu0 %v3163
        %v3165 = vand.u32 %v2352, 4294901760
        %3166 = vmatpush.msra.mxu0 %v3165
        %v3167 = vand.u32 %v2370, 4294901760
        %v3168 = vsub.f32 %v2370, %v3167
        %v3169 = vand.u32 %v3168, 4294901760
        %v3170 = vsub.f32 %v3168, %v3169
        %v3171 = vand.u32 %v3170, 4294901760
        %3172 = vmatmul.f32.gmra.mxu0 %v3171
        %v3173 = vpop.f32.mrf.mxu0
        %v3174 = vadd.f32 %v2360, %v3173
        %v3175 = vand.u32 %v2372, 4294901760
        %v3176 = vsub.f32 %v2372, %v3175
        %v3177 = vand.u32 %v3176, 4294901760
        %v3178 = vsub.f32 %v3176, %v3177
        %v3179 = vand.u32 %v3178, 4294901760
        %3180 = vmatmul.f32.gmra.mxu0 %v3179
        %v3181 = vpop.f32.mrf.mxu0
        %v3182 = vadd.f32 %v2364, %v3181
        %3183 = vdwg.mxu0
        %3184 = vmatpush.msra.mxu0 0.0
        %3185 = vmatpush.msra.mxu0 0.0
        %3186 = vmatpush.msra.mxu0 0.0
        %3187 = vmatpush.msra.mxu0 0.0
        %3188 = vmatpush.msra.mxu0 0.0
        %3189 = vmatpush.msra.mxu0 0.0
        %3190 = vmatpush.msra.mxu0 0.0
        %3191 = vmatpush.msra.mxu0 0.0
        %3192 = vmatpush.msra.mxu0 0.0
        %3193 = vmatpush.msra.mxu0 0.0
        %3194 = vmatpush.msra.mxu0 0.0
        %3195 = vmatpush.msra.mxu0 0.0
        %3196 = vmatpush.msra.mxu0 0.0
        %3197 = vmatpush.msra.mxu0 0.0
        %v3198 = vand.u32 %v2387, 4294901760
        %v3199 = vsub.f32 %v2387, %v3198
        %v3200 = vand.u32 %v3199, 4294901760
        %v3201 = vsub.f32 %v3199, %v3200
        %v3202 = vand.u32 %v3201, 4294901760
        %3203 = vmatpush.msra.mxu0 %v3202
        %v3204 = vand.u32 %v2352, 4294901760
        %v3205 = vsub.f32 %v2352, %v3204
        %v3206 = vand.u32 %v3205, 4294901760
        %v3207 = vsub.f32 %v3205, %v3206
        %v3208 = vand.u32 %v3207, 4294901760
        %3209 = vmatpush.msra.mxu0 %v3208
        %v3210 = vand.u32 %v2370, 4294901760
        %3211 = vmatmul.f32.gmra.mxu0 %v3210
        %v3212 = vpop.f32.mrf.mxu0
        %v3213 = vadd.f32 %v3174, %v3212
        %v3214 = vand.u32 %v2372, 4294901760
        %3215 = vmatmul.f32.gmra.mxu0 %v3214
        %v3216 = vpop.f32.mrf.mxu0
        %v3217 = vadd.f32 %v3182, %v3216
        %3218 = vdwg.mxu0
        %3219 = vmatpush.msra.mxu0 0.0
        %3220 = vmatpush.msra.mxu0 0.0
        %3221 = vmatpush.msra.mxu0 0.0
        %3222 = vmatpush.msra.mxu0 0.0
        %3223 = vmatpush.msra.mxu0 0.0
        %3224 = vmatpush.msra.mxu0 0.0
        %3225 = vmatpush.msra.mxu0 0.0
        %3226 = vmatpush.msra.mxu0 0.0
        %3227 = vmatpush.msra.mxu0 0.0
        %3228 = vmatpush.msra.mxu0 0.0
        %3229 = vmatpush.msra.mxu0 0.0
        %3230 = vmatpush.msra.mxu0 0.0
        %3231 = vmatpush.msra.mxu0 0.0
        %3232 = vmatpush.msra.mxu0 0.0
        %v3233 = vand.u32 %v2387, 4294901760
        %v3234 = vsub.f32 %v2387, %v3233
        %3235 = vmatpush.msra.mxu0 %v3234
        %v3236 = vand.u32 %v2352, 4294901760
        %v3237 = vsub.f32 %v2352, %v3236
        %3238 = vmatpush.msra.mxu0 %v3237
        %v3239 = vand.u32 %v2370, 4294901760
        %v3240 = vsub.f32 %v2370, %v3239
        %3241 = vmatmul.f32.gmra.mxu0 %v3240
        %v3242 = vpop.f32.mrf.mxu0
        %v3243 = vadd.f32 %v3213, %v3242
        %v3244 = vand.u32 %v2372, 4294901760
        %v3245 = vsub.f32 %v2372, %v3244
        %3246 = vmatmul.f32.gmra.mxu0 %v3245
        %v3247 = vpop.f32.mrf.mxu0
        %v3248 = vadd.f32 %v3217, %v3247
        %3249 = vdwg.mxu0
        %3250 = vmatpush.msra.mxu0 0.0
        %3251 = vmatpush.msra.mxu0 0.0
        %3252 = vmatpush.msra.mxu0 0.0
        %3253 = vmatpush.msra.mxu0 0.0
        %3254 = vmatpush.msra.mxu0 0.0
        %3255 = vmatpush.msra.mxu0 0.0
        %3256 = vmatpush.msra.mxu0 0.0
        %3257 = vmatpush.msra.mxu0 0.0
        %3258 = vmatpush.msra.mxu0 0.0
        %3259 = vmatpush.msra.mxu0 0.0
        %3260 = vmatpush.msra.mxu0 0.0
        %3261 = vmatpush.msra.mxu0 0.0
        %3262 = vmatpush.msra.mxu0 0.0
        %3263 = vmatpush.msra.mxu0 0.0
        %v3264 = vand.u32 %v2387, 4294901760
        %3265 = vmatpush.msra.mxu0 %v3264
        %v3266 = vand.u32 %v2352, 4294901760
        %3267 = vmatpush.msra.mxu0 %v3266
        %v3268 = vand.u32 %v2370, 4294901760
        %v3269 = vsub.f32 %v2370, %v3268
        %v3270 = vand.u32 %v3269, 4294901760
        %3271 = vmatmul.f32.gmra.mxu0 %v3270
        %v3272 = vpop.f32.mrf.mxu0
        %v3273 = vadd.f32 %v3243, %v3272
        %v3274 = vand.u32 %v2372, 4294901760
        %v3275 = vsub.f32 %v2372, %v3274
        %v3276 = vand.u32 %v3275, 4294901760
        %3277 = vmatmul.f32.gmra.mxu0 %v3276
        %v3278 = vpop.f32.mrf.mxu0
        %v3279 = vadd.f32 %v3248, %v3278
        %3280 = vdwg.mxu0
        %3281 = vmatpush.msra.mxu0 0.0
        %3282 = vmatpush.msra.mxu0 0.0
        %3283 = vmatpush.msra.mxu0 0.0
        %3284 = vmatpush.msra.mxu0 0.0
        %3285 = vmatpush.msra.mxu0 0.0
        %3286 = vmatpush.msra.mxu0 0.0
        %3287 = vmatpush.msra.mxu0 0.0
        %3288 = vmatpush.msra.mxu0 0.0
        %3289 = vmatpush.msra.mxu0 0.0
        %3290 = vmatpush.msra.mxu0 0.0
        %3291 = vmatpush.msra.mxu0 0.0
        %3292 = vmatpush.msra.mxu0 0.0
        %3293 = vmatpush.msra.mxu0 0.0
        %3294 = vmatpush.msra.mxu0 0.0
        %v3295 = vand.u32 %v2387, 4294901760
        %v3296 = vsub.f32 %v2387, %v3295
        %v3297 = vand.u32 %v3296, 4294901760
        %3298 = vmatpush.msra.mxu0 %v3297
        %v3299 = vand.u32 %v2352, 4294901760
        %v3300 = vsub.f32 %v2352, %v3299
        %v3301 = vand.u32 %v3300, 4294901760
        %3302 = vmatpush.msra.mxu0 %v3301
        %v3303 = vand.u32 %v2370, 4294901760
        %3304 = vmatmul.f32.gmra.mxu0 %v3303
        %v3305 = vpop.f32.mrf.mxu0
        %v3306 = vadd.f32 %v3273, %v3305
        %v3307 = vand.u32 %v2372, 4294901760
        %3308 = vmatmul.f32.gmra.mxu0 %v3307
        %v3309 = vpop.f32.mrf.mxu0
        %v3310 = vadd.f32 %v3279, %v3309
        %3311 = vdwg.mxu0
        %3312 = vmatpush.msra.mxu0 0.0
        %3313 = vmatpush.msra.mxu0 0.0
        %3314 = vmatpush.msra.mxu0 0.0
        %3315 = vmatpush.msra.mxu0 0.0
        %3316 = vmatpush.msra.mxu0 0.0
        %3317 = vmatpush.msra.mxu0 0.0
        %3318 = vmatpush.msra.mxu0 0.0
        %3319 = vmatpush.msra.mxu0 0.0
        %3320 = vmatpush.msra.mxu0 0.0
        %3321 = vmatpush.msra.mxu0 0.0
        %3322 = vmatpush.msra.mxu0 0.0
        %3323 = vmatpush.msra.mxu0 0.0
        %3324 = vmatpush.msra.mxu0 0.0
        %3325 = vmatpush.msra.mxu0 0.0
        %v3326 = vand.u32 %v2387, 4294901760
        %3327 = vmatpush.msra.mxu0 %v3326
        %v3328 = vand.u32 %v2352, 4294901760
        %3329 = vmatpush.msra.mxu0 %v3328
        %v3330 = vand.u32 %v2370, 4294901760
        %3331 = vmatmul.f32.gmra.mxu0 %v3330
        %v3332 = vpop.f32.mrf.mxu0
        %v3333 = vadd.f32 %v3306, %v3332
        %v3334 = vand.u32 %v2372, 4294901760
        %3335 = vmatmul.f32.gmra.mxu0 %v3334
        %v3336 = vpop.f32.mrf.mxu0
        %v3337 = vadd.f32 %v3310, %v3336
        %3338 = vdwg.mxu0
        %v3339 = vmax.f32 %v2573, 0.0
        %v3340 = vmax.f32 %v2763, 0.0
        %v3341 = vmax.f32 %v2953, 0.0
        %v3342 = vmax.f32 %v3143, 0.0
        %v3343 = vmax.f32 %v3333, 0.0
        %v3344 = vmax.f32 %v2577, 0.0
        %v3345 = vmax.f32 %v2767, 0.0
        %v3346 = vmax.f32 %v2957, 0.0
        %v3347 = vmax.f32 %v3147, 0.0
        %v3348 = vmax.f32 %v3337, 0.0
        %3349 = vset.pattern.permute.xlu0 33
        %3350 = vperm.xlu0 %3349, %v2297
        %v3351 = vpop.permute.xlu0 %3350
        %3353 = vset.pattern.permute.xlu0 33
        %3354 = vperm.xlu0 %3353, %v2298
        %v3355 = vpop.permute.xlu0 %3354
        %3357 = vrot.lane.b32.xlu0 %v2297, 110
        %v3358 = vpop.permute.xlu0 %3357
        %3359 = vrot.lane.b32.xlu0 %v2298, 110
        %v3360 = vpop.permute.xlu0 %3359
        %v3361 = vsel %vm250, %v3358, 0
        %v3363 = vsel %vm250, %v3360, 0
        %v3366 = vsel %vm255, %v3344, 0
        %v3369 = vsel %vm255, %v3345, 0
        %v3372 = vsel %vm255, %v3346, 0
        %v3375 = vsel %vm255, %v3347, 0
        %v3378 = vsel %vm255, %v3348, 0
        %3380 = vmatpush.msra.mxu0 0.0
        %3381 = vmatpush.msra.mxu0 0.0
        %3382 = vmatpush.msra.mxu0 0.0
        %3383 = vmatpush.msra.mxu0 0.0
        %3384 = vmatpush.msra.mxu0 0.0
        %3385 = vmatpush.msra.mxu0 0.0
        %3386 = vmatpush.msra.mxu0 0.0
        %3387 = vmatpush.msra.mxu0 0.0
        %3388 = vmatpush.msra.mxu0 0.0
        %3389 = vmatpush.msra.mxu0 0.0
        %3390 = vmatpush.msra.mxu0 0.0
        %3391 = vmatpush.msra.mxu0 0.0
        %3392 = vmatpush.msra.mxu0 0.0
        %3393 = vmatpush.msra.mxu0 0.0
        %v3394 = vand.u32 %v3366, 4294901760
        %3395 = vmatpush.msra.mxu0 %v3394
        %v3396 = vand.u32 %v3339, 4294901760
        %3397 = vmatpush.msra.mxu0 %v3396
        %v3398 = vand.u32 %v3361, 4294901760
        %v3399 = vsub.f32 %v3361, %v3398
        %v3400 = vand.u32 %v3399, 4294901760
        %v3401 = vsub.f32 %v3399, %v3400
        %v3402 = vand.u32 %v3401, 4294901760
        %3403 = vmatmul.f32.gmra.mxu0 %v3402
        %v3404 = vpop.f32.mrf.mxu0
        %v3405 = vadd.f32 %v3351, %v3404
        %v3406 = vand.u32 %v3363, 4294901760
        %v3407 = vsub.f32 %v3363, %v3406
        %v3408 = vand.u32 %v3407, 4294901760
        %v3409 = vsub.f32 %v3407, %v3408
        %v3410 = vand.u32 %v3409, 4294901760
        %3411 = vmatmul.f32.gmra.mxu0 %v3410
        %v3412 = vpop.f32.mrf.mxu0
        %v3413 = vadd.f32 %v3355, %v3412
        %3414 = vdwg.mxu0
        %3415 = vmatpush.msra.mxu0 0.0
        %3416 = vmatpush.msra.mxu0 0.0
        %3417 = vmatpush.msra.mxu0 0.0
        %3418 = vmatpush.msra.mxu0 0.0
        %3419 = vmatpush.msra.mxu0 0.0
        %3420 = vmatpush.msra.mxu0 0.0
        %3421 = vmatpush.msra.mxu0 0.0
        %3422 = vmatpush.msra.mxu0 0.0
        %3423 = vmatpush.msra.mxu0 0.0
        %3424 = vmatpush.msra.mxu0 0.0
        %3425 = vmatpush.msra.mxu0 0.0
        %3426 = vmatpush.msra.mxu0 0.0
        %3427 = vmatpush.msra.mxu0 0.0
        %3428 = vmatpush.msra.mxu0 0.0
        %v3429 = vand.u32 %v3366, 4294901760
        %v3430 = vsub.f32 %v3366, %v3429
        %v3431 = vand.u32 %v3430, 4294901760
        %v3432 = vsub.f32 %v3430, %v3431
        %v3433 = vand.u32 %v3432, 4294901760
        %3434 = vmatpush.msra.mxu0 %v3433
        %v3435 = vand.u32 %v3339, 4294901760
        %v3436 = vsub.f32 %v3339, %v3435
        %v3437 = vand.u32 %v3436, 4294901760
        %v3438 = vsub.f32 %v3436, %v3437
        %v3439 = vand.u32 %v3438, 4294901760
        %3440 = vmatpush.msra.mxu0 %v3439
        %v3441 = vand.u32 %v3361, 4294901760
        %3442 = vmatmul.f32.gmra.mxu0 %v3441
        %v3443 = vpop.f32.mrf.mxu0
        %v3444 = vadd.f32 %v3405, %v3443
        %v3445 = vand.u32 %v3363, 4294901760
        %3446 = vmatmul.f32.gmra.mxu0 %v3445
        %v3447 = vpop.f32.mrf.mxu0
        %v3448 = vadd.f32 %v3413, %v3447
        %3449 = vdwg.mxu0
        %3450 = vmatpush.msra.mxu0 0.0
        %3451 = vmatpush.msra.mxu0 0.0
        %3452 = vmatpush.msra.mxu0 0.0
        %3453 = vmatpush.msra.mxu0 0.0
        %3454 = vmatpush.msra.mxu0 0.0
        %3455 = vmatpush.msra.mxu0 0.0
        %3456 = vmatpush.msra.mxu0 0.0
        %3457 = vmatpush.msra.mxu0 0.0
        %3458 = vmatpush.msra.mxu0 0.0
        %3459 = vmatpush.msra.mxu0 0.0
        %3460 = vmatpush.msra.mxu0 0.0
        %3461 = vmatpush.msra.mxu0 0.0
        %3462 = vmatpush.msra.mxu0 0.0
        %3463 = vmatpush.msra.mxu0 0.0
        %v3464 = vand.u32 %v3366, 4294901760
        %v3465 = vsub.f32 %v3366, %v3464
        %3466 = vmatpush.msra.mxu0 %v3465
        %v3467 = vand.u32 %v3339, 4294901760
        %v3468 = vsub.f32 %v3339, %v3467
        %3469 = vmatpush.msra.mxu0 %v3468
        %v3470 = vand.u32 %v3361, 4294901760
        %v3471 = vsub.f32 %v3361, %v3470
        %3472 = vmatmul.f32.gmra.mxu0 %v3471
        %v3473 = vpop.f32.mrf.mxu0
        %v3474 = vadd.f32 %v3444, %v3473
        %v3475 = vand.u32 %v3363, 4294901760
        %v3476 = vsub.f32 %v3363, %v3475
        %3477 = vmatmul.f32.gmra.mxu0 %v3476
        %v3478 = vpop.f32.mrf.mxu0
        %v3479 = vadd.f32 %v3448, %v3478
        %3480 = vdwg.mxu0
        %3481 = vmatpush.msra.mxu0 0.0
        %3482 = vmatpush.msra.mxu0 0.0
        %3483 = vmatpush.msra.mxu0 0.0
        %3484 = vmatpush.msra.mxu0 0.0
        %3485 = vmatpush.msra.mxu0 0.0
        %3486 = vmatpush.msra.mxu0 0.0
        %3487 = vmatpush.msra.mxu0 0.0
        %3488 = vmatpush.msra.mxu0 0.0
        %3489 = vmatpush.msra.mxu0 0.0
        %3490 = vmatpush.msra.mxu0 0.0
        %3491 = vmatpush.msra.mxu0 0.0
        %3492 = vmatpush.msra.mxu0 0.0
        %3493 = vmatpush.msra.mxu0 0.0
        %3494 = vmatpush.msra.mxu0 0.0
        %v3495 = vand.u32 %v3366, 4294901760
        %3496 = vmatpush.msra.mxu0 %v3495
        %v3497 = vand.u32 %v3339, 4294901760
        %3498 = vmatpush.msra.mxu0 %v3497
        %v3499 = vand.u32 %v3361, 4294901760
        %v3500 = vsub.f32 %v3361, %v3499
        %v3501 = vand.u32 %v3500, 4294901760
        %3502 = vmatmul.f32.gmra.mxu0 %v3501
        %v3503 = vpop.f32.mrf.mxu0
        %v3504 = vadd.f32 %v3474, %v3503
        %v3505 = vand.u32 %v3363, 4294901760
        %v3506 = vsub.f32 %v3363, %v3505
        %v3507 = vand.u32 %v3506, 4294901760
        %3508 = vmatmul.f32.gmra.mxu0 %v3507
        %v3509 = vpop.f32.mrf.mxu0
        %v3510 = vadd.f32 %v3479, %v3509
        %3511 = vdwg.mxu0
        %3512 = vmatpush.msra.mxu0 0.0
        %3513 = vmatpush.msra.mxu0 0.0
        %3514 = vmatpush.msra.mxu0 0.0
        %3515 = vmatpush.msra.mxu0 0.0
        %3516 = vmatpush.msra.mxu0 0.0
        %3517 = vmatpush.msra.mxu0 0.0
        %3518 = vmatpush.msra.mxu0 0.0
        %3519 = vmatpush.msra.mxu0 0.0
        %3520 = vmatpush.msra.mxu0 0.0
        %3521 = vmatpush.msra.mxu0 0.0
        %3522 = vmatpush.msra.mxu0 0.0
        %3523 = vmatpush.msra.mxu0 0.0
        %3524 = vmatpush.msra.mxu0 0.0
        %3525 = vmatpush.msra.mxu0 0.0
        %v3526 = vand.u32 %v3366, 4294901760
        %v3527 = vsub.f32 %v3366, %v3526
        %v3528 = vand.u32 %v3527, 4294901760
        %3529 = vmatpush.msra.mxu0 %v3528
        %v3530 = vand.u32 %v3339, 4294901760
        %v3531 = vsub.f32 %v3339, %v3530
        %v3532 = vand.u32 %v3531, 4294901760
        %3533 = vmatpush.msra.mxu0 %v3532
        %v3534 = vand.u32 %v3361, 4294901760
        %3535 = vmatmul.f32.gmra.mxu0 %v3534
        %v3536 = vpop.f32.mrf.mxu0
        %v3537 = vadd.f32 %v3504, %v3536
        %v3538 = vand.u32 %v3363, 4294901760
        %3539 = vmatmul.f32.gmra.mxu0 %v3538
        %v3540 = vpop.f32.mrf.mxu0
        %v3541 = vadd.f32 %v3510, %v3540
        %3542 = vdwg.mxu0
        %3543 = vmatpush.msra.mxu0 0.0
        %3544 = vmatpush.msra.mxu0 0.0
        %3545 = vmatpush.msra.mxu0 0.0
        %3546 = vmatpush.msra.mxu0 0.0
        %3547 = vmatpush.msra.mxu0 0.0
        %3548 = vmatpush.msra.mxu0 0.0
        %3549 = vmatpush.msra.mxu0 0.0
        %3550 = vmatpush.msra.mxu0 0.0
        %3551 = vmatpush.msra.mxu0 0.0
        %3552 = vmatpush.msra.mxu0 0.0
        %3553 = vmatpush.msra.mxu0 0.0
        %3554 = vmatpush.msra.mxu0 0.0
        %3555 = vmatpush.msra.mxu0 0.0
        %3556 = vmatpush.msra.mxu0 0.0
        %v3557 = vand.u32 %v3366, 4294901760
        %3558 = vmatpush.msra.mxu0 %v3557
        %v3559 = vand.u32 %v3339, 4294901760
        %3560 = vmatpush.msra.mxu0 %v3559
        %v3561 = vand.u32 %v3361, 4294901760
        %3562 = vmatmul.f32.gmra.mxu0 %v3561
        %v3563 = vpop.f32.mrf.mxu0
        %v3564 = vadd.f32 %v3537, %v3563
        %v3565 = vand.u32 %v3363, 4294901760
        %3566 = vmatmul.f32.gmra.mxu0 %v3565
        %v3567 = vpop.f32.mrf.mxu0
        %v3568 = vadd.f32 %v3541, %v3567
        %3569 = vdwg.mxu0
        %3570 = vmatpush.msra.mxu0 0.0
        %3571 = vmatpush.msra.mxu0 0.0
        %3572 = vmatpush.msra.mxu0 0.0
        %3573 = vmatpush.msra.mxu0 0.0
        %3574 = vmatpush.msra.mxu0 0.0
        %3575 = vmatpush.msra.mxu0 0.0
        %3576 = vmatpush.msra.mxu0 0.0
        %3577 = vmatpush.msra.mxu0 0.0
        %3578 = vmatpush.msra.mxu0 0.0
        %3579 = vmatpush.msra.mxu0 0.0
        %3580 = vmatpush.msra.mxu0 0.0
        %3581 = vmatpush.msra.mxu0 0.0
        %3582 = vmatpush.msra.mxu0 0.0
        %3583 = vmatpush.msra.mxu0 0.0
        %v3584 = vand.u32 %v3369, 4294901760
        %3585 = vmatpush.msra.mxu0 %v3584
        %v3586 = vand.u32 %v3340, 4294901760
        %3587 = vmatpush.msra.mxu0 %v3586
        %v3588 = vand.u32 %v3361, 4294901760
        %v3589 = vsub.f32 %v3361, %v3588
        %v3590 = vand.u32 %v3589, 4294901760
        %v3591 = vsub.f32 %v3589, %v3590
        %v3592 = vand.u32 %v3591, 4294901760
        %3593 = vmatmul.f32.gmra.mxu0 %v3592
        %v3594 = vpop.f32.mrf.mxu0
        %v3595 = vadd.f32 %v3351, %v3594
        %v3596 = vand.u32 %v3363, 4294901760
        %v3597 = vsub.f32 %v3363, %v3596
        %v3598 = vand.u32 %v3597, 4294901760
        %v3599 = vsub.f32 %v3597, %v3598
        %v3600 = vand.u32 %v3599, 4294901760
        %3601 = vmatmul.f32.gmra.mxu0 %v3600
        %v3602 = vpop.f32.mrf.mxu0
        %v3603 = vadd.f32 %v3355, %v3602
        %3604 = vdwg.mxu0
        %3605 = vmatpush.msra.mxu0 0.0
        %3606 = vmatpush.msra.mxu0 0.0
        %3607 = vmatpush.msra.mxu0 0.0
        %3608 = vmatpush.msra.mxu0 0.0
        %3609 = vmatpush.msra.mxu0 0.0
        %3610 = vmatpush.msra.mxu0 0.0
        %3611 = vmatpush.msra.mxu0 0.0
        %3612 = vmatpush.msra.mxu0 0.0
        %3613 = vmatpush.msra.mxu0 0.0
        %3614 = vmatpush.msra.mxu0 0.0
        %3615 = vmatpush.msra.mxu0 0.0
        %3616 = vmatpush.msra.mxu0 0.0
        %3617 = vmatpush.msra.mxu0 0.0
        %3618 = vmatpush.msra.mxu0 0.0
        %v3619 = vand.u32 %v3369, 4294901760
        %v3620 = vsub.f32 %v3369, %v3619
        %v3621 = vand.u32 %v3620, 4294901760
        %v3622 = vsub.f32 %v3620, %v3621
        %v3623 = vand.u32 %v3622, 4294901760
        %3624 = vmatpush.msra.mxu0 %v3623
        %v3625 = vand.u32 %v3340, 4294901760
        %v3626 = vsub.f32 %v3340, %v3625
        %v3627 = vand.u32 %v3626, 4294901760
        %v3628 = vsub.f32 %v3626, %v3627
        %v3629 = vand.u32 %v3628, 4294901760
        %3630 = vmatpush.msra.mxu0 %v3629
        %v3631 = vand.u32 %v3361, 4294901760
        %3632 = vmatmul.f32.gmra.mxu0 %v3631
        %v3633 = vpop.f32.mrf.mxu0
        %v3634 = vadd.f32 %v3595, %v3633
        %v3635 = vand.u32 %v3363, 4294901760
        %3636 = vmatmul.f32.gmra.mxu0 %v3635
        %v3637 = vpop.f32.mrf.mxu0
        %v3638 = vadd.f32 %v3603, %v3637
        %3639 = vdwg.mxu0
        %3640 = vmatpush.msra.mxu0 0.0
        %3641 = vmatpush.msra.mxu0 0.0
        %3642 = vmatpush.msra.mxu0 0.0
        %3643 = vmatpush.msra.mxu0 0.0
        %3644 = vmatpush.msra.mxu0 0.0
        %3645 = vmatpush.msra.mxu0 0.0
        %3646 = vmatpush.msra.mxu0 0.0
        %3647 = vmatpush.msra.mxu0 0.0
        %3648 = vmatpush.msra.mxu0 0.0
        %3649 = vmatpush.msra.mxu0 0.0
        %3650 = vmatpush.msra.mxu0 0.0
        %3651 = vmatpush.msra.mxu0 0.0
        %3652 = vmatpush.msra.mxu0 0.0
        %3653 = vmatpush.msra.mxu0 0.0
        %v3654 = vand.u32 %v3369, 4294901760
        %v3655 = vsub.f32 %v3369, %v3654
        %3656 = vmatpush.msra.mxu0 %v3655
        %v3657 = vand.u32 %v3340, 4294901760
        %v3658 = vsub.f32 %v3340, %v3657
        %3659 = vmatpush.msra.mxu0 %v3658
        %v3660 = vand.u32 %v3361, 4294901760
        %v3661 = vsub.f32 %v3361, %v3660
        %3662 = vmatmul.f32.gmra.mxu0 %v3661
        %v3663 = vpop.f32.mrf.mxu0
        %v3664 = vadd.f32 %v3634, %v3663
        %v3665 = vand.u32 %v3363, 4294901760
        %v3666 = vsub.f32 %v3363, %v3665
        %3667 = vmatmul.f32.gmra.mxu0 %v3666
        %v3668 = vpop.f32.mrf.mxu0
        %v3669 = vadd.f32 %v3638, %v3668
        %3670 = vdwg.mxu0
        %3671 = vmatpush.msra.mxu0 0.0
        %3672 = vmatpush.msra.mxu0 0.0
        %3673 = vmatpush.msra.mxu0 0.0
        %3674 = vmatpush.msra.mxu0 0.0
        %3675 = vmatpush.msra.mxu0 0.0
        %3676 = vmatpush.msra.mxu0 0.0
        %3677 = vmatpush.msra.mxu0 0.0
        %3678 = vmatpush.msra.mxu0 0.0
        %3679 = vmatpush.msra.mxu0 0.0
        %3680 = vmatpush.msra.mxu0 0.0
        %3681 = vmatpush.msra.mxu0 0.0
        %3682 = vmatpush.msra.mxu0 0.0
        %3683 = vmatpush.msra.mxu0 0.0
        %3684 = vmatpush.msra.mxu0 0.0
        %v3685 = vand.u32 %v3369, 4294901760
        %3686 = vmatpush.msra.mxu0 %v3685
        %v3687 = vand.u32 %v3340, 4294901760
        %3688 = vmatpush.msra.mxu0 %v3687
        %v3689 = vand.u32 %v3361, 4294901760
        %v3690 = vsub.f32 %v3361, %v3689
        %v3691 = vand.u32 %v3690, 4294901760
        %3692 = vmatmul.f32.gmra.mxu0 %v3691
        %v3693 = vpop.f32.mrf.mxu0
        %v3694 = vadd.f32 %v3664, %v3693
        %v3695 = vand.u32 %v3363, 4294901760
        %v3696 = vsub.f32 %v3363, %v3695
        %v3697 = vand.u32 %v3696, 4294901760
        %3698 = vmatmul.f32.gmra.mxu0 %v3697
        %v3699 = vpop.f32.mrf.mxu0
        %v3700 = vadd.f32 %v3669, %v3699
        %3701 = vdwg.mxu0
        %3702 = vmatpush.msra.mxu0 0.0
        %3703 = vmatpush.msra.mxu0 0.0
        %3704 = vmatpush.msra.mxu0 0.0
        %3705 = vmatpush.msra.mxu0 0.0
        %3706 = vmatpush.msra.mxu0 0.0
        %3707 = vmatpush.msra.mxu0 0.0
        %3708 = vmatpush.msra.mxu0 0.0
        %3709 = vmatpush.msra.mxu0 0.0
        %3710 = vmatpush.msra.mxu0 0.0
        %3711 = vmatpush.msra.mxu0 0.0
        %3712 = vmatpush.msra.mxu0 0.0
        %3713 = vmatpush.msra.mxu0 0.0
        %3714 = vmatpush.msra.mxu0 0.0
        %3715 = vmatpush.msra.mxu0 0.0
        %v3716 = vand.u32 %v3369, 4294901760
        %v3717 = vsub.f32 %v3369, %v3716
        %v3718 = vand.u32 %v3717, 4294901760
        %3719 = vmatpush.msra.mxu0 %v3718
        %v3720 = vand.u32 %v3340, 4294901760
        %v3721 = vsub.f32 %v3340, %v3720
        %v3722 = vand.u32 %v3721, 4294901760
        %3723 = vmatpush.msra.mxu0 %v3722
        %v3724 = vand.u32 %v3361, 4294901760
        %3725 = vmatmul.f32.gmra.mxu0 %v3724
        %v3726 = vpop.f32.mrf.mxu0
        %v3727 = vadd.f32 %v3694, %v3726
        %v3728 = vand.u32 %v3363, 4294901760
        %3729 = vmatmul.f32.gmra.mxu0 %v3728
        %v3730 = vpop.f32.mrf.mxu0
        %v3731 = vadd.f32 %v3700, %v3730
        %3732 = vdwg.mxu0
        %3733 = vmatpush.msra.mxu0 0.0
        %3734 = vmatpush.msra.mxu0 0.0
        %3735 = vmatpush.msra.mxu0 0.0
        %3736 = vmatpush.msra.mxu0 0.0
        %3737 = vmatpush.msra.mxu0 0.0
        %3738 = vmatpush.msra.mxu0 0.0
        %3739 = vmatpush.msra.mxu0 0.0
        %3740 = vmatpush.msra.mxu0 0.0
        %3741 = vmatpush.msra.mxu0 0.0
        %3742 = vmatpush.msra.mxu0 0.0
        %3743 = vmatpush.msra.mxu0 0.0
        %3744 = vmatpush.msra.mxu0 0.0
        %3745 = vmatpush.msra.mxu0 0.0
        %3746 = vmatpush.msra.mxu0 0.0
        %v3747 = vand.u32 %v3369, 4294901760
        %3748 = vmatpush.msra.mxu0 %v3747
        %v3749 = vand.u32 %v3340, 4294901760
        %3750 = vmatpush.msra.mxu0 %v3749
        %v3751 = vand.u32 %v3361, 4294901760
        %3752 = vmatmul.f32.gmra.mxu0 %v3751
        %v3753 = vpop.f32.mrf.mxu0
        %v3754 = vadd.f32 %v3727, %v3753
        %v3755 = vand.u32 %v3363, 4294901760
        %3756 = vmatmul.f32.gmra.mxu0 %v3755
        %v3757 = vpop.f32.mrf.mxu0
        %v3758 = vadd.f32 %v3731, %v3757
        %3759 = vdwg.mxu0
        %3760 = vmatpush.msra.mxu0 0.0
        %3761 = vmatpush.msra.mxu0 0.0
        %3762 = vmatpush.msra.mxu0 0.0
        %3763 = vmatpush.msra.mxu0 0.0
        %3764 = vmatpush.msra.mxu0 0.0
        %3765 = vmatpush.msra.mxu0 0.0
        %3766 = vmatpush.msra.mxu0 0.0
        %3767 = vmatpush.msra.mxu0 0.0
        %3768 = vmatpush.msra.mxu0 0.0
        %3769 = vmatpush.msra.mxu0 0.0
        %3770 = vmatpush.msra.mxu0 0.0
        %3771 = vmatpush.msra.mxu0 0.0
        %3772 = vmatpush.msra.mxu0 0.0
        %3773 = vmatpush.msra.mxu0 0.0
        %v3774 = vand.u32 %v3372, 4294901760
        %3775 = vmatpush.msra.mxu0 %v3774
        %v3776 = vand.u32 %v3341, 4294901760
        %3777 = vmatpush.msra.mxu0 %v3776
        %v3778 = vand.u32 %v3361, 4294901760
        %v3779 = vsub.f32 %v3361, %v3778
        %v3780 = vand.u32 %v3779, 4294901760
        %v3781 = vsub.f32 %v3779, %v3780
        %v3782 = vand.u32 %v3781, 4294901760
        %3783 = vmatmul.f32.gmra.mxu0 %v3782
        %v3784 = vpop.f32.mrf.mxu0
        %v3785 = vadd.f32 %v3351, %v3784
        %v3786 = vand.u32 %v3363, 4294901760
        %v3787 = vsub.f32 %v3363, %v3786
        %v3788 = vand.u32 %v3787, 4294901760
        %v3789 = vsub.f32 %v3787, %v3788
        %v3790 = vand.u32 %v3789, 4294901760
        %3791 = vmatmul.f32.gmra.mxu0 %v3790
        %v3792 = vpop.f32.mrf.mxu0
        %v3793 = vadd.f32 %v3355, %v3792
        %3794 = vdwg.mxu0
        %3795 = vmatpush.msra.mxu0 0.0
        %3796 = vmatpush.msra.mxu0 0.0
        %3797 = vmatpush.msra.mxu0 0.0
        %3798 = vmatpush.msra.mxu0 0.0
        %3799 = vmatpush.msra.mxu0 0.0
        %3800 = vmatpush.msra.mxu0 0.0
        %3801 = vmatpush.msra.mxu0 0.0
        %3802 = vmatpush.msra.mxu0 0.0
        %3803 = vmatpush.msra.mxu0 0.0
        %3804 = vmatpush.msra.mxu0 0.0
        %3805 = vmatpush.msra.mxu0 0.0
        %3806 = vmatpush.msra.mxu0 0.0
        %3807 = vmatpush.msra.mxu0 0.0
        %3808 = vmatpush.msra.mxu0 0.0
        %v3809 = vand.u32 %v3372, 4294901760
        %v3810 = vsub.f32 %v3372, %v3809
        %v3811 = vand.u32 %v3810, 4294901760
        %v3812 = vsub.f32 %v3810, %v3811
        %v3813 = vand.u32 %v3812, 4294901760
        %3814 = vmatpush.msra.mxu0 %v3813
        %v3815 = vand.u32 %v3341, 4294901760
        %v3816 = vsub.f32 %v3341, %v3815
        %v3817 = vand.u32 %v3816, 4294901760
        %v3818 = vsub.f32 %v3816, %v3817
        %v3819 = vand.u32 %v3818, 4294901760
        %3820 = vmatpush.msra.mxu0 %v3819
        %v3821 = vand.u32 %v3361, 4294901760
        %3822 = vmatmul.f32.gmra.mxu0 %v3821
        %v3823 = vpop.f32.mrf.mxu0
        %v3824 = vadd.f32 %v3785, %v3823
        %v3825 = vand.u32 %v3363, 4294901760
        %3826 = vmatmul.f32.gmra.mxu0 %v3825
        %v3827 = vpop.f32.mrf.mxu0
        %v3828 = vadd.f32 %v3793, %v3827
        %3829 = vdwg.mxu0
        %3830 = vmatpush.msra.mxu0 0.0
        %3831 = vmatpush.msra.mxu0 0.0
        %3832 = vmatpush.msra.mxu0 0.0
        %3833 = vmatpush.msra.mxu0 0.0
        %3834 = vmatpush.msra.mxu0 0.0
        %3835 = vmatpush.msra.mxu0 0.0
        %3836 = vmatpush.msra.mxu0 0.0
        %3837 = vmatpush.msra.mxu0 0.0
        %3838 = vmatpush.msra.mxu0 0.0
        %3839 = vmatpush.msra.mxu0 0.0
        %3840 = vmatpush.msra.mxu0 0.0
        %3841 = vmatpush.msra.mxu0 0.0
        %3842 = vmatpush.msra.mxu0 0.0
        %3843 = vmatpush.msra.mxu0 0.0
        %v3844 = vand.u32 %v3372, 4294901760
        %v3845 = vsub.f32 %v3372, %v3844
        %3846 = vmatpush.msra.mxu0 %v3845
        %v3847 = vand.u32 %v3341, 4294901760
        %v3848 = vsub.f32 %v3341, %v3847
        %3849 = vmatpush.msra.mxu0 %v3848
        %v3850 = vand.u32 %v3361, 4294901760
        %v3851 = vsub.f32 %v3361, %v3850
        %3852 = vmatmul.f32.gmra.mxu0 %v3851
        %v3853 = vpop.f32.mrf.mxu0
        %v3854 = vadd.f32 %v3824, %v3853
        %v3855 = vand.u32 %v3363, 4294901760
        %v3856 = vsub.f32 %v3363, %v3855
        %3857 = vmatmul.f32.gmra.mxu0 %v3856
        %v3858 = vpop.f32.mrf.mxu0
        %v3859 = vadd.f32 %v3828, %v3858
        %3860 = vdwg.mxu0
        %3861 = vmatpush.msra.mxu0 0.0
        %3862 = vmatpush.msra.mxu0 0.0
        %3863 = vmatpush.msra.mxu0 0.0
        %3864 = vmatpush.msra.mxu0 0.0
        %3865 = vmatpush.msra.mxu0 0.0
        %3866 = vmatpush.msra.mxu0 0.0
        %3867 = vmatpush.msra.mxu0 0.0
        %3868 = vmatpush.msra.mxu0 0.0
        %3869 = vmatpush.msra.mxu0 0.0
        %3870 = vmatpush.msra.mxu0 0.0
        %3871 = vmatpush.msra.mxu0 0.0
        %3872 = vmatpush.msra.mxu0 0.0
        %3873 = vmatpush.msra.mxu0 0.0
        %3874 = vmatpush.msra.mxu0 0.0
        %v3875 = vand.u32 %v3372, 4294901760
        %3876 = vmatpush.msra.mxu0 %v3875
        %v3877 = vand.u32 %v3341, 4294901760
        %3878 = vmatpush.msra.mxu0 %v3877
        %v3879 = vand.u32 %v3361, 4294901760
        %v3880 = vsub.f32 %v3361, %v3879
        %v3881 = vand.u32 %v3880, 4294901760
        %3882 = vmatmul.f32.gmra.mxu0 %v3881
        %v3883 = vpop.f32.mrf.mxu0
        %v3884 = vadd.f32 %v3854, %v3883
        %v3885 = vand.u32 %v3363, 4294901760
        %v3886 = vsub.f32 %v3363, %v3885
        %v3887 = vand.u32 %v3886, 4294901760
        %3888 = vmatmul.f32.gmra.mxu0 %v3887
        %v3889 = vpop.f32.mrf.mxu0
        %v3890 = vadd.f32 %v3859, %v3889
        %3891 = vdwg.mxu0
        %3892 = vmatpush.msra.mxu0 0.0
        %3893 = vmatpush.msra.mxu0 0.0
        %3894 = vmatpush.msra.mxu0 0.0
        %3895 = vmatpush.msra.mxu0 0.0
        %3896 = vmatpush.msra.mxu0 0.0
        %3897 = vmatpush.msra.mxu0 0.0
        %3898 = vmatpush.msra.mxu0 0.0
        %3899 = vmatpush.msra.mxu0 0.0
        %3900 = vmatpush.msra.mxu0 0.0
        %3901 = vmatpush.msra.mxu0 0.0
        %3902 = vmatpush.msra.mxu0 0.0
        %3903 = vmatpush.msra.mxu0 0.0
        %3904 = vmatpush.msra.mxu0 0.0
        %3905 = vmatpush.msra.mxu0 0.0
        %v3906 = vand.u32 %v3372, 4294901760
        %v3907 = vsub.f32 %v3372, %v3906
        %v3908 = vand.u32 %v3907, 4294901760
        %3909 = vmatpush.msra.mxu0 %v3908
        %v3910 = vand.u32 %v3341, 4294901760
        %v3911 = vsub.f32 %v3341, %v3910
        %v3912 = vand.u32 %v3911, 4294901760
        %3913 = vmatpush.msra.mxu0 %v3912
        %v3914 = vand.u32 %v3361, 4294901760
        %3915 = vmatmul.f32.gmra.mxu0 %v3914
        %v3916 = vpop.f32.mrf.mxu0
        %v3917 = vadd.f32 %v3884, %v3916
        %v3918 = vand.u32 %v3363, 4294901760
        %3919 = vmatmul.f32.gmra.mxu0 %v3918
        %v3920 = vpop.f32.mrf.mxu0
        %v3921 = vadd.f32 %v3890, %v3920
        %3922 = vdwg.mxu0
        %3923 = vmatpush.msra.mxu0 0.0
        %3924 = vmatpush.msra.mxu0 0.0
        %3925 = vmatpush.msra.mxu0 0.0
        %3926 = vmatpush.msra.mxu0 0.0
        %3927 = vmatpush.msra.mxu0 0.0
        %3928 = vmatpush.msra.mxu0 0.0
        %3929 = vmatpush.msra.mxu0 0.0
        %3930 = vmatpush.msra.mxu0 0.0
        %3931 = vmatpush.msra.mxu0 0.0
        %3932 = vmatpush.msra.mxu0 0.0
        %3933 = vmatpush.msra.mxu0 0.0
        %3934 = vmatpush.msra.mxu0 0.0
        %3935 = vmatpush.msra.mxu0 0.0
        %3936 = vmatpush.msra.mxu0 0.0
        %v3937 = vand.u32 %v3372, 4294901760
        %3938 = vmatpush.msra.mxu0 %v3937
        %v3939 = vand.u32 %v3341, 4294901760
        %3940 = vmatpush.msra.mxu0 %v3939
        %v3941 = vand.u32 %v3361, 4294901760
        %3942 = vmatmul.f32.gmra.mxu0 %v3941
        %v3943 = vpop.f32.mrf.mxu0
        %v3944 = vadd.f32 %v3917, %v3943
        %v3945 = vand.u32 %v3363, 4294901760
        %3946 = vmatmul.f32.gmra.mxu0 %v3945
        %v3947 = vpop.f32.mrf.mxu0
        %v3948 = vadd.f32 %v3921, %v3947
        %3949 = vdwg.mxu0
        %3950 = vmatpush.msra.mxu0 0.0
        %3951 = vmatpush.msra.mxu0 0.0
        %3952 = vmatpush.msra.mxu0 0.0
        %3953 = vmatpush.msra.mxu0 0.0
        %3954 = vmatpush.msra.mxu0 0.0
        %3955 = vmatpush.msra.mxu0 0.0
        %3956 = vmatpush.msra.mxu0 0.0
        %3957 = vmatpush.msra.mxu0 0.0
        %3958 = vmatpush.msra.mxu0 0.0
        %3959 = vmatpush.msra.mxu0 0.0
        %3960 = vmatpush.msra.mxu0 0.0
        %3961 = vmatpush.msra.mxu0 0.0
        %3962 = vmatpush.msra.mxu0 0.0
        %3963 = vmatpush.msra.mxu0 0.0
        %v3964 = vand.u32 %v3375, 4294901760
        %3965 = vmatpush.msra.mxu0 %v3964
        %v3966 = vand.u32 %v3342, 4294901760
        %3967 = vmatpush.msra.mxu0 %v3966
        %v3968 = vand.u32 %v3361, 4294901760
        %v3969 = vsub.f32 %v3361, %v3968
        %v3970 = vand.u32 %v3969, 4294901760
        %v3971 = vsub.f32 %v3969, %v3970
        %v3972 = vand.u32 %v3971, 4294901760
        %3973 = vmatmul.f32.gmra.mxu0 %v3972
        %v3974 = vpop.f32.mrf.mxu0
        %v3975 = vadd.f32 %v3351, %v3974
        %v3976 = vand.u32 %v3363, 4294901760
        %v3977 = vsub.f32 %v3363, %v3976
        %v3978 = vand.u32 %v3977, 4294901760
        %v3979 = vsub.f32 %v3977, %v3978
        %v3980 = vand.u32 %v3979, 4294901760
        %3981 = vmatmul.f32.gmra.mxu0 %v3980
        %v3982 = vpop.f32.mrf.mxu0
        %v3983 = vadd.f32 %v3355, %v3982
        %3984 = vdwg.mxu0
        %3985 = vmatpush.msra.mxu0 0.0
        %3986 = vmatpush.msra.mxu0 0.0
        %3987 = vmatpush.msra.mxu0 0.0
        %3988 = vmatpush.msra.mxu0 0.0
        %3989 = vmatpush.msra.mxu0 0.0
        %3990 = vmatpush.msra.mxu0 0.0
        %3991 = vmatpush.msra.mxu0 0.0
        %3992 = vmatpush.msra.mxu0 0.0
        %3993 = vmatpush.msra.mxu0 0.0
        %3994 = vmatpush.msra.mxu0 0.0
        %3995 = vmatpush.msra.mxu0 0.0
        %3996 = vmatpush.msra.mxu0 0.0
        %3997 = vmatpush.msra.mxu0 0.0
        %3998 = vmatpush.msra.mxu0 0.0
        %v3999 = vand.u32 %v3375, 4294901760
        %v4000 = vsub.f32 %v3375, %v3999
        %v4001 = vand.u32 %v4000, 4294901760
        %v4002 = vsub.f32 %v4000, %v4001
        %v4003 = vand.u32 %v4002, 4294901760
        %4004 = vmatpush.msra.mxu0 %v4003
        %v4005 = vand.u32 %v3342, 4294901760
        %v4006 = vsub.f32 %v3342, %v4005
        %v4007 = vand.u32 %v4006, 4294901760
        %v4008 = vsub.f32 %v4006, %v4007
        %v4009 = vand.u32 %v4008, 4294901760
        %4010 = vmatpush.msra.mxu0 %v4009
        %v4011 = vand.u32 %v3361, 4294901760
        %4012 = vmatmul.f32.gmra.mxu0 %v4011
        %v4013 = vpop.f32.mrf.mxu0
        %v4014 = vadd.f32 %v3975, %v4013
        %v4015 = vand.u32 %v3363, 4294901760
        %4016 = vmatmul.f32.gmra.mxu0 %v4015
        %v4017 = vpop.f32.mrf.mxu0
        %v4018 = vadd.f32 %v3983, %v4017
        %4019 = vdwg.mxu0
        %4020 = vmatpush.msra.mxu0 0.0
        %4021 = vmatpush.msra.mxu0 0.0
        %4022 = vmatpush.msra.mxu0 0.0
        %4023 = vmatpush.msra.mxu0 0.0
        %4024 = vmatpush.msra.mxu0 0.0
        %4025 = vmatpush.msra.mxu0 0.0
        %4026 = vmatpush.msra.mxu0 0.0
        %4027 = vmatpush.msra.mxu0 0.0
        %4028 = vmatpush.msra.mxu0 0.0
        %4029 = vmatpush.msra.mxu0 0.0
        %4030 = vmatpush.msra.mxu0 0.0
        %4031 = vmatpush.msra.mxu0 0.0
        %4032 = vmatpush.msra.mxu0 0.0
        %4033 = vmatpush.msra.mxu0 0.0
        %v4034 = vand.u32 %v3375, 4294901760
        %v4035 = vsub.f32 %v3375, %v4034
        %4036 = vmatpush.msra.mxu0 %v4035
        %v4037 = vand.u32 %v3342, 4294901760
        %v4038 = vsub.f32 %v3342, %v4037
        %4039 = vmatpush.msra.mxu0 %v4038
        %v4040 = vand.u32 %v3361, 4294901760
        %v4041 = vsub.f32 %v3361, %v4040
        %4042 = vmatmul.f32.gmra.mxu0 %v4041
        %v4043 = vpop.f32.mrf.mxu0
        %v4044 = vadd.f32 %v4014, %v4043
        %v4045 = vand.u32 %v3363, 4294901760
        %v4046 = vsub.f32 %v3363, %v4045
        %4047 = vmatmul.f32.gmra.mxu0 %v4046
        %v4048 = vpop.f32.mrf.mxu0
        %v4049 = vadd.f32 %v4018, %v4048
        %4050 = vdwg.mxu0
        %4051 = vmatpush.msra.mxu0 0.0
        %4052 = vmatpush.msra.mxu0 0.0
        %4053 = vmatpush.msra.mxu0 0.0
        %4054 = vmatpush.msra.mxu0 0.0
        %4055 = vmatpush.msra.mxu0 0.0
        %4056 = vmatpush.msra.mxu0 0.0
        %4057 = vmatpush.msra.mxu0 0.0
        %4058 = vmatpush.msra.mxu0 0.0
        %4059 = vmatpush.msra.mxu0 0.0
        %4060 = vmatpush.msra.mxu0 0.0
        %4061 = vmatpush.msra.mxu0 0.0
        %4062 = vmatpush.msra.mxu0 0.0
        %4063 = vmatpush.msra.mxu0 0.0
        %4064 = vmatpush.msra.mxu0 0.0
        %v4065 = vand.u32 %v3375, 4294901760
        %4066 = vmatpush.msra.mxu0 %v4065
        %v4067 = vand.u32 %v3342, 4294901760
        %4068 = vmatpush.msra.mxu0 %v4067
        %v4069 = vand.u32 %v3361, 4294901760
        %v4070 = vsub.f32 %v3361, %v4069
        %v4071 = vand.u32 %v4070, 4294901760
        %4072 = vmatmul.f32.gmra.mxu0 %v4071
        %v4073 = vpop.f32.mrf.mxu0
        %v4074 = vadd.f32 %v4044, %v4073
        %v4075 = vand.u32 %v3363, 4294901760
        %v4076 = vsub.f32 %v3363, %v4075
        %v4077 = vand.u32 %v4076, 4294901760
        %4078 = vmatmul.f32.gmra.mxu0 %v4077
        %v4079 = vpop.f32.mrf.mxu0
        %v4080 = vadd.f32 %v4049, %v4079
        %4081 = vdwg.mxu0
        %4082 = vmatpush.msra.mxu0 0.0
        %4083 = vmatpush.msra.mxu0 0.0
        %4084 = vmatpush.msra.mxu0 0.0
        %4085 = vmatpush.msra.mxu0 0.0
        %4086 = vmatpush.msra.mxu0 0.0
        %4087 = vmatpush.msra.mxu0 0.0
        %4088 = vmatpush.msra.mxu0 0.0
        %4089 = vmatpush.msra.mxu0 0.0
        %4090 = vmatpush.msra.mxu0 0.0
        %4091 = vmatpush.msra.mxu0 0.0
        %4092 = vmatpush.msra.mxu0 0.0
        %4093 = vmatpush.msra.mxu0 0.0
        %4094 = vmatpush.msra.mxu0 0.0
        %4095 = vmatpush.msra.mxu0 0.0
        %v4096 = vand.u32 %v3375, 4294901760
        %v4097 = vsub.f32 %v3375, %v4096
        %v4098 = vand.u32 %v4097, 4294901760
        %4099 = vmatpush.msra.mxu0 %v4098
        %v4100 = vand.u32 %v3342, 4294901760
        %v4101 = vsub.f32 %v3342, %v4100
        %v4102 = vand.u32 %v4101, 4294901760
        %4103 = vmatpush.msra.mxu0 %v4102
        %v4104 = vand.u32 %v3361, 4294901760
        %4105 = vmatmul.f32.gmra.mxu0 %v4104
        %v4106 = vpop.f32.mrf.mxu0
        %v4107 = vadd.f32 %v4074, %v4106
        %v4108 = vand.u32 %v3363, 4294901760
        %4109 = vmatmul.f32.gmra.mxu0 %v4108
        %v4110 = vpop.f32.mrf.mxu0
        %v4111 = vadd.f32 %v4080, %v4110
        %4112 = vdwg.mxu0
        %4113 = vmatpush.msra.mxu0 0.0
        %4114 = vmatpush.msra.mxu0 0.0
        %4115 = vmatpush.msra.mxu0 0.0
        %4116 = vmatpush.msra.mxu0 0.0
        %4117 = vmatpush.msra.mxu0 0.0
        %4118 = vmatpush.msra.mxu0 0.0
        %4119 = vmatpush.msra.mxu0 0.0
        %4120 = vmatpush.msra.mxu0 0.0
        %4121 = vmatpush.msra.mxu0 0.0
        %4122 = vmatpush.msra.mxu0 0.0
        %4123 = vmatpush.msra.mxu0 0.0
        %4124 = vmatpush.msra.mxu0 0.0
        %4125 = vmatpush.msra.mxu0 0.0
        %4126 = vmatpush.msra.mxu0 0.0
        %v4127 = vand.u32 %v3375, 4294901760
        %4128 = vmatpush.msra.mxu0 %v4127
        %v4129 = vand.u32 %v3342, 4294901760
        %4130 = vmatpush.msra.mxu0 %v4129
        %v4131 = vand.u32 %v3361, 4294901760
        %4132 = vmatmul.f32.gmra.mxu0 %v4131
        %v4133 = vpop.f32.mrf.mxu0
        %v4134 = vadd.f32 %v4107, %v4133
        %v4135 = vand.u32 %v3363, 4294901760
        %4136 = vmatmul.f32.gmra.mxu0 %v4135
        %v4137 = vpop.f32.mrf.mxu0
        %v4138 = vadd.f32 %v4111, %v4137
        %4139 = vdwg.mxu0
        %4140 = vmatpush.msra.mxu0 0.0
        %4141 = vmatpush.msra.mxu0 0.0
        %4142 = vmatpush.msra.mxu0 0.0
        %4143 = vmatpush.msra.mxu0 0.0
        %4144 = vmatpush.msra.mxu0 0.0
        %4145 = vmatpush.msra.mxu0 0.0
        %4146 = vmatpush.msra.mxu0 0.0
        %4147 = vmatpush.msra.mxu0 0.0
        %4148 = vmatpush.msra.mxu0 0.0
        %4149 = vmatpush.msra.mxu0 0.0
        %4150 = vmatpush.msra.mxu0 0.0
        %4151 = vmatpush.msra.mxu0 0.0
        %4152 = vmatpush.msra.mxu0 0.0
        %4153 = vmatpush.msra.mxu0 0.0
        %v4154 = vand.u32 %v3378, 4294901760
        %4155 = vmatpush.msra.mxu0 %v4154
        %v4156 = vand.u32 %v3343, 4294901760
        %4157 = vmatpush.msra.mxu0 %v4156
        %v4158 = vand.u32 %v3361, 4294901760
        %v4159 = vsub.f32 %v3361, %v4158
        %v4160 = vand.u32 %v4159, 4294901760
        %v4161 = vsub.f32 %v4159, %v4160
        %v4162 = vand.u32 %v4161, 4294901760
        %4163 = vmatmul.f32.gmra.mxu0 %v4162
        %v4164 = vpop.f32.mrf.mxu0
        %v4165 = vadd.f32 %v3351, %v4164
        %v4166 = vand.u32 %v3363, 4294901760
        %v4167 = vsub.f32 %v3363, %v4166
        %v4168 = vand.u32 %v4167, 4294901760
        %v4169 = vsub.f32 %v4167, %v4168
        %v4170 = vand.u32 %v4169, 4294901760
        %4171 = vmatmul.f32.gmra.mxu0 %v4170
        %v4172 = vpop.f32.mrf.mxu0
        %v4173 = vadd.f32 %v3355, %v4172
        %4174 = vdwg.mxu0
        %4175 = vmatpush.msra.mxu0 0.0
        %4176 = vmatpush.msra.mxu0 0.0
        %4177 = vmatpush.msra.mxu0 0.0
        %4178 = vmatpush.msra.mxu0 0.0
        %4179 = vmatpush.msra.mxu0 0.0
        %4180 = vmatpush.msra.mxu0 0.0
        %4181 = vmatpush.msra.mxu0 0.0
        %4182 = vmatpush.msra.mxu0 0.0
        %4183 = vmatpush.msra.mxu0 0.0
        %4184 = vmatpush.msra.mxu0 0.0
        %4185 = vmatpush.msra.mxu0 0.0
        %4186 = vmatpush.msra.mxu0 0.0
        %4187 = vmatpush.msra.mxu0 0.0
        %4188 = vmatpush.msra.mxu0 0.0
        %v4189 = vand.u32 %v3378, 4294901760
        %v4190 = vsub.f32 %v3378, %v4189
        %v4191 = vand.u32 %v4190, 4294901760
        %v4192 = vsub.f32 %v4190, %v4191
        %v4193 = vand.u32 %v4192, 4294901760
        %4194 = vmatpush.msra.mxu0 %v4193
        %v4195 = vand.u32 %v3343, 4294901760
        %v4196 = vsub.f32 %v3343, %v4195
        %v4197 = vand.u32 %v4196, 4294901760
        %v4198 = vsub.f32 %v4196, %v4197
        %v4199 = vand.u32 %v4198, 4294901760
        %4200 = vmatpush.msra.mxu0 %v4199
        %v4201 = vand.u32 %v3361, 4294901760
        %4202 = vmatmul.f32.gmra.mxu0 %v4201
        %v4203 = vpop.f32.mrf.mxu0
        %v4204 = vadd.f32 %v4165, %v4203
        %v4205 = vand.u32 %v3363, 4294901760
        %4206 = vmatmul.f32.gmra.mxu0 %v4205
        %v4207 = vpop.f32.mrf.mxu0
        %v4208 = vadd.f32 %v4173, %v4207
        %4209 = vdwg.mxu0
        %4210 = vmatpush.msra.mxu0 0.0
        %4211 = vmatpush.msra.mxu0 0.0
        %4212 = vmatpush.msra.mxu0 0.0
        %4213 = vmatpush.msra.mxu0 0.0
        %4214 = vmatpush.msra.mxu0 0.0
        %4215 = vmatpush.msra.mxu0 0.0
        %4216 = vmatpush.msra.mxu0 0.0
        %4217 = vmatpush.msra.mxu0 0.0
        %4218 = vmatpush.msra.mxu0 0.0
        %4219 = vmatpush.msra.mxu0 0.0
        %4220 = vmatpush.msra.mxu0 0.0
        %4221 = vmatpush.msra.mxu0 0.0
        %4222 = vmatpush.msra.mxu0 0.0
        %4223 = vmatpush.msra.mxu0 0.0
        %v4224 = vand.u32 %v3378, 4294901760
        %v4225 = vsub.f32 %v3378, %v4224
        %4226 = vmatpush.msra.mxu0 %v4225
        %v4227 = vand.u32 %v3343, 4294901760
        %v4228 = vsub.f32 %v3343, %v4227
        %4229 = vmatpush.msra.mxu0 %v4228
        %v4230 = vand.u32 %v3361, 4294901760
        %v4231 = vsub.f32 %v3361, %v4230
        %4232 = vmatmul.f32.gmra.mxu0 %v4231
        %v4233 = vpop.f32.mrf.mxu0
        %v4234 = vadd.f32 %v4204, %v4233
        %v4235 = vand.u32 %v3363, 4294901760
        %v4236 = vsub.f32 %v3363, %v4235
        %4237 = vmatmul.f32.gmra.mxu0 %v4236
        %v4238 = vpop.f32.mrf.mxu0
        %v4239 = vadd.f32 %v4208, %v4238
        %4240 = vdwg.mxu0
        %4241 = vmatpush.msra.mxu0 0.0
        %4242 = vmatpush.msra.mxu0 0.0
        %4243 = vmatpush.msra.mxu0 0.0
        %4244 = vmatpush.msra.mxu0 0.0
        %4245 = vmatpush.msra.mxu0 0.0
        %4246 = vmatpush.msra.mxu0 0.0
        %4247 = vmatpush.msra.mxu0 0.0
        %4248 = vmatpush.msra.mxu0 0.0
        %4249 = vmatpush.msra.mxu0 0.0
        %4250 = vmatpush.msra.mxu0 0.0
        %4251 = vmatpush.msra.mxu0 0.0
        %4252 = vmatpush.msra.mxu0 0.0
        %4253 = vmatpush.msra.mxu0 0.0
        %4254 = vmatpush.msra.mxu0 0.0
        %v4255 = vand.u32 %v3378, 4294901760
        %4256 = vmatpush.msra.mxu0 %v4255
        %v4257 = vand.u32 %v3343, 4294901760
        %4258 = vmatpush.msra.mxu0 %v4257
        %v4259 = vand.u32 %v3361, 4294901760
        %v4260 = vsub.f32 %v3361, %v4259
        %v4261 = vand.u32 %v4260, 4294901760
        %4262 = vmatmul.f32.gmra.mxu0 %v4261
        %v4263 = vpop.f32.mrf.mxu0
        %v4264 = vadd.f32 %v4234, %v4263
        %v4265 = vand.u32 %v3363, 4294901760
        %v4266 = vsub.f32 %v3363, %v4265
        %v4267 = vand.u32 %v4266, 4294901760
        %4268 = vmatmul.f32.gmra.mxu0 %v4267
        %v4269 = vpop.f32.mrf.mxu0
        %v4270 = vadd.f32 %v4239, %v4269
        %4271 = vdwg.mxu0
        %4272 = vmatpush.msra.mxu0 0.0
        %4273 = vmatpush.msra.mxu0 0.0
        %4274 = vmatpush.msra.mxu0 0.0
        %4275 = vmatpush.msra.mxu0 0.0
        %4276 = vmatpush.msra.mxu0 0.0
        %4277 = vmatpush.msra.mxu0 0.0
        %4278 = vmatpush.msra.mxu0 0.0
        %4279 = vmatpush.msra.mxu0 0.0
        %4280 = vmatpush.msra.mxu0 0.0
        %4281 = vmatpush.msra.mxu0 0.0
        %4282 = vmatpush.msra.mxu0 0.0
        %4283 = vmatpush.msra.mxu0 0.0
        %4284 = vmatpush.msra.mxu0 0.0
        %4285 = vmatpush.msra.mxu0 0.0
        %v4286 = vand.u32 %v3378, 4294901760
        %v4287 = vsub.f32 %v3378, %v4286
        %v4288 = vand.u32 %v4287, 4294901760
        %4289 = vmatpush.msra.mxu0 %v4288
        %v4290 = vand.u32 %v3343, 4294901760
        %v4291 = vsub.f32 %v3343, %v4290
        %v4292 = vand.u32 %v4291, 4294901760
        %4293 = vmatpush.msra.mxu0 %v4292
        %v4294 = vand.u32 %v3361, 4294901760
        %4295 = vmatmul.f32.gmra.mxu0 %v4294
        %v4296 = vpop.f32.mrf.mxu0
        %v4297 = vadd.f32 %v4264, %v4296
        %v4298 = vand.u32 %v3363, 4294901760
        %4299 = vmatmul.f32.gmra.mxu0 %v4298
        %v4300 = vpop.f32.mrf.mxu0
        %v4301 = vadd.f32 %v4270, %v4300
        %4302 = vdwg.mxu0
        %4303 = vmatpush.msra.mxu0 0.0
        %4304 = vmatpush.msra.mxu0 0.0
        %4305 = vmatpush.msra.mxu0 0.0
        %4306 = vmatpush.msra.mxu0 0.0
        %4307 = vmatpush.msra.mxu0 0.0
        %4308 = vmatpush.msra.mxu0 0.0
        %4309 = vmatpush.msra.mxu0 0.0
        %4310 = vmatpush.msra.mxu0 0.0
        %4311 = vmatpush.msra.mxu0 0.0
        %4312 = vmatpush.msra.mxu0 0.0
        %4313 = vmatpush.msra.mxu0 0.0
        %4314 = vmatpush.msra.mxu0 0.0
        %4315 = vmatpush.msra.mxu0 0.0
        %4316 = vmatpush.msra.mxu0 0.0
        %v4317 = vand.u32 %v3378, 4294901760
        %4318 = vmatpush.msra.mxu0 %v4317
        %v4319 = vand.u32 %v3343, 4294901760
        %4320 = vmatpush.msra.mxu0 %v4319
        %v4321 = vand.u32 %v3361, 4294901760
        %4322 = vmatmul.f32.gmra.mxu0 %v4321
        %v4323 = vpop.f32.mrf.mxu0
        %v4324 = vadd.f32 %v4297, %v4323
        %v4325 = vand.u32 %v3363, 4294901760
        %4326 = vmatmul.f32.gmra.mxu0 %v4325
        %v4327 = vpop.f32.mrf.mxu0
        %v4328 = vadd.f32 %v4301, %v4327
        %4329 = vdwg.mxu0
        %v4330 = vtanh.pop %v3564
        %v4331 = vtanh.pop %v3754
        %v4332 = vtanh.pop %v3944
        %v4333 = vtanh.pop %v4134
        %v4334 = vtanh.pop %v4324
        %v4335 = vtanh.pop %v3568
        %v4336 = vtanh.pop %v3758
        %v4337 = vtanh.pop %v3948
        %v4338 = vtanh.pop %v4138
        %v4339 = vtanh.pop %v4328
        %4340 = vset.pattern.permute.xlu0 34
        %4341 = vperm.xlu0 %4340, %v2297
        %v4342 = vpop.permute.xlu0 %4341
        %4344 = vset.pattern.permute.xlu0 34
        %4345 = vperm.xlu0 %4344, %v2298
        %v4346 = vpop.permute.xlu0 %4345
        %v4348 = vmul.f32 %v4342, %v4330
        %v4349 = vmul.f32 %v4342, %v4331
        %v4350 = vmul.f32 %v4342, %v4332
        %v4351 = vmul.f32 %v4342, %v4333
        %v4352 = vmul.f32 %v4342, %v4334
        %v4353 = vmul.f32 %v4346, %v4335
        %v4354 = vmul.f32 %v4346, %v4336
        %v4355 = vmul.f32 %v4346, %v4337
        %v4356 = vmul.f32 %v4346, %v4338
        %v4357 = vmul.f32 %v4346, %v4339
        %v4358 = vsel %vm255, %v4353, 0.0
        %v4359 = vadd.f32 %v4348, %v4358
        %v4360 = vrot.slane %v4359, 4
        %v4361 = vadd.f32 %v4359, %v4360
        %v4362 = vrot.slane %v4361, 2
        %v4363 = vadd.f32 %v4361, %v4362
        %v4364 = vrot.slane %v4363, 1
        %v4365 = vadd.f32 %v4363, %v4364
        %v4366 = vsel %vm255, %v4354, 0.0
        %v4367 = vadd.f32 %v4349, %v4366
        %v4368 = vrot.slane %v4367, 4
        %v4369 = vadd.f32 %v4367, %v4368
        %v4370 = vrot.slane %v4369, 2
        %v4371 = vadd.f32 %v4369, %v4370
        %v4372 = vrot.slane %v4371, 1
        %v4373 = vadd.f32 %v4371, %v4372
        %v4374 = vsel %vm255, %v4355, 0.0
        %v4375 = vadd.f32 %v4350, %v4374
        %v4376 = vrot.slane %v4375, 4
        %v4377 = vadd.f32 %v4375, %v4376
        %v4378 = vrot.slane %v4377, 2
        %v4379 = vadd.f32 %v4377, %v4378
        %v4380 = vrot.slane %v4379, 1
        %v4381 = vadd.f32 %v4379, %v4380
        %v4382 = vsel %vm255, %v4356, 0.0
        %v4383 = vadd.f32 %v4351, %v4382
        %v4384 = vrot.slane %v4383, 4
        %v4385 = vadd.f32 %v4383, %v4384
        %v4386 = vrot.slane %v4385, 2
        %v4387 = vadd.f32 %v4385, %v4386
        %v4388 = vrot.slane %v4387, 1
        %v4389 = vadd.f32 %v4387, %v4388
        %v4390 = vsel %vm255, %v4357, 0.0
        %v4391 = vadd.f32 %v4352, %v4390
        %v4392 = vrot.slane %v4391, 4
        %v4393 = vadd.f32 %v4391, %v4392
        %v4394 = vrot.slane %v4393, 2
        %v4395 = vadd.f32 %v4393, %v4394
        %v4396 = vrot.slane %v4395, 1
        %v4397 = vadd.f32 %v4395, %v4396
        %4398 = vset.pattern.permute.xlu0 35
        %4399 = vperm.xlu0 %4398, %v2297
        %v4400 = vpop.permute.xlu0 %4399
        %v4402 = vadd.f32 %v4365, %v4400
        %v4403 = vadd.f32 %v4373, %v4400
        %v4404 = vadd.f32 %v4381, %v4400
        %v4405 = vadd.f32 %v4389, %v4400
        %v4406 = vadd.f32 %v4397, %v4400
        %v4407 = vtanh.pop %v4402
        %v4408 = vtanh.pop %v4403
        %v4409 = vtanh.pop %v4404
        %v4410 = vtanh.pop %v4405
        %v4411 = vtanh.pop %v4406
        %s4412 = sadd.s32 %s20, %s21
        %s4413 = smul.u32 %s4412, 640
        %s4414 = sadd.s32 %s4413, 640
        %p4415 = scmp.le.s32.totalorder %s4414, 600
        // Predicated region
        $region33: #{tpu_custom_call.1} parent=27 // pred_check
          %p4416 = pneg %p4415
        $region34: #{tpu_custom_call.1} parent=27 // pred_check_branch
          %4418 = sbr.rel (%p4416) target = $region36
        $region35: #{tpu_custom_call.1} parent=27 // pred_region
          %v4419 = vld [vmem:[#allocation2] sm:$0x1f]
          %v4425 = vrot.slane %v2290, 7
          %v4426 = vrot.slane %v2291, 6
          %v4427 = vrot.slane %v2292, 5
          %v4428 = vrot.slane %v2293, 4
          %vm4429 = vcmask 1040384
          %v4430 = vsel %vm4429, %v2289, %v4425
          %vm4431 = vcmask 1041408
          %v4432 = vsel %vm4431, %v4430, %v4426
          %vm4433 = vcmask 1043459
          %v4434 = vsel %vm4433, %v4427, %v4428
          %vm4435 = vcmask 1042432
          %v4436 = vsel %vm4435, %v4432, %v4434
          %v4438 = vadd.f32 %v4419, %v4436
          %v4439 = vlaneseq
          %vm4440 = vcmp.ge.s32.totalorder %v4439, 0
          %vm4441 = vcmp.lt.s32.totalorder %v4439, 640
          %vm4442 = vmand %vm4440, %vm4441
          %4443 = vst.msk [vmem:[#allocation2] sm:$0x1f] %vm4442, %v4438
          %v4444 = vld [vmem:[#allocation3] sm:$0x1f]
          %v4450 = vrot.slane %v4408, 7
          %v4451 = vrot.slane %v4409, 6
          %v4452 = vrot.slane %v4410, 5
          %v4453 = vrot.slane %v4411, 4
          %v4454 = vsel %vm4429, %v4407, %v4450
          %v4455 = vsel %vm4431, %v4454, %v4451
          %v4456 = vsel %vm4433, %v4452, %v4453
          %v4457 = vsel %vm4435, %v4455, %v4456
          %v4459 = vadd.f32 %v4444, %v4457
          %4460 = vst.msk [vmem:[#allocation3] sm:$0x1f] %vm4442, %v4459
          %v4461 = vld [vmem:[#allocation4] sm:$0x1f]
          %v4462 = vmul.f32 %v2289, %v2289
          %v4463 = vmul.f32 %v2290, %v2290
          %v4464 = vmul.f32 %v2291, %v2291
          %v4465 = vmul.f32 %v2292, %v2292
          %v4466 = vmul.f32 %v2293, %v2293
          %v4472 = vrot.slane %v4463, 7
          %v4473 = vrot.slane %v4464, 6
          %v4474 = vrot.slane %v4465, 5
          %v4475 = vrot.slane %v4466, 4
          %v4476 = vsel %vm4429, %v4462, %v4472
          %v4477 = vsel %vm4431, %v4476, %v4473
          %v4478 = vsel %vm4433, %v4474, %v4475
          %v4479 = vsel %vm4435, %v4477, %v4478
          %v4481 = vadd.f32 %v4461, %v4479
          %4482 = vst.msk [vmem:[#allocation4] sm:$0x1f] %vm4442, %v4481
          %v4483 = vld [vmem:[#allocation5] sm:$0x1f]
          %v4484 = vmul.f32 %v4407, %v4407
          %v4485 = vmul.f32 %v4408, %v4408
          %v4486 = vmul.f32 %v4409, %v4409
          %v4487 = vmul.f32 %v4410, %v4410
          %v4488 = vmul.f32 %v4411, %v4411
          %v4494 = vrot.slane %v4485, 7
          %v4495 = vrot.slane %v4486, 6
          %v4496 = vrot.slane %v4487, 5
          %v4497 = vrot.slane %v4488, 4
          %v4498 = vsel %vm4429, %v4484, %v4494
          %v4499 = vsel %vm4431, %v4498, %v4495
          %v4500 = vsel %vm4433, %v4496, %v4497
          %v4501 = vsel %vm4435, %v4499, %v4500
          %v4503 = vadd.f32 %v4483, %v4501
          %4504 = vst.msk [vmem:[#allocation5] sm:$0x1f] %vm4442, %v4503
          %v4505 = vld [vmem:[#allocation6] sm:$0x1f]
          %v4506 = vmul.f32 %v2289, %v4407
          %v4507 = vmul.f32 %v2290, %v4408
          %v4508 = vmul.f32 %v2291, %v4409
          %v4509 = vmul.f32 %v2292, %v4410
          %v4510 = vmul.f32 %v2293, %v4411
          %v4516 = vrot.slane %v4507, 7
          %v4517 = vrot.slane %v4508, 6
          %v4518 = vrot.slane %v4509, 5
          %v4519 = vrot.slane %v4510, 4
          %v4520 = vsel %vm4429, %v4506, %v4516
          %v4521 = vsel %vm4431, %v4520, %v4517
          %v4522 = vsel %vm4433, %v4518, %v4519
          %v4523 = vsel %vm4435, %v4521, %v4522
          %v4525 = vadd.f32 %v4505, %v4523
          %4526 = vst.msk [vmem:[#allocation6] sm:$0x1f] %vm4442, %v4525
        $region36: #{tpu_custom_call.1} parent=27 // pred_fallthru
          _
        %p4527 = scmp.gt.s32.totalorder %s4414, 600
        // Predicated region
        $region37: #{tpu_custom_call.1} parent=27 // pred_check
          %p4528 = pneg %p4527
        $region38: #{tpu_custom_call.1} parent=27 // pred_check_branch
          %4530 = sbr.rel (%p4528) target = $region40
        $region39: #{tpu_custom_call.1} parent=27 // pred_region
          %v4531 = vlaneseq
          %v4532 = vand.u32 %v4531, 127
          %v4533 = vadd.s32 %v4532, 128
          %v4534 = vadd.s32 %v4532, 256
          %v4535 = vadd.s32 %v4532, 384
          %v4536 = vadd.s32 %v4532, 512
          %v4537 = vstv %s4413
          %v4538 = vadd.s32 %v4537, %v4532
          %v4539 = vadd.s32 %v4537, %v4533
          %v4540 = vadd.s32 %v4537, %v4534
          %v4541 = vadd.s32 %v4537, %v4535
          %v4542 = vadd.s32 %v4537, %v4536
          %vm4543 = vcmp.lt.s32.totalorder %v4538, 600
          %vm4544 = vcmp.lt.s32.totalorder %v4539, 600
          %vm4545 = vcmp.lt.s32.totalorder %v4540, 600
          %vm4546 = vcmp.lt.s32.totalorder %v4541, 600
          %vm4547 = vcmp.lt.s32.totalorder %v4542, 600
          %v4548 = vsel %vm4543, %v2289, 0.0
          %v4549 = vsel %vm4544, %v2290, 0.0
          %v4550 = vsel %vm4545, %v2291, 0.0
          %v4551 = vsel %vm4546, %v2292, 0.0
          %v4552 = vsel %vm4547, %v2293, 0.0
          %v4553 = vsel %vm4543, %v4407, 0.0
          %v4554 = vsel %vm4544, %v4408, 0.0
          %v4555 = vsel %vm4545, %v4409, 0.0
          %v4556 = vsel %vm4546, %v4410, 0.0
          %v4557 = vsel %vm4547, %v4411, 0.0
          %v4558 = vld [vmem:[#allocation2] sm:$0x1f]
          %v4564 = vrot.slane %v4549, 7
          %v4565 = vrot.slane %v4550, 6
          %v4566 = vrot.slane %v4551, 5
          %v4567 = vrot.slane %v4552, 4
          %vm4568 = vcmask 1040384
          %v4569 = vsel %vm4568, %v4548, %v4564
          %vm4570 = vcmask 1041408
          %v4571 = vsel %vm4570, %v4569, %v4565
          %vm4572 = vcmask 1043459
          %v4573 = vsel %vm4572, %v4566, %v4567
          %vm4574 = vcmask 1042432
          %v4575 = vsel %vm4574, %v4571, %v4573
          %v4577 = vadd.f32 %v4558, %v4575
          %v4578 = vlaneseq
          %vm4579 = vcmp.ge.s32.totalorder %v4578, 0
          %vm4580 = vcmp.lt.s32.totalorder %v4578, 640
          %vm4581 = vmand %vm4579, %vm4580
          %4582 = vst.msk [vmem:[#allocation2] sm:$0x1f] %vm4581, %v4577
          %v4583 = vld [vmem:[#allocation3] sm:$0x1f]
          %v4589 = vrot.slane %v4554, 7
          %v4590 = vrot.slane %v4555, 6
          %v4591 = vrot.slane %v4556, 5
          %v4592 = vrot.slane %v4557, 4
          %v4593 = vsel %vm4568, %v4553, %v4589
          %v4594 = vsel %vm4570, %v4593, %v4590
          %v4595 = vsel %vm4572, %v4591, %v4592
          %v4596 = vsel %vm4574, %v4594, %v4595
          %v4598 = vadd.f32 %v4583, %v4596
          %4599 = vst.msk [vmem:[#allocation3] sm:$0x1f] %vm4581, %v4598
          %v4600 = vld [vmem:[#allocation4] sm:$0x1f]
          %v4601 = vmul.f32 %v4548, %v4548
          %v4602 = vmul.f32 %v4549, %v4549
          %v4603 = vmul.f32 %v4550, %v4550
          %v4604 = vmul.f32 %v4551, %v4551
          %v4605 = vmul.f32 %v4552, %v4552
          %v4611 = vrot.slane %v4602, 7
          %v4612 = vrot.slane %v4603, 6
          %v4613 = vrot.slane %v4604, 5
          %v4614 = vrot.slane %v4605, 4
          %v4615 = vsel %vm4568, %v4601, %v4611
          %v4616 = vsel %vm4570, %v4615, %v4612
          %v4617 = vsel %vm4572, %v4613, %v4614
          %v4618 = vsel %vm4574, %v4616, %v4617
          %v4620 = vadd.f32 %v4600, %v4618
          %4621 = vst.msk [vmem:[#allocation4] sm:$0x1f] %vm4581, %v4620
          %v4622 = vld [vmem:[#allocation5] sm:$0x1f]
          %v4623 = vmul.f32 %v4553, %v4553
          %v4624 = vmul.f32 %v4554, %v4554
          %v4625 = vmul.f32 %v4555, %v4555
          %v4626 = vmul.f32 %v4556, %v4556
          %v4627 = vmul.f32 %v4557, %v4557
          %v4633 = vrot.slane %v4624, 7
          %v4634 = vrot.slane %v4625, 6
          %v4635 = vrot.slane %v4626, 5
          %v4636 = vrot.slane %v4627, 4
          %v4637 = vsel %vm4568, %v4623, %v4633
          %v4638 = vsel %vm4570, %v4637, %v4634
          %v4639 = vsel %vm4572, %v4635, %v4636
          %v4640 = vsel %vm4574, %v4638, %v4639
          %v4642 = vadd.f32 %v4622, %v4640
          %4643 = vst.msk [vmem:[#allocation5] sm:$0x1f] %vm4581, %v4642
          %v4644 = vld [vmem:[#allocation6] sm:$0x1f]
          %v4645 = vmul.f32 %v4548, %v4553
          %v4646 = vmul.f32 %v4549, %v4554
          %v4647 = vmul.f32 %v4550, %v4555
          %v4648 = vmul.f32 %v4551, %v4556
          %v4649 = vmul.f32 %v4552, %v4557
          %v4655 = vrot.slane %v4646, 7
          %v4656 = vrot.slane %v4647, 6
          %v4657 = vrot.slane %v4648, 5
          %v4658 = vrot.slane %v4649, 4
          %v4659 = vsel %vm4568, %v4645, %v4655
          %v4660 = vsel %vm4570, %v4659, %v4656
          %v4661 = vsel %vm4572, %v4657, %v4658
          %v4662 = vsel %vm4574, %v4660, %v4661
          %v4664 = vadd.f32 %v4644, %v4662
          %4665 = vst.msk [vmem:[#allocation6] sm:$0x1f] %vm4581, %v4664
        $region40: #{tpu_custom_call.1} parent=27 // pred_fallthru
          _
        // Predicated region
        $region41: #{tpu_custom_call.1} parent=27 // pred_check
          %p4666 = pneg %p163
        $region42: #{tpu_custom_call.1} parent=27 // pred_check_branch
          %4668 = sbr.rel (%p4666) target = $region44
        $region43: #{tpu_custom_call.1} parent=27 // pred_region
          %v4669 = vld [vmem:[#allocation2] sm:$0x1f]
          %v4671 = vperm.slane %v4669, 0
          %v4672 = vperm.slane %v4669, 1
          %v4673 = vperm.slane %v4669, 2
          %v4674 = vperm.slane %v4669, 3
          %v4675 = vperm.slane %v4669, 4
          %vm4681 = vcmask 1040384
          %v4682 = vsel %vm4681, %v4671, 0.0
          %v4683 = vsel %vm4681, %v4672, 0.0
          %v4684 = vadd.f32 %v4682, %v4683
          %v4685 = vsel %vm4681, %v4673, 0.0
          %v4686 = vadd.f32 %v4684, %v4685
          %v4687 = vsel %vm4681, %v4674, 0.0
          %v4688 = vadd.f32 %v4686, %v4687
          %v4689 = vsel %vm4681, %v4675, 0.0
          %v4690 = vadd.f32 %v4688, %v4689
          %4691 = vadd.xlane.f32.xlu0 %v4690
          %v4692 = vpop.xlane.xlu0 %4691
          %v4693 = vld [vmem:[#allocation3] sm:$0x1f]
          %v4695 = vperm.slane %v4693, 0
          %v4696 = vperm.slane %v4693, 1
          %v4697 = vperm.slane %v4693, 2
          %v4698 = vperm.slane %v4693, 3
          %v4699 = vperm.slane %v4693, 4
          %v4705 = vsel %vm4681, %v4695, 0.0
          %v4706 = vsel %vm4681, %v4696, 0.0
          %v4707 = vadd.f32 %v4705, %v4706
          %v4708 = vsel %vm4681, %v4697, 0.0
          %v4709 = vadd.f32 %v4707, %v4708
          %v4710 = vsel %vm4681, %v4698, 0.0
          %v4711 = vadd.f32 %v4709, %v4710
          %v4712 = vsel %vm4681, %v4699, 0.0
          %v4713 = vadd.f32 %v4711, %v4712
          %4714 = vadd.xlane.f32.xlu0 %v4713
          %v4715 = vpop.xlane.xlu0 %4714
          %v4716 = vld [vmem:[#allocation4] sm:$0x1f]
          %v4718 = vperm.slane %v4716, 0
          %v4719 = vperm.slane %v4716, 1
          %v4720 = vperm.slane %v4716, 2
          %v4721 = vperm.slane %v4716, 3
          %v4722 = vperm.slane %v4716, 4
          %v4728 = vsel %vm4681, %v4718, 0.0
          %v4729 = vsel %vm4681, %v4719, 0.0
          %v4730 = vadd.f32 %v4728, %v4729
          %v4731 = vsel %vm4681, %v4720, 0.0
          %v4732 = vadd.f32 %v4730, %v4731
          %v4733 = vsel %vm4681, %v4721, 0.0
          %v4734 = vadd.f32 %v4732, %v4733
          %v4735 = vsel %vm4681, %v4722, 0.0
          %v4736 = vadd.f32 %v4734, %v4735
          %4737 = vadd.xlane.f32.xlu0 %v4736
          %v4738 = vpop.xlane.xlu0 %4737
          %v4739 = vld [vmem:[#allocation5] sm:$0x1f]
          %v4741 = vperm.slane %v4739, 0
          %v4742 = vperm.slane %v4739, 1
          %v4743 = vperm.slane %v4739, 2
          %v4744 = vperm.slane %v4739, 3
          %v4745 = vperm.slane %v4739, 4
          %v4751 = vsel %vm4681, %v4741, 0.0
          %v4752 = vsel %vm4681, %v4742, 0.0
          %v4753 = vadd.f32 %v4751, %v4752
          %v4754 = vsel %vm4681, %v4743, 0.0
          %v4755 = vadd.f32 %v4753, %v4754
          %v4756 = vsel %vm4681, %v4744, 0.0
          %v4757 = vadd.f32 %v4755, %v4756
          %v4758 = vsel %vm4681, %v4745, 0.0
          %v4759 = vadd.f32 %v4757, %v4758
          %4760 = vadd.xlane.f32.xlu0 %v4759
          %v4761 = vpop.xlane.xlu0 %4760
          %v4762 = vld [vmem:[#allocation6] sm:$0x1f]
          %v4764 = vperm.slane %v4762, 0
          %v4765 = vperm.slane %v4762, 1
          %v4766 = vperm.slane %v4762, 2
          %v4767 = vperm.slane %v4762, 3
          %v4768 = vperm.slane %v4762, 4
          %v4774 = vsel %vm4681, %v4764, 0.0
          %v4775 = vsel %vm4681, %v4765, 0.0
          %v4776 = vadd.f32 %v4774, %v4775
          %v4777 = vsel %vm4681, %v4766, 0.0
          %v4778 = vadd.f32 %v4776, %v4777
          %v4779 = vsel %vm4681, %v4767, 0.0
          %v4780 = vadd.f32 %v4778, %v4779
          %v4781 = vsel %vm4681, %v4768, 0.0
          %v4782 = vadd.f32 %v4780, %v4781
          %4783 = vadd.xlane.f32.xlu0 %v4782
          %v4784 = vpop.xlane.xlu0 %4783
          %v4785 = vlaneseq
          %v4786 = vshrl.u32 %v4785, 7
          %v4787 = vlaneseq
          %v4788 = vand.u32 %v4787, 127
          %vm4789 = vcmp.eq.s32.totalorder %v4786, 0
          %vm4790 = vcmp.eq.s32.totalorder %v4788, 0
          %vm4791 = vmand %vm4789, %vm4790
          %v4792 = vperm.slane %v4692, 0
          %v4793 = vsel %vm4791, %v4792, 0.0
          %vm4794 = vcmp.eq.s32.totalorder %v4788, 1
          %vm4795 = vmand %vm4789, %vm4794
          %v4796 = vperm.slane %v4715, 0
          %v4797 = vsel %vm4795, %v4796, 0.0
          %v4798 = vadd.f32 %v4793, %v4797
          %vm4799 = vcmp.eq.s32.totalorder %v4788, 2
          %vm4800 = vmand %vm4789, %vm4799
          %v4801 = vperm.slane %v4738, 0
          %v4802 = vsel %vm4800, %v4801, 0.0
          %v4803 = vadd.f32 %v4798, %v4802
          %vm4804 = vcmp.eq.s32.totalorder %v4788, 3
          %vm4805 = vmand %vm4789, %vm4804
          %v4806 = vperm.slane %v4761, 0
          %v4807 = vsel %vm4805, %v4806, 0.0
          %v4808 = vadd.f32 %v4803, %v4807
          %vm4809 = vcmp.eq.s32.totalorder %v4788, 4
          %vm4810 = vmand %vm4789, %vm4809
          %v4811 = vperm.slane %v4784, 0
          %v4812 = vsel %vm4810, %v4811, 0.0
          %v4813 = vadd.f32 %v4808, %v4812
          %4814 = vst [vmem:[%s154] sm:$0xff] %v4813
        $region44: #{tpu_custom_call.1} parent=27 // pred_fallthru
          _
        %s4815 = sand.u32 %s85, 1
        %s4816 = scalar_lea.sflag [#allocation8], %s4815
        %s4817 = sand.u32 %s85, 1
        %s4818 = smul.addr %s4817, 8
        %s4819 = scalar_lea.vmem [#allocation7], %s4818
        // Predicated region
        $region45: #{tpu_custom_call.1} parent=27 // pred_check
          %p4820 = pneg %p95
        $region46: #{tpu_custom_call.1} parent=27 // pred_check_branch
          %4822 = sbr.rel (%p4820) target = $region48
        $region47: #{tpu_custom_call.1} parent=27 // pred_region
          %4824 = vsyncadd %s4816, 0
          %s4825 = smul.addr %s20, 8
          %s4826 = scalar_lea.hbm %s2, %s4825
          %s4828 = sshll.u32 %s4819, 4
          %s4829 = int_to_ptr.vmem [resolvable:$true] %s4828
          %s4830 = sshll.u32 %s4826, 4
          %s4831 = int_to_ptr.hbm [resolvable:$true] %s4830
          %4833 = dma.vmem_to_hbm [thread:$0]  %s4829, 128, %s4831, %s4816
        $region48: #{tpu_custom_call.1} parent=27 // pred_fallthru
          _
      $region28: #{tpu_custom_call.1} parent=5 // pred_fallthru
        _
      %p4834 = scmp.le.s32.totalorder 2, %s11
      // Predicated region
      $region49: #{tpu_custom_call.1} parent=5 // pred_check
        %p4835 = pneg %p4834
      $region50: #{tpu_custom_call.1} parent=5 // pred_check_branch
        %4837 = sbr.rel (%p4835) target = $region52
      $region51: #{tpu_custom_call.1} parent=5 // pred_region
        %s4838 = ssub.s32 %s11, 2
        // Predicated region
        $region53: #{tpu_custom_call.1} parent=51 // pred_check
          %p4839 = pneg %p101
        $region54: #{tpu_custom_call.1} parent=51 // pred_check_branch
          %4841 = sbr.rel (%p4839) target = $region56
        $region55: #{tpu_custom_call.1} parent=51 // pred_region
          %s4842 = sand.u32 %s86, 1
          %s4843 = scalar_lea.sflag [#allocation8], %s4842
          %s4844 = sand.u32 %s86, 1
          %s4845 = smul.addr %s4844, 8
          %s4846 = scalar_lea.vmem [#allocation7], %s4845
          %4848 = dma.done %s4843, 128
        $region56: #{tpu_custom_call.1} parent=51 // pred_fallthru
          _
      $region52: #{tpu_custom_call.1} parent=5 // pred_fallthru
        _
    $region6: #{tpu_custom_call.1} parent=1 // loop_footer
      %s15 = sadd.s32 1, %s11
    $region7: #{tpu_custom_call.1} parent=1 // loop_footer_branch
      %10 = sbr.rel target = $region3
    $region8: #{tpu_custom_call.1} parent=1 // loop_exit
      _
    %4849 = vsyncpa [#allocation8], 1
    %s4850 = scalar_lea.sflag [#allocation8], 1
    %4851 = vsyncpa %s4850, 1

</llo_original>
